<compile_context>
chip_gen: v6e
topology: v6e:2x2x1
jax: 0.10.0
libtpu: 0.0.40
codegen_flags: <defaults>
</compile_context>

<pallas_src>
import math
import functools

import jax
import jax.numpy as jnp
from jax import lax
from jax.experimental import pallas as pl
from jax.experimental.pallas import tpu as pltpu


def _layer_norm(x, w, b, eps=1e-5):
    mu = jnp.mean(x, axis=-1, keepdims=True)
    xc = x - mu
    var = jnp.mean(xc * xc, axis=-1, keepdims=True)
    return xc * lax.rsqrt(var + eps) * w + b


# ---------------------------------------------------------------------------
# Pallas kernel: grid = (s_tile, layer).  One grid step == one encoder layer
# applied to one s-tile; the residual stream lives in VMEM scratch across the
# layer axis.  l==0 applies embedding scale + positional encoding, l==L-1 does
# the per-tile mean-pool + final Linear.
# ---------------------------------------------------------------------------
def transformer_kernel(x_ref, pe_ref,
                       wqkv_ref, bqkv_ref, wo_ref, bo_ref,
                       w1_ref, b1_ref, w2_ref, b2_ref,
                       ln1w_ref, ln1b_ref, ln2w_ref, ln2b_ref,
                       wf_ref,
                       out_ref,
                       x_scr,
                       *, ST, Bp, B, S, E, H, scale, approx_recip):
    Dh = E // H
    M = ST * Bp
    l = pl.program_id(1)
    cdt = wqkv_ref.dtype                        # matmul-operand dtype (f32 / bf16)

    # -- step 0 of each s-tile: embedding scale + positional encoding ---------
    @pl.when(l == 0)
    def _():
        x_scr[...] = x_ref[...] * scale + pe_ref[...]

    x2 = x_scr[...]                             # (M, E) f32 residual stream

    # -- fused QKV projection (one MXU pass; 1/sqrt(Dh) pre-folded into Q) ----
    qkv = jnp.dot(x2.astype(cdt), wqkv_ref[0],
                  preferred_element_type=jnp.float32) + bqkv_ref[0]   # (M, 3E) f32
    qkv3 = qkv.reshape(ST, Bp, 3 * E)           # tile-aligned split (Bp % 8 == 0)

    # static key-padding bias, only present when B was padded up to Bp
    if Bp > B:
        key_bias = jnp.where(
            lax.broadcasted_iota(jnp.int32, (1, 1, Bp), 2) >= B,
            jnp.float32(-1e30), jnp.float32(0.0))
    else:
        key_bias = None

    # -- self-attention: per-s batched Bp x Bp attention (batch dim = s) ------
    head_outs = []
    for h in range(H):                          # static head loop
        qh = qkv3[:, :, h * Dh:(h + 1) * Dh].astype(cdt)
        kh = qkv3[:, :, E + h * Dh:E + (h + 1) * Dh].astype(cdt)
        vh = qkv3[:, :, 2 * E + h * Dh:2 * E + (h + 1) * Dh].astype(cdt)
        sc = jnp.einsum('sid,sjd->sij', qh, kh,
                        preferred_element_type=jnp.float32)           # (ST, Bp, Bp)
        if key_bias is not None:
            sc = sc + key_bias
        sc = sc - jnp.max(sc, axis=-1, keepdims=True)
        p = jnp.exp(sc)                                               # f32 softmax
        p = p * pl.reciprocal(jnp.sum(p, axis=-1, keepdims=True),
                              approx=approx_recip)
        head_outs.append(
            jnp.einsum('sij,sjd->sid', p.astype(cdt), vh,
                       preferred_element_type=jnp.float32))           # (ST, Bp, Dh)
    attn = jnp.concatenate(head_outs, axis=-1).reshape(M, E)
    attn = jnp.dot(attn.astype(cdt), wo_ref[0],
                   preferred_element_type=jnp.float32) + bo_ref[0]

    x2 = _layer_norm(x2 + attn, ln1w_ref[0], ln1b_ref[0])

    # -- feed-forward ----------------------------------------------------------
    hid = jnp.maximum(
        jnp.dot(x2.astype(cdt), w1_ref[0],
                preferred_element_type=jnp.float32) + b1_ref[0], 0.0)
    ff = jnp.dot(hid.astype(cdt), w2_ref[0],
                 preferred_element_type=jnp.float32) + b2_ref[0]
    x2 = _layer_norm(x2 + ff, ln2w_ref[0], ln2b_ref[0])

    x_scr[...] = x2

    # -- last layer: per-tile partial mean over S + final Linear --------------
    @pl.when(l == pl.num_programs(1) - 1)
    def _():
        pooled = jnp.sum(x2.reshape(ST, Bp, E), axis=0) * (1.0 / S)   # (Bp, E)
        part = jnp.dot(pooled.astype(cdt), wf_ref[...],
                       preferred_element_type=jnp.float32)            # (Bp, C)
        out_ref[...] = part[None]


# ---------------------------------------------------------------------------
# Wrapper: embedding gather, s-major layout + batch padding, QKV fusion,
# pallas_call plumbing, and the tiny cross-tile epilogue.
# ---------------------------------------------------------------------------
def text_transformer_forward(tokens, params, *, num_heads, num_s_tiles=1,
                             compute_dtype=jnp.float32):
    B, S = tokens.shape
    _, E = params["embedding"].shape
    L = params["wq"].shape[0]
    F = params["w1"].shape[2]
    C = params["wf"].shape[1]
    H = num_heads
    assert E % H == 0
    Dh = E // H
    assert S % num_s_tiles == 0
    ST = S // num_s_tiles
    Bp = ((B + 7) // 8) * 8                  # pad the attention axis to 8 sublanes
    M = ST * Bp
    scale = math.sqrt(S)                     # quirk: x.size(-1) of the token tensor
    cdt = jnp.dtype(compute_dtype)
    approx_recip = (cdt == jnp.dtype(jnp.bfloat16))

    # host-side glue: embedding gather, (S, Bp, E) s-major layout, flatten
    x_emb = jnp.take(params["embedding"], tokens, axis=0)           # (B, S, E)
    x_sm = jnp.transpose(x_emb, (1, 0, 2)).astype(jnp.float32)      # (S, B, E)
    x_sm = jnp.pad(x_sm, ((0, 0), (0, Bp - B), (0, 0)))
    x2 = x_sm.reshape(S * Bp, E)

    # pe[:B] broadcasts over S in the PyTorch module -> per row (s, b): pe[b]
    pe_tile = jnp.tile(params["pe"][:Bp, 0, :].astype(jnp.float32), (ST, 1))  # (M, E)

    # fused QKV weights; fold 1/sqrt(Dh) into the Q block (host-side, free)
    qscale = 1.0 / math.sqrt(Dh)
    wqkv = jnp.concatenate(
        [params["wq"] * qscale, params["wk"], params["wv"]], axis=-1)         # (L, E, 3E)
    bqkv = jnp.concatenate(
        [params["bq"] * qscale, params["bk"], params["bv"]], axis=-1)         # (L, 1, 3E)

    # matmul weights in compute_dtype; biases / LN params stay f32
    wqkv_c = wqkv.astype(cdt)
    wo_c = params["wo"].astype(cdt)
    w1_c = params["w1"].astype(cdt)
    w2_c = params["w2"].astype(cdt)
    wf_c = params["wf"].astype(cdt)

    kernel = functools.partial(
        transformer_kernel, ST=ST, Bp=Bp, B=B, S=S, E=E, H=H,
        scale=scale, approx_recip=approx_recip)

    def layer_spec(d1, d2):
        return pl.BlockSpec((1, d1, d2), lambda st, l: (l, 0, 0))

    in_specs = [
        pl.BlockSpec((M, E), lambda st, l: (st, 0)),   # x (fetched once per s-tile)
        pl.BlockSpec((M, E), lambda st, l: (0, 0)),    # pe tile (fetched once)
        layer_spec(E, 3 * E), layer_spec(1, 3 * E),    # wqkv, bqkv
        layer_spec(E, E), layer_spec(1, E),            # wo, bo
        layer_spec(E, F), layer_spec(1, F),            # w1, b1
        layer_spec(F, E), layer_spec(1, E),            # w2, b2
        layer_spec(1, E), layer_spec(1, E),            # ln1 w/b
        layer_spec(1, E), layer_spec(1, E),            # ln2 w/b
        pl.BlockSpec((E, C), lambda st, l: (0, 0)),    # final fc weight^T
    ]
    out_spec = pl.BlockSpec((1, Bp, C), lambda st, l: (st, 0, 0))

    # advisory cost hint for XLA scheduling around the custom call
    rows = S * Bp
    flops = L * (2 * rows * E * 3 * E          # fused QKV
                 + 4 * S * H * Bp * Bp * Dh    # scores + PV
                 + 2 * rows * E * E            # out proj
                 + 4 * rows * E * F)           # FFN
    flops += 2 * Bp * E * C * num_s_tiles
    transcendentals = L * S * H * Bp * Bp
    wbytes = (wqkv.size + params["wo"].size + params["w1"].size
              + params["w2"].size + params["wf"].size) * cdt.itemsize
    bytes_accessed = num_s_tiles * wbytes + 2 * rows * E * 4
    cost = pl.CostEstimate(flops=int(flops),
                           transcendentals=int(transcendentals),
                           bytes_accessed=int(bytes_accessed))

    partial_logits = pl.pallas_call(
        kernel,
        out_shape=jax.ShapeDtypeStruct((num_s_tiles, Bp, C), jnp.float32),
        grid_spec=pltpu.PrefetchScalarGridSpec(
            num_scalar_prefetch=0,
            grid=(num_s_tiles, L),
            in_specs=in_specs,
            out_specs=out_spec,
            scratch_shapes=[pltpu.VMEM((M, E), jnp.float32)],
        ),
        compiler_params=pltpu.CompilerParams(
            dimension_semantics=("parallel", "arbitrary")),
        cost_estimate=cost,
    )(x2, pe_tile,
      wqkv_c, bqkv, wo_c, params["bo"], w1_c, params["b1"], w2_c, params["b2"],
      params["ln1w"], params["ln1b"], params["ln2w"], params["ln2b"],
      wf_c)

    # tiny epilogue (keeps the s-tile grid axis megacore-safe): sum per-tile
    # partial logits, drop batch padding, add the final bias.
    return jnp.sum(partial_logits, axis=0)[:B] + params["bf"]


# ---------------------------------------------------------------------------
# Deterministic parameter init (shapes from TextTransformer.__init__)
# ---------------------------------------------------------------------------
def init_params(key, *, vocab_size, embedding_dim, num_heads, num_layers,
                hidden_dim, num_classes, max_len=5000):
    E, F, C, L = embedding_dim, hidden_dim, num_classes, num_layers
    ks = jax.random.split(key, 20)

    def w(k, shape, s=0.05):
        return (s * jax.random.normal(k, shape)).astype(jnp.float32)

    params = {
        "embedding": w(ks[0], (vocab_size, E), 1.0),
        # attention in_proj split into q/k/v; weights stored pre-transposed (in, out)
        "wq": w(ks[1], (L, E, E)), "bq": w(ks[2], (L, 1, E)),
        "wk": w(ks[3], (L, E, E)), "bk": w(ks[4], (L, 1, E)),
        "wv": w(ks[5], (L, E, E)), "bv": w(ks[6], (L, 1, E)),
        "wo": w(ks[7], (L, E, E)), "bo": w(ks[8], (L, 1, E)),
        "w1": w(ks[9], (L, E, F)), "b1": w(ks[10], (L, 1, F)),
        "w2": w(ks[11], (L, F, E)), "b2": w(ks[12], (L, 1, E)),
        "ln1w": jnp.ones((L, 1, E), jnp.float32), "ln1b": jnp.zeros((L, 1, E), jnp.float32),
        "ln2w": jnp.ones((L, 1, E), jnp.float32), "ln2b": jnp.zeros((L, 1, E), jnp.float32),
        "wf": w(ks[13], (E, C)), "bf": w(ks[14], (1, C)),
    }
    # PositionalEncoding buffer, exactly as in the PyTorch module: (max_len, 1, E)
    pos = jnp.arange(max_len, dtype=jnp.float32)[:, None]
    div = jnp.exp(jnp.arange(0, E, 2, dtype=jnp.float32) * (-math.log(10000.0) / E))
    pe = jnp.zeros((max_len, E), jnp.float32)
    pe = pe.at[:, 0::2].set(jnp.sin(pos * div))
    pe = pe.at[:, 1::2].set(jnp.cos(pos * div))
    params["pe"] = pe[:, None, :]
    return params


# ---------------------------------------------------------------------------
# Pure-JAX reference (mirrors PyTorch semantics) for correctness checking
# ---------------------------------------------------------------------------
def reference_forward(tokens, params, *, num_heads):
    B, S = tokens.shape
    E = params["embedding"].shape[1]
    H = num_heads
    Dh = E // H

    def ln(x, wt, bs, eps=1e-5):
        mu = x.mean(-1, keepdims=True)
        var = ((x - mu) ** 2).mean(-1, keepdims=True)
        return (x - mu) / jnp.sqrt(var + eps) * wt + bs

    x = jnp.take(params["embedding"], tokens, axis=0) * math.sqrt(S)   # (B,S,E)
    x = x + params["pe"][:B]                                           # pe[:B] bcast over S
    L = params["wq"].shape[0]
    for l in range(L):
        q = (x @ params["wq"][l] + params["bq"][l]).reshape(B, S, H, Dh)
        k = (x @ params["wk"][l] + params["bk"][l]).reshape(B, S, H, Dh)
        v = (x @ params["wv"][l] + params["bv"][l]).reshape(B, S, H, Dh)
        sc = jnp.einsum("ishd,jshd->hsij", q, k) / math.sqrt(Dh)
        p = jax.nn.softmax(sc, axis=-1)
        attn = jnp.einsum("hsij,jshd->ishd", p, v).reshape(B, S, E)
        attn = attn @ params["wo"][l] + params["bo"][l]
        x = ln(x + attn, params["ln1w"][l], params["ln1b"][l])
        ff = jax.nn.relu(x @ params["w1"][l] + params["b1"][l])
        ff = ff @ params["w2"][l] + params["b2"][l]
        x = ln(x + ff, params["ln2w"][l], params["ln2b"][l])
    pooled = x.mean(axis=1)                                            # mean over dim=1 (S)
    return pooled @ params["wf"] + params["bf"]


if __name__ == "__main__":
    vocab_size, embedding_dim, num_heads = 50, 32, 4
    num_layers, hidden_dim, num_classes = 2, 64, 5
    B, S = 2, 8

    key = jax.random.PRNGKey(0)
    kp, kt = jax.random.split(key)
    params = init_params(kp, vocab_size=vocab_size, embedding_dim=embedding_dim,
                         num_heads=num_heads, num_layers=num_layers,
                         hidden_dim=hidden_dim, num_classes=num_classes)
    tokens = jax.random.randint(kt, (B, S), 0, vocab_size, dtype=jnp.int32)

    ref = reference_forward(tokens, params, num_heads=num_heads)

    # f32 matmul operands, 2 s-tiles (exercises the tiled / megacore-ready path)
    out = text_transformer_forward(tokens, params, num_heads=num_heads,
                                   num_s_tiles=2, compute_dtype=jnp.float32)
    out = jax.block_until_ready(out)
    assert out.shape == (B, num_classes), out.shape
    assert bool(jnp.allclose(out, ref, atol=1e-3, rtol=1e-3)), (out, ref)

    # bf16 matmul operands (recommended on v6e/v7x); element-wise math stays f32
    out_bf16 = text_transformer_forward(tokens, params, num_heads=num_heads,
                                        num_s_tiles=2, compute_dtype=jnp.bfloat16)
    out_bf16 = jax.block_until_ready(out_bf16)
    assert bool(jnp.allclose(out_bf16, ref, atol=6e-2, rtol=6e-2)), (out_bf16, ref)

    print("KERNEL_OK")
</pallas_src>

<mosaic_0001>
module attributes {stable_mosaic.version = 11 : i64} {
  func.func @transformer_kernel(%arg0: i32, %arg1: i32, %arg2: memref<32x32xf32, #tpu.memory_space<vmem>>, %arg3: memref<32x32xf32, #tpu.memory_space<vmem>>, %arg4: memref<1x32x96xf32, #tpu.memory_space<vmem>>, %arg5: memref<1x1x96xf32, #tpu.memory_space<vmem>>, %arg6: memref<1x32x32xf32, #tpu.memory_space<vmem>>, %arg7: memref<1x1x32xf32, #tpu.memory_space<vmem>>, %arg8: memref<1x32x64xf32, #tpu.memory_space<vmem>>, %arg9: memref<1x1x64xf32, #tpu.memory_space<vmem>>, %arg10: memref<1x64x32xf32, #tpu.memory_space<vmem>>, %arg11: memref<1x1x32xf32, #tpu.memory_space<vmem>>, %arg12: memref<1x1x32xf32, #tpu.memory_space<vmem>>, %arg13: memref<1x1x32xf32, #tpu.memory_space<vmem>>, %arg14: memref<1x1x32xf32, #tpu.memory_space<vmem>>, %arg15: memref<1x1x32xf32, #tpu.memory_space<vmem>>, %arg16: memref<32x5xf32, #tpu.memory_space<vmem>>, %arg17: memref<1x8x5xf32, #tpu.memory_space<vmem>>, %arg18: memref<32x32xf32, #tpu.memory_space<vmem>>) attributes {dimension_semantics = [#tpu.dimension_semantics<parallel>, #tpu.dimension_semantics<arbitrary>], iteration_bounds = array<i64: 2, 2>, scalar_prefetch = 0 : i64, scratch_operands = 1 : i64, tpu.core_type = #tpu.core_type<tc>, window_params = [{transform_indices = @transform_0, window_bounds = array<i64: 32, 32>}, {pipeline_mode = #tpu.pipeline_mode<synchronous>, transform_indices = @transform_1, window_bounds = array<i64: 32, 32>}, {transform_indices = @transform_2, window_bounds = array<i64: 1, 32, 96>}, {transform_indices = @transform_3, window_bounds = array<i64: 1, 1, 96>}, {transform_indices = @transform_4, window_bounds = array<i64: 1, 32, 32>}, {transform_indices = @transform_5, window_bounds = array<i64: 1, 1, 32>}, {transform_indices = @transform_6, window_bounds = array<i64: 1, 32, 64>}, {transform_indices = @transform_7, window_bounds = array<i64: 1, 1, 64>}, {transform_indices = @transform_8, window_bounds = array<i64: 1, 64, 32>}, {transform_indices = @transform_9, window_bounds = array<i64: 1, 1, 32>}, {transform_indices = @transform_10, window_bounds = array<i64: 1, 1, 32>}, {transform_indices = @transform_11, window_bounds = array<i64: 1, 1, 32>}, {transform_indices = @transform_12, window_bounds = array<i64: 1, 1, 32>}, {transform_indices = @transform_13, window_bounds = array<i64: 1, 1, 32>}, {pipeline_mode = #tpu.pipeline_mode<synchronous>, transform_indices = @transform_14, window_bounds = array<i64: 32, 5>}, {transform_indices = @transform_15, window_bounds = array<i64: 1, 8, 5>}]} {
    %c0_i32 = arith.constant 0 : i32
    %0 = arith.cmpi eq, %arg1, %c0_i32 : i32
    %1 = arith.extui %0 : i1 to i32
    %c0_i32_0 = arith.constant 0 : i32
    %2 = arith.cmpi ne, %1, %c0_i32_0 : i32
    scf.if %2 {
      %c0_73 = arith.constant 0 : index
      %c0_74 = arith.constant 0 : index
      %165 = vector.load %arg2[%c0_73, %c0_74] : memref<32x32xf32, #tpu.memory_space<vmem>>, vector<32x32xf32>
      %cst_75 = arith.constant 2.82842708 : f32
      %166 = vector.broadcast %cst_75 : f32 to vector<32x32xf32>
      %167 = arith.mulf %165, %166 : vector<32x32xf32>
      %c0_76 = arith.constant 0 : index
      %c0_77 = arith.constant 0 : index
      %168 = vector.load %arg3[%c0_76, %c0_77] : memref<32x32xf32, #tpu.memory_space<vmem>>, vector<32x32xf32>
      %169 = arith.addf %167, %168 : vector<32x32xf32>
      %c0_78 = arith.constant 0 : index
      %c0_79 = arith.constant 0 : index
      %170 = vector.load %arg18[%c0_78, %c0_79] : memref<32x32xf32, #tpu.memory_space<vmem>>, vector<32x32xf32>
      tpu.vector_store %arg18[%c0_78, %c0_79], %169 {strides = array<i32>} : memref<32x32xf32, #tpu.memory_space<vmem>>, vector<32x32xf32>,
    } else {
    }
    %c0 = arith.constant 0 : index
    %c0_1 = arith.constant 0 : index
    %3 = vector.load %arg18[%c0, %c0_1] : memref<32x32xf32, #tpu.memory_space<vmem>>, vector<32x32xf32>
    %c0_2 = arith.constant 0 : index
    %c0_3 = arith.constant 0 : index
    %c0_4 = arith.constant 0 : index
    %4 = vector.load %arg4[%c0_2, %c0_3, %c0_4] : memref<1x32x96xf32, #tpu.memory_space<vmem>>, vector<1x32x96xf32>
    %5 = vector.shape_cast %4 : vector<1x32x96xf32> to vector<32x96xf32>
    %cst = arith.constant dense<0.000000e+00> : vector<32x96xf32>
    %6 = tpu.matmul %3, %5, %cst {dimension_numbers = #tpu.dot_dimension_numbers<[1], [0], [0], [1], [0, 0, 1, 1], [], []>} : vector<32x32xf32>, vector<32x96xf32>, vector<32x96xf32> -> vector<32x96xf32>
    %c0_5 = arith.constant 0 : index
    %c0_6 = arith.constant 0 : index
    %c0_7 = arith.constant 0 : index
    %7 = vector.load %arg5[%c0_5, %c0_6, %c0_7] : memref<1x1x96xf32, #tpu.memory_space<vmem>>, vector<1x1x96xf32>
    %8 = vector.shape_cast %7 : vector<1x1x96xf32> to vector<1x96xf32>
    %9 = vector.broadcast %8 : vector<1x96xf32> to vector<32x96xf32>
    %10 = arith.addf %6, %9 : vector<32x96xf32>
    %11 = vector.shape_cast %10 : vector<32x96xf32> to vector<4x8x96xf32>
    %12 = tpu.iota {dimensions = array<i32: 2>} : vector<1x1x8xi32>
    %c2_i32 = arith.constant 2 : i32
    %13 = vector.broadcast %c2_i32 : i32 to vector<1x1x8xi32>
    %14 = arith.cmpi sge, %12, %13 : vector<1x1x8xi32>
    %cst_8 = arith.constant -1.000000e+30 : f32
    %cst_9 = arith.constant 0.000000e+00 : f32
    %15 = vector.broadcast %cst_8 : f32 to vector<1x1x8xf32>
    %16 = vector.broadcast %cst_9 : f32 to vector<1x1x8xf32>
    %17 = arith.select %14, %15, %16 : vector<1x1x8xi1>, vector<1x1x8xf32>
    %18 = vector.extract_strided_slice %11 {offsets = [0, 0, 0], sizes = [4, 8, 8], strides = [1, 1, 1]} : vector<4x8x96xf32> to vector<4x8x8xf32>
    %19 = vector.extract_strided_slice %11 {offsets = [0, 0, 32], sizes = [4, 8, 8], strides = [1, 1, 1]} : vector<4x8x96xf32> to vector<4x8x8xf32>
    %20 = vector.extract_strided_slice %11 {offsets = [0, 0, 64], sizes = [4, 8, 8], strides = [1, 1, 1]} : vector<4x8x96xf32> to vector<4x8x8xf32>
    "tpu.trace_start"() <{level = 10 : i32, message = "sid,sjd->sij"}> : () -> ()
    %cst_10 = arith.constant dense<0.000000e+00> : vector<4x8x8xf32>
    %21 = tpu.matmul %18, %19, %cst_10 {dimension_numbers = #tpu.dot_dimension_numbers<[2], [2], [1], [1], [0, 0, 0, 1, 1, 1], [0], [0]>} : vector<4x8x8xf32>, vector<4x8x8xf32>, vector<4x8x8xf32> -> vector<4x8x8xf32>
    "tpu.trace_stop"() : () -> ()
    %22 = vector.broadcast %17 : vector<1x1x8xf32> to vector<4x8x8xf32>
    %23 = arith.addf %21, %22 : vector<4x8x8xf32>
    %cst_11 = arith.constant dense<0xFF800000> : vector<4x8xf32>
    %24 = vector.multi_reduction <maximumf>, %23, %cst_11 [2] : vector<4x8x8xf32> to vector<4x8xf32>
    %25 = vector.shape_cast %24 : vector<4x8xf32> to vector<4x8x1xf32>
    %26 = vector.broadcast %25 : vector<4x8x1xf32> to vector<4x8x8xf32>
    %27 = arith.subf %23, %26 : vector<4x8x8xf32>
    %28 = math.exp %27 : vector<4x8x8xf32>
    %cst_12 = arith.constant dense<0.000000e+00> : vector<4x8xf32>
    %29 = vector.multi_reduction <add>, %28, %cst_12 [2] : vector<4x8x8xf32> to vector<4x8xf32>
    %30 = vector.shape_cast %29 : vector<4x8xf32> to vector<4x8x1xf32>
    %31 = tpu.reciprocal %30 : vector<4x8x1xf32> -> vector<4x8x1xf32>
    %32 = vector.broadcast %31 : vector<4x8x1xf32> to vector<4x8x8xf32>
    %33 = arith.mulf %28, %32 : vector<4x8x8xf32>
    "tpu.trace_start"() <{level = 10 : i32, message = "sij,sjd->sid"}> : () -> ()
    %cst_13 = arith.constant dense<0.000000e+00> : vector<4x8x8xf32>
    %34 = tpu.matmul %33, %20, %cst_13 {dimension_numbers = #tpu.dot_dimension_numbers<[2], [1], [1], [2], [0, 0, 0, 1, 1, 2], [0], [0]>} : vector<4x8x8xf32>, vector<4x8x8xf32>, vector<4x8x8xf32> -> vector<4x8x8xf32>
    "tpu.trace_stop"() : () -> ()
    %35 = vector.extract_strided_slice %11 {offsets = [0, 0, 8], sizes = [4, 8, 8], strides = [1, 1, 1]} : vector<4x8x96xf32> to vector<4x8x8xf32>
    %36 = vector.extract_strided_slice %11 {offsets = [0, 0, 40], sizes = [4, 8, 8], strides = [1, 1, 1]} : vector<4x8x96xf32> to vector<4x8x8xf32>
    %37 = vector.extract_strided_slice %11 {offsets = [0, 0, 72], sizes = [4, 8, 8], strides = [1, 1, 1]} : vector<4x8x96xf32> to vector<4x8x8xf32>
    "tpu.trace_start"() <{level = 10 : i32, message = "sid,sjd->sij"}> : () -> ()
    %cst_14 = arith.constant dense<0.000000e+00> : vector<4x8x8xf32>
    %38 = tpu.matmul %35, %36, %cst_14 {dimension_numbers = #tpu.dot_dimension_numbers<[2], [2], [1], [1], [0, 0, 0, 1, 1, 1], [0], [0]>} : vector<4x8x8xf32>, vector<4x8x8xf32>, vector<4x8x8xf32> -> vector<4x8x8xf32>
    "tpu.trace_stop"() : () -> ()
    %39 = vector.broadcast %17 : vector<1x1x8xf32> to vector<4x8x8xf32>
    %40 = arith.addf %38, %39 : vector<4x8x8xf32>
    %cst_15 = arith.constant dense<0xFF800000> : vector<4x8xf32>
    %41 = vector.multi_reduction <maximumf>, %40, %cst_15 [2] : vector<4x8x8xf32> to vector<4x8xf32>
    %42 = vector.shape_cast %41 : vector<4x8xf32> to vector<4x8x1xf32>
    %43 = vector.broadcast %42 : vector<4x8x1xf32> to vector<4x8x8xf32>
    %44 = arith.subf %40, %43 : vector<4x8x8xf32>
    %45 = math.exp %44 : vector<4x8x8xf32>
    %cst_16 = arith.constant dense<0.000000e+00> : vector<4x8xf32>
    %46 = vector.multi_reduction <add>, %45, %cst_16 [2] : vector<4x8x8xf32> to vector<4x8xf32>
    %47 = vector.shape_cast %46 : vector<4x8xf32> to vector<4x8x1xf32>
    %48 = tpu.reciprocal %47 : vector<4x8x1xf32> -> vector<4x8x1xf32>
    %49 = vector.broadcast %48 : vector<4x8x1xf32> to vector<4x8x8xf32>
    %50 = arith.mulf %45, %49 : vector<4x8x8xf32>
    "tpu.trace_start"() <{level = 10 : i32, message = "sij,sjd->sid"}> : () -> ()
    %cst_17 = arith.constant dense<0.000000e+00> : vector<4x8x8xf32>
    %51 = tpu.matmul %50, %37, %cst_17 {dimension_numbers = #tpu.dot_dimension_numbers<[2], [1], [1], [2], [0, 0, 0, 1, 1, 2], [0], [0]>} : vector<4x8x8xf32>, vector<4x8x8xf32>, vector<4x8x8xf32> -> vector<4x8x8xf32>
    "tpu.trace_stop"() : () -> ()
    %52 = vector.extract_strided_slice %11 {offsets = [0, 0, 16], sizes = [4, 8, 8], strides = [1, 1, 1]} : vector<4x8x96xf32> to vector<4x8x8xf32>
    %53 = vector.extract_strided_slice %11 {offsets = [0, 0, 48], sizes = [4, 8, 8], strides = [1, 1, 1]} : vector<4x8x96xf32> to vector<4x8x8xf32>
    %54 = vector.extract_strided_slice %11 {offsets = [0, 0, 80], sizes = [4, 8, 8], strides = [1, 1, 1]} : vector<4x8x96xf32> to vector<4x8x8xf32>
    "tpu.trace_start"() <{level = 10 : i32, message = "sid,sjd->sij"}> : () -> ()
    %cst_18 = arith.constant dense<0.000000e+00> : vector<4x8x8xf32>
    %55 = tpu.matmul %52, %53, %cst_18 {dimension_numbers = #tpu.dot_dimension_numbers<[2], [2], [1], [1], [0, 0, 0, 1, 1, 1], [0], [0]>} : vector<4x8x8xf32>, vector<4x8x8xf32>, vector<4x8x8xf32> -> vector<4x8x8xf32>
    "tpu.trace_stop"() : () -> ()
    %56 = vector.broadcast %17 : vector<1x1x8xf32> to vector<4x8x8xf32>
    %57 = arith.addf %55, %56 : vector<4x8x8xf32>
    %cst_19 = arith.constant dense<0xFF800000> : vector<4x8xf32>
    %58 = vector.multi_reduction <maximumf>, %57, %cst_19 [2] : vector<4x8x8xf32> to vector<4x8xf32>
    %59 = vector.shape_cast %58 : vector<4x8xf32> to vector<4x8x1xf32>
    %60 = vector.broadcast %59 : vector<4x8x1xf32> to vector<4x8x8xf32>
    %61 = arith.subf %57, %60 : vector<4x8x8xf32>
    %62 = math.exp %61 : vector<4x8x8xf32>
    %cst_20 = arith.constant dense<0.000000e+00> : vector<4x8xf32>
    %63 = vector.multi_reduction <add>, %62, %cst_20 [2] : vector<4x8x8xf32> to vector<4x8xf32>
    %64 = vector.shape_cast %63 : vector<4x8xf32> to vector<4x8x1xf32>
    %65 = tpu.reciprocal %64 : vector<4x8x1xf32> -> vector<4x8x1xf32>
    %66 = vector.broadcast %65 : vector<4x8x1xf32> to vector<4x8x8xf32>
    %67 = arith.mulf %62, %66 : vector<4x8x8xf32>
    "tpu.trace_start"() <{level = 10 : i32, message = "sij,sjd->sid"}> : () -> ()
    %cst_21 = arith.constant dense<0.000000e+00> : vector<4x8x8xf32>
    %68 = tpu.matmul %67, %54, %cst_21 {dimension_numbers = #tpu.dot_dimension_numbers<[2], [1], [1], [2], [0, 0, 0, 1, 1, 2], [0], [0]>} : vector<4x8x8xf32>, vector<4x8x8xf32>, vector<4x8x8xf32> -> vector<4x8x8xf32>
    "tpu.trace_stop"() : () -> ()
    %69 = vector.extract_strided_slice %11 {offsets = [0, 0, 24], sizes = [4, 8, 8], strides = [1, 1, 1]} : vector<4x8x96xf32> to vector<4x8x8xf32>
    %70 = vector.extract_strided_slice %11 {offsets = [0, 0, 56], sizes = [4, 8, 8], strides = [1, 1, 1]} : vector<4x8x96xf32> to vector<4x8x8xf32>
    %71 = vector.extract_strided_slice %11 {offsets = [0, 0, 88], sizes = [4, 8, 8], strides = [1, 1, 1]} : vector<4x8x96xf32> to vector<4x8x8xf32>
    "tpu.trace_start"() <{level = 10 : i32, message = "sid,sjd->sij"}> : () -> ()
    %cst_22 = arith.constant dense<0.000000e+00> : vector<4x8x8xf32>
    %72 = tpu.matmul %69, %70, %cst_22 {dimension_numbers = #tpu.dot_dimension_numbers<[2], [2], [1], [1], [0, 0, 0, 1, 1, 1], [0], [0]>} : vector<4x8x8xf32>, vector<4x8x8xf32>, vector<4x8x8xf32> -> vector<4x8x8xf32>
    "tpu.trace_stop"() : () -> ()
    %73 = vector.broadcast %17 : vector<1x1x8xf32> to vector<4x8x8xf32>
    %74 = arith.addf %72, %73 : vector<4x8x8xf32>
    %cst_23 = arith.constant dense<0xFF800000> : vector<4x8xf32>
    %75 = vector.multi_reduction <maximumf>, %74, %cst_23 [2] : vector<4x8x8xf32> to vector<4x8xf32>
    %76 = vector.shape_cast %75 : vector<4x8xf32> to vector<4x8x1xf32>
    %77 = vector.broadcast %76 : vector<4x8x1xf32> to vector<4x8x8xf32>
    %78 = arith.subf %74, %77 : vector<4x8x8xf32>
    %79 = math.exp %78 : vector<4x8x8xf32>
    %cst_24 = arith.constant dense<0.000000e+00> : vector<4x8xf32>
    %80 = vector.multi_reduction <add>, %79, %cst_24 [2] : vector<4x8x8xf32> to vector<4x8xf32>
    %81 = vector.shape_cast %80 : vector<4x8xf32> to vector<4x8x1xf32>
    %82 = tpu.reciprocal %81 : vector<4x8x1xf32> -> vector<4x8x1xf32>
    %83 = vector.broadcast %82 : vector<4x8x1xf32> to vector<4x8x8xf32>
    %84 = arith.mulf %79, %83 : vector<4x8x8xf32>
    "tpu.trace_start"() <{level = 10 : i32, message = "sij,sjd->sid"}> : () -> ()
    %cst_25 = arith.constant dense<0.000000e+00> : vector<4x8x8xf32>
    %85 = tpu.matmul %84, %71, %cst_25 {dimension_numbers = #tpu.dot_dimension_numbers<[2], [1], [1], [2], [0, 0, 0, 1, 1, 2], [0], [0]>} : vector<4x8x8xf32>, vector<4x8x8xf32>, vector<4x8x8xf32> -> vector<4x8x8xf32>
    "tpu.trace_stop"() : () -> ()
    %86 = tpu.concatenate %34, %51, %68, %85 in 2 : vector<4x8x8xf32>, vector<4x8x8xf32>, vector<4x8x8xf32>, vector<4x8x8xf32> -> vector<4x8x32xf32>
    %87 = vector.shape_cast %86 : vector<4x8x32xf32> to vector<32x32xf32>
    %c0_26 = arith.constant 0 : index
    %c0_27 = arith.constant 0 : index
    %c0_28 = arith.constant 0 : index
    %88 = vector.load %arg6[%c0_26, %c0_27, %c0_28] : memref<1x32x32xf32, #tpu.memory_space<vmem>>, vector<1x32x32xf32>
    %89 = vector.shape_cast %88 : vector<1x32x32xf32> to vector<32x32xf32>
    %cst_29 = arith.constant dense<0.000000e+00> : vector<32x32xf32>
    %90 = tpu.matmul %87, %89, %cst_29 {dimension_numbers = #tpu.dot_dimension_numbers<[1], [0], [0], [1], [0, 0, 1, 1], [], []>} : vector<32x32xf32>, vector<32x32xf32>, vector<32x32xf32> -> vector<32x32xf32>
    %c0_30 = arith.constant 0 : index
    %c0_31 = arith.constant 0 : index
    %c0_32 = arith.constant 0 : index
    %91 = vector.load %arg7[%c0_30, %c0_31, %c0_32] : memref<1x1x32xf32, #tpu.memory_space<vmem>>, vector<1x1x32xf32>
    %92 = vector.shape_cast %91 : vector<1x1x32xf32> to vector<1x32xf32>
    %93 = vector.broadcast %92 : vector<1x32xf32> to vector<32x32xf32>
    %94 = arith.addf %90, %93 : vector<32x32xf32>
    %95 = arith.addf %3, %94 : vector<32x32xf32>
    %c0_33 = arith.constant 0 : index
    %c0_34 = arith.constant 0 : index
    %c0_35 = arith.constant 0 : index
    %96 = vector.load %arg12[%c0_33, %c0_34, %c0_35] : memref<1x1x32xf32, #tpu.memory_space<vmem>>, vector<1x1x32xf32>
    %97 = vector.shape_cast %96 : vector<1x1x32xf32> to vector<1x32xf32>
    %c0_36 = arith.constant 0 : index
    %c0_37 = arith.constant 0 : index
    %c0_38 = arith.constant 0 : index
    %98 = vector.load %arg13[%c0_36, %c0_37, %c0_38] : memref<1x1x32xf32, #tpu.memory_space<vmem>>, vector<1x1x32xf32>
    %99 = vector.shape_cast %98 : vector<1x1x32xf32> to vector<1x32xf32>
    %cst_39 = arith.constant dense<0.000000e+00> : vector<32xf32>
    %100 = vector.multi_reduction <add>, %95, %cst_39 [1] : vector<32x32xf32> to vector<32xf32>
    %101 = vector.shape_cast %100 : vector<32xf32> to vector<32x1xf32>
    %cst_40 = arith.constant 3.200000e+01 : f32
    %102 = vector.broadcast %cst_40 : f32 to vector<32x1xf32>
    %103 = arith.divf %101, %102 : vector<32x1xf32>
    %104 = vector.broadcast %103 : vector<32x1xf32> to vector<32x32xf32>
    %105 = arith.subf %95, %104 : vector<32x32xf32>
    %106 = arith.mulf %105, %105 : vector<32x32xf32>
    %cst_41 = arith.constant dense<0.000000e+00> : vector<32xf32>
    %107 = vector.multi_reduction <add>, %106, %cst_41 [1] : vector<32x32xf32> to vector<32xf32>
    %108 = vector.shape_cast %107 : vector<32xf32> to vector<32x1xf32>
    %cst_42 = arith.constant 3.200000e+01 : f32
    %109 = vector.broadcast %cst_42 : f32 to vector<32x1xf32>
    %110 = arith.divf %108, %109 : vector<32x1xf32>
    %cst_43 = arith.constant 9.99999974E-6 : f32
    %111 = vector.broadcast %cst_43 : f32 to vector<32x1xf32>
    %112 = arith.addf %110, %111 : vector<32x1xf32>
    %113 = math.rsqrt %112 : vector<32x1xf32>
    %114 = vector.broadcast %113 : vector<32x1xf32> to vector<32x32xf32>
    %115 = arith.mulf %105, %114 : vector<32x32xf32>
    %116 = vector.broadcast %97 : vector<1x32xf32> to vector<32x32xf32>
    %117 = arith.mulf %115, %116 : vector<32x32xf32>
    %118 = vector.broadcast %99 : vector<1x32xf32> to vector<32x32xf32>
    %119 = arith.addf %117, %118 : vector<32x32xf32>
    %c0_44 = arith.constant 0 : index
    %c0_45 = arith.constant 0 : index
    %c0_46 = arith.constant 0 : index
    %120 = vector.load %arg8[%c0_44, %c0_45, %c0_46] : memref<1x32x64xf32, #tpu.memory_space<vmem>>, vector<1x32x64xf32>
    %121 = vector.shape_cast %120 : vector<1x32x64xf32> to vector<32x64xf32>
    %cst_47 = arith.constant dense<0.000000e+00> : vector<32x64xf32>
    %122 = tpu.matmul %119, %121, %cst_47 {dimension_numbers = #tpu.dot_dimension_numbers<[1], [0], [0], [1], [0, 0, 1, 1], [], []>} : vector<32x32xf32>, vector<32x64xf32>, vector<32x64xf32> -> vector<32x64xf32>
    %c0_48 = arith.constant 0 : index
    %c0_49 = arith.constant 0 : index
    %c0_50 = arith.constant 0 : index
    %123 = vector.load %arg9[%c0_48, %c0_49, %c0_50] : memref<1x1x64xf32, #tpu.memory_space<vmem>>, vector<1x1x64xf32>
    %124 = vector.shape_cast %123 : vector<1x1x64xf32> to vector<1x64xf32>
    %125 = vector.broadcast %124 : vector<1x64xf32> to vector<32x64xf32>
    %126 = arith.addf %122, %125 : vector<32x64xf32>
    %cst_51 = arith.constant 0.000000e+00 : f32
    %127 = vector.broadcast %cst_51 : f32 to vector<32x64xf32>
    %128 = arith.maximumf %126, %127 : vector<32x64xf32>
    %c0_52 = arith.constant 0 : index
    %c0_53 = arith.constant 0 : index
    %c0_54 = arith.constant 0 : index
    %129 = vector.load %arg10[%c0_52, %c0_53, %c0_54] : memref<1x64x32xf32, #tpu.memory_space<vmem>>, vector<1x64x32xf32>
    %130 = vector.shape_cast %129 : vector<1x64x32xf32> to vector<64x32xf32>
    %cst_55 = arith.constant dense<0.000000e+00> : vector<32x32xf32>
    %131 = tpu.matmul %128, %130, %cst_55 {dimension_numbers = #tpu.dot_dimension_numbers<[1], [0], [0], [1], [0, 0, 1, 1], [], []>} : vector<32x64xf32>, vector<64x32xf32>, vector<32x32xf32> -> vector<32x32xf32>
    %c0_56 = arith.constant 0 : index
    %c0_57 = arith.constant 0 : index
    %c0_58 = arith.constant 0 : index
    %132 = vector.load %arg11[%c0_56, %c0_57, %c0_58] : memref<1x1x32xf32, #tpu.memory_space<vmem>>, vector<1x1x32xf32>
    %133 = vector.shape_cast %132 : vector<1x1x32xf32> to vector<1x32xf32>
    %134 = vector.broadcast %133 : vector<1x32xf32> to vector<32x32xf32>
    %135 = arith.addf %131, %134 : vector<32x32xf32>
    %136 = arith.addf %119, %135 : vector<32x32xf32>
    %c0_59 = arith.constant 0 : index
    %c0_60 = arith.constant 0 : index
    %c0_61 = arith.constant 0 : index
    %137 = vector.load %arg14[%c0_59, %c0_60, %c0_61] : memref<1x1x32xf32, #tpu.memory_space<vmem>>, vector<1x1x32xf32>
    %138 = vector.shape_cast %137 : vector<1x1x32xf32> to vector<1x32xf32>
    %c0_62 = arith.constant 0 : index
    %c0_63 = arith.constant 0 : index
    %c0_64 = arith.constant 0 : index
    %139 = vector.load %arg15[%c0_62, %c0_63, %c0_64] : memref<1x1x32xf32, #tpu.memory_space<vmem>>, vector<1x1x32xf32>
    %140 = vector.shape_cast %139 : vector<1x1x32xf32> to vector<1x32xf32>
    %cst_65 = arith.constant dense<0.000000e+00> : vector<32xf32>
    %141 = vector.multi_reduction <add>, %136, %cst_65 [1] : vector<32x32xf32> to vector<32xf32>
    %142 = vector.shape_cast %141 : vector<32xf32> to vector<32x1xf32>
    %cst_66 = arith.constant 3.200000e+01 : f32
    %143 = vector.broadcast %cst_66 : f32 to vector<32x1xf32>
    %144 = arith.divf %142, %143 : vector<32x1xf32>
    %145 = vector.broadcast %144 : vector<32x1xf32> to vector<32x32xf32>
    %146 = arith.subf %136, %145 : vector<32x32xf32>
    %147 = arith.mulf %146, %146 : vector<32x32xf32>
    %cst_67 = arith.constant dense<0.000000e+00> : vector<32xf32>
    %148 = vector.multi_reduction <add>, %147, %cst_67 [1] : vector<32x32xf32> to vector<32xf32>
    %149 = vector.shape_cast %148 : vector<32xf32> to vector<32x1xf32>
    %cst_68 = arith.constant 3.200000e+01 : f32
    %150 = vector.broadcast %cst_68 : f32 to vector<32x1xf32>
    %151 = arith.divf %149, %150 : vector<32x1xf32>
    %cst_69 = arith.constant 9.99999974E-6 : f32
    %152 = vector.broadcast %cst_69 : f32 to vector<32x1xf32>
    %153 = arith.addf %151, %152 : vector<32x1xf32>
    %154 = math.rsqrt %153 : vector<32x1xf32>
    %155 = vector.broadcast %154 : vector<32x1xf32> to vector<32x32xf32>
    %156 = arith.mulf %146, %155 : vector<32x32xf32>
    %157 = vector.broadcast %138 : vector<1x32xf32> to vector<32x32xf32>
    %158 = arith.mulf %156, %157 : vector<32x32xf32>
    %159 = vector.broadcast %140 : vector<1x32xf32> to vector<32x32xf32>
    %160 = arith.addf %158, %159 : vector<32x32xf32>
    %c0_70 = arith.constant 0 : index
    %c0_71 = arith.constant 0 : index
    %161 = vector.load %arg18[%c0_70, %c0_71] : memref<32x32xf32, #tpu.memory_space<vmem>>, vector<32x32xf32>
    tpu.vector_store %arg18[%c0_70, %c0_71], %160 {strides = array<i32>} : memref<32x32xf32, #tpu.memory_space<vmem>>, vector<32x32xf32>,
    %c1_i32 = arith.constant 1 : i32
    %162 = arith.cmpi eq, %arg1, %c1_i32 : i32
    %163 = arith.extui %162 : i1 to i32
    %c0_i32_72 = arith.constant 0 : i32
    %164 = arith.cmpi ne, %163, %c0_i32_72 : i32
    scf.if %164 {
      %165 = vector.shape_cast %160 : vector<32x32xf32> to vector<4x8x32xf32>
      %cst_73 = arith.constant dense<0.000000e+00> : vector<8x32xf32>
      %166 = vector.multi_reduction <add>, %165, %cst_73 [0] : vector<4x8x32xf32> to vector<8x32xf32>
      %cst_74 = arith.constant 1.250000e-01 : f32
      %167 = vector.broadcast %cst_74 : f32 to vector<8x32xf32>
      %168 = arith.mulf %166, %167 : vector<8x32xf32>
      %c0_75 = arith.constant 0 : index
      %c0_76 = arith.constant 0 : index
      %169 = vector.load %arg16[%c0_75, %c0_76] : memref<32x5xf32, #tpu.memory_space<vmem>>, vector<32x5xf32>
      %cst_77 = arith.constant dense<0.000000e+00> : vector<8x5xf32>
      %170 = tpu.matmul %168, %169, %cst_77 {dimension_numbers = #tpu.dot_dimension_numbers<[1], [0], [0], [1], [0, 0, 1, 1], [], []>} : vector<8x32xf32>, vector<32x5xf32>, vector<8x5xf32> -> vector<8x5xf32>
      %171 = vector.shape_cast %170 : vector<8x5xf32> to vector<1x8x5xf32>
      %c0_78 = arith.constant 0 : index
      %c0_79 = arith.constant 0 : index
      %c0_80 = arith.constant 0 : index
      %172 = vector.load %arg17[%c0_78, %c0_79, %c0_80] : memref<1x8x5xf32, #tpu.memory_space<vmem>>, vector<1x8x5xf32>
      tpu.vector_store %arg17[%c0_78, %c0_79, %c0_80], %171 {strides = array<i32>} : memref<1x8x5xf32, #tpu.memory_space<vmem>>, vector<1x8x5xf32>,
    } else {
    }
    return
  }
  func.func @transform_0(%arg0: i32, %arg1: i32) -> (i32, i32) {
    %c0_i32 = arith.constant 0 : i32
    %c0_i32_0 = arith.constant 0 : i32
    return %arg0, %c0_i32 : i32, i32
  }
  func.func @transform_1(%arg0: i32, %arg1: i32) -> (i32, i32) {
    %c0_i32 = arith.constant 0 : i32
    %c0_i32_0 = arith.constant 0 : i32
    %c0_i32_1 = arith.constant 0 : i32
    return %c0_i32, %c0_i32_0 : i32, i32
  }
  func.func @transform_2(%arg0: i32, %arg1: i32) -> (i32, i32, i32) {
    %c0_i32 = arith.constant 0 : i32
    %c0_i32_0 = arith.constant 0 : i32
    %c0_i32_1 = arith.constant 0 : i32
    return %arg1, %c0_i32, %c0_i32_0 : i32, i32, i32
  }
  func.func @transform_3(%arg0: i32, %arg1: i32) -> (i32, i32, i32) {
    %c0_i32 = arith.constant 0 : i32
    %c0_i32_0 = arith.constant 0 : i32
    %c0_i32_1 = arith.constant 0 : i32
    return %arg1, %c0_i32, %c0_i32_0 : i32, i32, i32
  }
  func.func @transform_4(%arg0: i32, %arg1: i32) -> (i32, i32, i32) {
    %c0_i32 = arith.constant 0 : i32
    %c0_i32_0 = arith.constant 0 : i32
    %c0_i32_1 = arith.constant 0 : i32
    return %arg1, %c0_i32, %c0_i32_0 : i32, i32, i32
  }
  func.func @transform_5(%arg0: i32, %arg1: i32) -> (i32, i32, i32) {
    %c0_i32 = arith.constant 0 : i32
    %c0_i32_0 = arith.constant 0 : i32
    %c0_i32_1 = arith.constant 0 : i32
    return %arg1, %c0_i32, %c0_i32_0 : i32, i32, i32
  }
  func.func @transform_6(%arg0: i32, %arg1: i32) -> (i32, i32, i32) {
    %c0_i32 = arith.constant 0 : i32
    %c0_i32_0 = arith.constant 0 : i32
    %c0_i32_1 = arith.constant 0 : i32
    return %arg1, %c0_i32, %c0_i32_0 : i32, i32, i32
  }
  func.func @transform_7(%arg0: i32, %arg1: i32) -> (i32, i32, i32) {
    %c0_i32 = arith.constant 0 : i32
    %c0_i32_0 = arith.constant 0 : i32
    %c0_i32_1 = arith.constant 0 : i32
    return %arg1, %c0_i32, %c0_i32_0 : i32, i32, i32
  }
  func.func @transform_8(%arg0: i32, %arg1: i32) -> (i32, i32, i32) {
    %c0_i32 = arith.constant 0 : i32
    %c0_i32_0 = arith.constant 0 : i32
    %c0_i32_1 = arith.constant 0 : i32
    return %arg1, %c0_i32, %c0_i32_0 : i32, i32, i32
  }
  func.func @transform_9(%arg0: i32, %arg1: i32) -> (i32, i32, i32) {
    %c0_i32 = arith.constant 0 : i32
    %c0_i32_0 = arith.constant 0 : i32
    %c0_i32_1 = arith.constant 0 : i32
    return %arg1, %c0_i32, %c0_i32_0 : i32, i32, i32
  }
  func.func @transform_10(%arg0: i32, %arg1: i32) -> (i32, i32, i32) {
    %c0_i32 = arith.constant 0 : i32
    %c0_i32_0 = arith.constant 0 : i32
    %c0_i32_1 = arith.constant 0 : i32
    return %arg1, %c0_i32, %c0_i32_0 : i32, i32, i32
  }
  func.func @transform_11(%arg0: i32, %arg1: i32) -> (i32, i32, i32) {
    %c0_i32 = arith.constant 0 : i32
    %c0_i32_0 = arith.constant 0 : i32
    %c0_i32_1 = arith.constant 0 : i32
    return %arg1, %c0_i32, %c0_i32_0 : i32, i32, i32
  }
  func.func @transform_12(%arg0: i32, %arg1: i32) -> (i32, i32, i32) {
    %c0_i32 = arith.constant 0 : i32
    %c0_i32_0 = arith.constant 0 : i32
    %c0_i32_1 = arith.constant 0 : i32
    return %arg1, %c0_i32, %c0_i32_0 : i32, i32, i32
  }
  func.func @transform_13(%arg0: i32, %arg1: i32) -> (i32, i32, i32) {
    %c0_i32 = arith.constant 0 : i32
    %c0_i32_0 = arith.constant 0 : i32
    %c0_i32_1 = arith.constant 0 : i32
    return %arg1, %c0_i32, %c0_i32_0 : i32, i32, i32
  }
  func.func @transform_14(%arg0: i32, %arg1: i32) -> (i32, i32) {
    %c0_i32 = arith.constant 0 : i32
    %c0_i32_0 = arith.constant 0 : i32
    %c0_i32_1 = arith.constant 0 : i32
    return %c0_i32, %c0_i32_0 : i32, i32
  }
  func.func @transform_15(%arg0: i32, %arg1: i32) -> (i32, i32, i32) {
    %c0_i32 = arith.constant 0 : i32
    %c0_i32_0 = arith.constant 0 : i32
    %c0_i32_1 = arith.constant 0 : i32
    return %arg0, %c0_i32, %c0_i32_0 : i32, i32, i32
  }
}

</mosaic_0001>

<llo_original>
// kernel: tpu_custom_call.1
$region0: #{tpu_custom_call.1}
  #allocation0 [shape = 'u32[]', space=smem, size = 0x4, offset = 0x4, fixed_abs, tag = 'smem constant byte address 0x4 - core index']
  #allocation1 [shape = 'u32[144,128]{1,0:T(1,128)}', space=vmem, size = 0x12000, scoped, tag = 'internal scratch']
  #allocation2 [shape = 'f32[32,32]{1,0:T(8,128)}', space=vmem, size = 0x4000, scoped, tag = 'scratch operand']
  %s0 = inlined_call_operand.vmem [shape: f32[64,32], index: 0, kind: input, shape index: {}]
  %s1 = inlined_call_operand.vmem [shape: f32[32,32], index: 1, kind: input, shape index: {}]
  %s2 = inlined_call_operand.vmem [shape: f32[2,32,96], index: 2, kind: input, shape index: {}]
  %s3 = inlined_call_operand.vmem [shape: f32[2,1,96], index: 3, kind: input, shape index: {}]
  %s4 = inlined_call_operand.vmem [shape: f32[2,32,32], index: 4, kind: input, shape index: {}]
  %s5 = inlined_call_operand.vmem [shape: f32[2,1,32], index: 5, kind: input, shape index: {}]
  %s6 = inlined_call_operand.vmem [shape: f32[2,32,64], index: 6, kind: input, shape index: {}]
  %s7 = inlined_call_operand.vmem [shape: f32[2,1,64], index: 7, kind: input, shape index: {}]
  %s8 = inlined_call_operand.vmem [shape: f32[2,64,32], index: 8, kind: input, shape index: {}]
  %s9 = inlined_call_operand.vmem [shape: f32[2,1,32], index: 9, kind: input, shape index: {}]
  %s10 = inlined_call_operand.vmem [shape: f32[2,1,32], index: 10, kind: input, shape index: {}]
  %s11 = inlined_call_operand.vmem [shape: f32[2,1,32], index: 11, kind: input, shape index: {}]
  %s12 = inlined_call_operand.vmem [shape: f32[2,1,32], index: 12, kind: input, shape index: {}]
  %s13 = inlined_call_operand.vmem [shape: f32[2,1,32], index: 13, kind: input, shape index: {}]
  %s14 = inlined_call_operand.vmem [shape: f32[32,5], index: 14, kind: input, shape index: {}]
  %s15 = inlined_call_operand.vmem [shape: f32[2,8,5], index: 15, kind: output, shape index: {}]
  %s16 = sld [smem:[#allocation0]]
  $region101: #{tpu_custom_call.1} parent=0
    _
  %s18 = ssub.s32 1, %s16
  %s19 = scalar_select 0, %s18, %s16
  loop: start=0, step=1, limit=6
  $region2: #{tpu_custom_call.1} parent=0 // loop_pre_header
    _
  $region3: #{tpu_custom_call.1} parent=0 // loop_header
    %s21 = sphi 0, %s25
    %p22 = scmp.ge.s32.totalorder %s21, 6
    %s28 = sphi 0, %s40
    %s29 = sphi 0, %s36
    %s30 = sphi 0, %s28
    %s31 = sphi 0, %s29
    %s32 = sphi 0, %s30
    %s33 = sphi 0, %s31
    %s43 = sphi 0, %s45
    %s46 = sphi 0, %s43
    %s47 = sphi 0, %s46
    %s63 = sphi 0, %s47
    %s67 = sphi 0, %s67
    %s69 = sphi 0, %s67
    %s70 = sphi 0, %s69
    %s84 = sphi 0, %s70
    %s90 = sphi 0, %s92
    %s93 = sphi 0, %s90
    %s94 = sphi 0, %s93
    %s110 = sphi 0, %s94
    %s116 = sphi 0, %s118
    %s119 = sphi 0, %s116
    %s120 = sphi 0, %s119
    %s136 = sphi 0, %s120
    %s142 = sphi 0, %s144
    %s145 = sphi 0, %s142
    %s146 = sphi 0, %s145
    %s162 = sphi 0, %s146
    %s168 = sphi 0, %s170
    %s171 = sphi 0, %s168
    %s172 = sphi 0, %s171
    %s188 = sphi 0, %s172
    %s194 = sphi 0, %s196
    %s197 = sphi 0, %s194
    %s198 = sphi 0, %s197
    %s214 = sphi 0, %s198
    %s220 = sphi 0, %s222
    %s223 = sphi 0, %s220
    %s224 = sphi 0, %s223
    %s240 = sphi 0, %s224
    %s246 = sphi 0, %s248
    %s249 = sphi 0, %s246
    %s250 = sphi 0, %s249
    %s266 = sphi 0, %s250
    %s272 = sphi 0, %s274
    %s275 = sphi 0, %s272
    %s276 = sphi 0, %s275
    %s292 = sphi 0, %s276
    %s298 = sphi 0, %s300
    %s301 = sphi 0, %s298
    %s302 = sphi 0, %s301
    %s318 = sphi 0, %s302
    %s324 = sphi 0, %s326
    %s327 = sphi 0, %s324
    %s328 = sphi 0, %s327
    %s344 = sphi 0, %s328
    %s350 = sphi 0, %s352
    %s353 = sphi 0, %s350
    %s354 = sphi 0, %s353
    %s370 = sphi 0, %s354
    %s376 = sphi 0, %s378
    %s379 = sphi 0, %s376
    %s380 = sphi 0, %s379
    %s396 = sphi 0, %s380
    %s400 = sphi 0, %s400
    %s402 = sphi 0, %s400
    %s403 = sphi 0, %s402
    %s417 = sphi 0, %s403
    %s423 = sphi 0, %s425
    %s426 = sphi 0, %s423
    %s427 = sphi 0, %s426
    %s443 = sphi 0, %s427
  $region4: #{tpu_custom_call.1} parent=0 // loop_header_branch
    %24 = sbr.rel (%p22) target = $region8
  $region5: #{tpu_custom_call.1} parent=0 // loop_body
    %s26 = ssub.s32 %s21, 1
    %s27 = ssub.s32 %s21, 2
    %s34 = sadd.s32 1, %s29
    %p35 = scmp.ge.s32.totalorder %s34, 2
    %s36 = scalar_select %p35, 0, %s34
    %s37 = sadd.s32 1, %s28
    %s38 = scalar_select %p35, %s37, %s28
    %p39 = scmp.ge.s32.totalorder %s38, 2
    %s40 = scalar_select %p39, 0, %s38
    %s41 = ssub.s32 %s28, %s40
    %p42 = scmp.eq.s32.totalorder %s41, 0
    %s44 = sadd.s32 %s43, 1
    %s45 = scalar_select %p42, %s43, %s44
    %p48 = pneg %p42
    %p49 = scmp.eq.s32.totalorder %s21, 3
    %p50 = por %p48, %p49
    %p51 = scmp.ne.s32.totalorder %s43, %s46
    %p52 = scmp.eq.s32.totalorder %s21, 0
    %p53 = por %p51, %p52
    %p54 = scmp.ne.s32.totalorder %s43, %s46
    %p55 = scmp.eq.s32.totalorder %s26, 3
    %p56 = por %p54, %p55
    %p57 = scmp.ne.s32.totalorder %s46, %s47
    %p58 = scmp.eq.s32.totalorder %s26, 0
    %p59 = por %p57, %p58
    %p60 = scmp.ne.s32.totalorder %s46, %s47
    %p61 = scmp.eq.s32.totalorder %s27, 3
    %p62 = por %p60, %p61
    %p64 = scmp.ne.s32.totalorder %s47, %s63
    %p65 = scmp.eq.s32.totalorder %s27, 0
    %p66 = por %p64, %p65
    %s68 = sadd.s32 %s67, 1
    %p71 = scmp.eq.s32.totalorder %s21, 3
    %p72 = scmp.ne.s32.totalorder %s67, %s69
    %p73 = scmp.eq.s32.totalorder %s21, 0
    %p74 = por %p72, %p73
    %p75 = scmp.ne.s32.totalorder %s67, %s69
    %p76 = scmp.eq.s32.totalorder %s26, 3
    %p77 = por %p75, %p76
    %p78 = scmp.ne.s32.totalorder %s69, %s70
    %p79 = scmp.eq.s32.totalorder %s26, 0
    %p80 = por %p78, %p79
    %p81 = scmp.ne.s32.totalorder %s69, %s70
    %p82 = scmp.eq.s32.totalorder %s27, 3
    %p83 = por %p81, %p82
    %p85 = scmp.ne.s32.totalorder %s70, %s84
    %p86 = scmp.eq.s32.totalorder %s27, 0
    %p87 = por %p85, %p86
    %s88 = ssub.s32 %s29, %s36
    %p89 = scmp.eq.s32.totalorder %s88, 0
    %s91 = sadd.s32 %s90, 1
    %s92 = scalar_select %p89, %s90, %s91
    %p95 = pneg %p89
    %p96 = scmp.eq.s32.totalorder %s21, 3
    %p97 = por %p95, %p96
    %p98 = scmp.ne.s32.totalorder %s90, %s93
    %p99 = scmp.eq.s32.totalorder %s21, 0
    %p100 = por %p98, %p99
    %p101 = scmp.ne.s32.totalorder %s90, %s93
    %p102 = scmp.eq.s32.totalorder %s26, 3
    %p103 = por %p101, %p102
    %p104 = scmp.ne.s32.totalorder %s93, %s94
    %p105 = scmp.eq.s32.totalorder %s26, 0
    %p106 = por %p104, %p105
    %p107 = scmp.ne.s32.totalorder %s93, %s94
    %p108 = scmp.eq.s32.totalorder %s27, 3
    %p109 = por %p107, %p108
    %p111 = scmp.ne.s32.totalorder %s94, %s110
    %p112 = scmp.eq.s32.totalorder %s27, 0
    %p113 = por %p111, %p112
    %s114 = ssub.s32 %s29, %s36
    %p115 = scmp.eq.s32.totalorder %s114, 0
    %s117 = sadd.s32 %s116, 1
    %s118 = scalar_select %p115, %s116, %s117
    %p121 = pneg %p115
    %p122 = scmp.eq.s32.totalorder %s21, 3
    %p123 = por %p121, %p122
    %p124 = scmp.ne.s32.totalorder %s116, %s119
    %p125 = scmp.eq.s32.totalorder %s21, 0
    %p126 = por %p124, %p125
    %p127 = scmp.ne.s32.totalorder %s116, %s119
    %p128 = scmp.eq.s32.totalorder %s26, 3
    %p129 = por %p127, %p128
    %p130 = scmp.ne.s32.totalorder %s119, %s120
    %p131 = scmp.eq.s32.totalorder %s26, 0
    %p132 = por %p130, %p131
    %p133 = scmp.ne.s32.totalorder %s119, %s120
    %p134 = scmp.eq.s32.totalorder %s27, 3
    %p135 = por %p133, %p134
    %p137 = scmp.ne.s32.totalorder %s120, %s136
    %p138 = scmp.eq.s32.totalorder %s27, 0
    %p139 = por %p137, %p138
    %s140 = ssub.s32 %s29, %s36
    %p141 = scmp.eq.s32.totalorder %s140, 0
    %s143 = sadd.s32 %s142, 1
    %s144 = scalar_select %p141, %s142, %s143
    %p147 = pneg %p141
    %p148 = scmp.eq.s32.totalorder %s21, 3
    %p149 = por %p147, %p148
    %p150 = scmp.ne.s32.totalorder %s142, %s145
    %p151 = scmp.eq.s32.totalorder %s21, 0
    %p152 = por %p150, %p151
    %p153 = scmp.ne.s32.totalorder %s142, %s145
    %p154 = scmp.eq.s32.totalorder %s26, 3
    %p155 = por %p153, %p154
    %p156 = scmp.ne.s32.totalorder %s145, %s146
    %p157 = scmp.eq.s32.totalorder %s26, 0
    %p158 = por %p156, %p157
    %p159 = scmp.ne.s32.totalorder %s145, %s146
    %p160 = scmp.eq.s32.totalorder %s27, 3
    %p161 = por %p159, %p160
    %p163 = scmp.ne.s32.totalorder %s146, %s162
    %p164 = scmp.eq.s32.totalorder %s27, 0
    %p165 = por %p163, %p164
    %s166 = ssub.s32 %s29, %s36
    %p167 = scmp.eq.s32.totalorder %s166, 0
    %s169 = sadd.s32 %s168, 1
    %s170 = scalar_select %p167, %s168, %s169
    %p173 = pneg %p167
    %p174 = scmp.eq.s32.totalorder %s21, 3
    %p175 = por %p173, %p174
    %p176 = scmp.ne.s32.totalorder %s168, %s171
    %p177 = scmp.eq.s32.totalorder %s21, 0
    %p178 = por %p176, %p177
    %p179 = scmp.ne.s32.totalorder %s168, %s171
    %p180 = scmp.eq.s32.totalorder %s26, 3
    %p181 = por %p179, %p180
    %p182 = scmp.ne.s32.totalorder %s171, %s172
    %p183 = scmp.eq.s32.totalorder %s26, 0
    %p184 = por %p182, %p183
    %p185 = scmp.ne.s32.totalorder %s171, %s172
    %p186 = scmp.eq.s32.totalorder %s27, 3
    %p187 = por %p185, %p186
    %p189 = scmp.ne.s32.totalorder %s172, %s188
    %p190 = scmp.eq.s32.totalorder %s27, 0
    %p191 = por %p189, %p190
    %s192 = ssub.s32 %s29, %s36
    %p193 = scmp.eq.s32.totalorder %s192, 0
    %s195 = sadd.s32 %s194, 1
    %s196 = scalar_select %p193, %s194, %s195
    %p199 = pneg %p193
    %p200 = scmp.eq.s32.totalorder %s21, 3
    %p201 = por %p199, %p200
    %p202 = scmp.ne.s32.totalorder %s194, %s197
    %p203 = scmp.eq.s32.totalorder %s21, 0
    %p204 = por %p202, %p203
    %p205 = scmp.ne.s32.totalorder %s194, %s197
    %p206 = scmp.eq.s32.totalorder %s26, 3
    %p207 = por %p205, %p206
    %p208 = scmp.ne.s32.totalorder %s197, %s198
    %p209 = scmp.eq.s32.totalorder %s26, 0
    %p210 = por %p208, %p209
    %p211 = scmp.ne.s32.totalorder %s197, %s198
    %p212 = scmp.eq.s32.totalorder %s27, 3
    %p213 = por %p211, %p212
    %p215 = scmp.ne.s32.totalorder %s198, %s214
    %p216 = scmp.eq.s32.totalorder %s27, 0
    %p217 = por %p215, %p216
    %s218 = ssub.s32 %s29, %s36
    %p219 = scmp.eq.s32.totalorder %s218, 0
    %s221 = sadd.s32 %s220, 1
    %s222 = scalar_select %p219, %s220, %s221
    %p225 = pneg %p219
    %p226 = scmp.eq.s32.totalorder %s21, 3
    %p227 = por %p225, %p226
    %p228 = scmp.ne.s32.totalorder %s220, %s223
    %p229 = scmp.eq.s32.totalorder %s21, 0
    %p230 = por %p228, %p229
    %p231 = scmp.ne.s32.totalorder %s220, %s223
    %p232 = scmp.eq.s32.totalorder %s26, 3
    %p233 = por %p231, %p232
    %p234 = scmp.ne.s32.totalorder %s223, %s224
    %p235 = scmp.eq.s32.totalorder %s26, 0
    %p236 = por %p234, %p235
    %p237 = scmp.ne.s32.totalorder %s223, %s224
    %p238 = scmp.eq.s32.totalorder %s27, 3
    %p239 = por %p237, %p238
    %p241 = scmp.ne.s32.totalorder %s224, %s240
    %p242 = scmp.eq.s32.totalorder %s27, 0
    %p243 = por %p241, %p242
    %s244 = ssub.s32 %s29, %s36
    %p245 = scmp.eq.s32.totalorder %s244, 0
    %s247 = sadd.s32 %s246, 1
    %s248 = scalar_select %p245, %s246, %s247
    %p251 = pneg %p245
    %p252 = scmp.eq.s32.totalorder %s21, 3
    %p253 = por %p251, %p252
    %p254 = scmp.ne.s32.totalorder %s246, %s249
    %p255 = scmp.eq.s32.totalorder %s21, 0
    %p256 = por %p254, %p255
    %p257 = scmp.ne.s32.totalorder %s246, %s249
    %p258 = scmp.eq.s32.totalorder %s26, 3
    %p259 = por %p257, %p258
    %p260 = scmp.ne.s32.totalorder %s249, %s250
    %p261 = scmp.eq.s32.totalorder %s26, 0
    %p262 = por %p260, %p261
    %p263 = scmp.ne.s32.totalorder %s249, %s250
    %p264 = scmp.eq.s32.totalorder %s27, 3
    %p265 = por %p263, %p264
    %p267 = scmp.ne.s32.totalorder %s250, %s266
    %p268 = scmp.eq.s32.totalorder %s27, 0
    %p269 = por %p267, %p268
    %s270 = ssub.s32 %s29, %s36
    %p271 = scmp.eq.s32.totalorder %s270, 0
    %s273 = sadd.s32 %s272, 1
    %s274 = scalar_select %p271, %s272, %s273
    %p277 = pneg %p271
    %p278 = scmp.eq.s32.totalorder %s21, 3
    %p279 = por %p277, %p278
    %p280 = scmp.ne.s32.totalorder %s272, %s275
    %p281 = scmp.eq.s32.totalorder %s21, 0
    %p282 = por %p280, %p281
    %p283 = scmp.ne.s32.totalorder %s272, %s275
    %p284 = scmp.eq.s32.totalorder %s26, 3
    %p285 = por %p283, %p284
    %p286 = scmp.ne.s32.totalorder %s275, %s276
    %p287 = scmp.eq.s32.totalorder %s26, 0
    %p288 = por %p286, %p287
    %p289 = scmp.ne.s32.totalorder %s275, %s276
    %p290 = scmp.eq.s32.totalorder %s27, 3
    %p291 = por %p289, %p290
    %p293 = scmp.ne.s32.totalorder %s276, %s292
    %p294 = scmp.eq.s32.totalorder %s27, 0
    %p295 = por %p293, %p294
    %s296 = ssub.s32 %s29, %s36
    %p297 = scmp.eq.s32.totalorder %s296, 0
    %s299 = sadd.s32 %s298, 1
    %s300 = scalar_select %p297, %s298, %s299
    %p303 = pneg %p297
    %p304 = scmp.eq.s32.totalorder %s21, 3
    %p305 = por %p303, %p304
    %p306 = scmp.ne.s32.totalorder %s298, %s301
    %p307 = scmp.eq.s32.totalorder %s21, 0
    %p308 = por %p306, %p307
    %p309 = scmp.ne.s32.totalorder %s298, %s301
    %p310 = scmp.eq.s32.totalorder %s26, 3
    %p311 = por %p309, %p310
    %p312 = scmp.ne.s32.totalorder %s301, %s302
    %p313 = scmp.eq.s32.totalorder %s26, 0
    %p314 = por %p312, %p313
    %p315 = scmp.ne.s32.totalorder %s301, %s302
    %p316 = scmp.eq.s32.totalorder %s27, 3
    %p317 = por %p315, %p316
    %p319 = scmp.ne.s32.totalorder %s302, %s318
    %p320 = scmp.eq.s32.totalorder %s27, 0
    %p321 = por %p319, %p320
    %s322 = ssub.s32 %s29, %s36
    %p323 = scmp.eq.s32.totalorder %s322, 0
    %s325 = sadd.s32 %s324, 1
    %s326 = scalar_select %p323, %s324, %s325
    %p329 = pneg %p323
    %p330 = scmp.eq.s32.totalorder %s21, 3
    %p331 = por %p329, %p330
    %p332 = scmp.ne.s32.totalorder %s324, %s327
    %p333 = scmp.eq.s32.totalorder %s21, 0
    %p334 = por %p332, %p333
    %p335 = scmp.ne.s32.totalorder %s324, %s327
    %p336 = scmp.eq.s32.totalorder %s26, 3
    %p337 = por %p335, %p336
    %p338 = scmp.ne.s32.totalorder %s327, %s328
    %p339 = scmp.eq.s32.totalorder %s26, 0
    %p340 = por %p338, %p339
    %p341 = scmp.ne.s32.totalorder %s327, %s328
    %p342 = scmp.eq.s32.totalorder %s27, 3
    %p343 = por %p341, %p342
    %p345 = scmp.ne.s32.totalorder %s328, %s344
    %p346 = scmp.eq.s32.totalorder %s27, 0
    %p347 = por %p345, %p346
    %s348 = ssub.s32 %s29, %s36
    %p349 = scmp.eq.s32.totalorder %s348, 0
    %s351 = sadd.s32 %s350, 1
    %s352 = scalar_select %p349, %s350, %s351
    %p355 = pneg %p349
    %p356 = scmp.eq.s32.totalorder %s21, 3
    %p357 = por %p355, %p356
    %p358 = scmp.ne.s32.totalorder %s350, %s353
    %p359 = scmp.eq.s32.totalorder %s21, 0
    %p360 = por %p358, %p359
    %p361 = scmp.ne.s32.totalorder %s350, %s353
    %p362 = scmp.eq.s32.totalorder %s26, 3
    %p363 = por %p361, %p362
    %p364 = scmp.ne.s32.totalorder %s353, %s354
    %p365 = scmp.eq.s32.totalorder %s26, 0
    %p366 = por %p364, %p365
    %p367 = scmp.ne.s32.totalorder %s353, %s354
    %p368 = scmp.eq.s32.totalorder %s27, 3
    %p369 = por %p367, %p368
    %p371 = scmp.ne.s32.totalorder %s354, %s370
    %p372 = scmp.eq.s32.totalorder %s27, 0
    %p373 = por %p371, %p372
    %s374 = ssub.s32 %s29, %s36
    %p375 = scmp.eq.s32.totalorder %s374, 0
    %s377 = sadd.s32 %s376, 1
    %s378 = scalar_select %p375, %s376, %s377
    %p381 = pneg %p375
    %p382 = scmp.eq.s32.totalorder %s21, 3
    %p383 = por %p381, %p382
    %p384 = scmp.ne.s32.totalorder %s376, %s379
    %p385 = scmp.eq.s32.totalorder %s21, 0
    %p386 = por %p384, %p385
    %p387 = scmp.ne.s32.totalorder %s376, %s379
    %p388 = scmp.eq.s32.totalorder %s26, 3
    %p389 = por %p387, %p388
    %p390 = scmp.ne.s32.totalorder %s379, %s380
    %p391 = scmp.eq.s32.totalorder %s26, 0
    %p392 = por %p390, %p391
    %p393 = scmp.ne.s32.totalorder %s379, %s380
    %p394 = scmp.eq.s32.totalorder %s27, 3
    %p395 = por %p393, %p394
    %p397 = scmp.ne.s32.totalorder %s380, %s396
    %p398 = scmp.eq.s32.totalorder %s27, 0
    %p399 = por %p397, %p398
    %s401 = sadd.s32 %s400, 1
    %p404 = scmp.eq.s32.totalorder %s21, 3
    %p405 = scmp.ne.s32.totalorder %s400, %s402
    %p406 = scmp.eq.s32.totalorder %s21, 0
    %p407 = por %p405, %p406
    %p408 = scmp.ne.s32.totalorder %s400, %s402
    %p409 = scmp.eq.s32.totalorder %s26, 3
    %p410 = por %p408, %p409
    %p411 = scmp.ne.s32.totalorder %s402, %s403
    %p412 = scmp.eq.s32.totalorder %s26, 0
    %p413 = por %p411, %p412
    %p414 = scmp.ne.s32.totalorder %s402, %s403
    %p415 = scmp.eq.s32.totalorder %s27, 3
    %p416 = por %p414, %p415
    %p418 = scmp.ne.s32.totalorder %s403, %s417
    %p419 = scmp.eq.s32.totalorder %s27, 0
    %p420 = por %p418, %p419
    %s421 = ssub.s32 %s28, %s40
    %p422 = scmp.eq.s32.totalorder %s421, 0
    %s424 = sadd.s32 %s423, 1
    %s425 = scalar_select %p422, %s423, %s424
    %p428 = pneg %p422
    %p429 = scmp.eq.s32.totalorder %s21, 3
    %p430 = por %p428, %p429
    %p431 = scmp.ne.s32.totalorder %s423, %s426
    %p432 = scmp.eq.s32.totalorder %s21, 0
    %p433 = por %p431, %p432
    %p434 = scmp.ne.s32.totalorder %s423, %s426
    %p435 = scmp.eq.s32.totalorder %s26, 3
    %p436 = por %p434, %p435
    %p437 = scmp.ne.s32.totalorder %s426, %s427
    %p438 = scmp.eq.s32.totalorder %s26, 0
    %p439 = por %p437, %p438
    %p440 = scmp.ne.s32.totalorder %s426, %s427
    %p441 = scmp.eq.s32.totalorder %s27, 3
    %p442 = por %p440, %p441
    %p444 = scmp.ne.s32.totalorder %s427, %s443
    %p445 = scmp.eq.s32.totalorder %s27, 0
    %p446 = por %p444, %p445
    %p447 = scmp.le.s32.totalorder 1, %s21
    %p448 = scmp.lt.s32.totalorder %s21, 5
    %p449 = pnand %p447, %p448
    %p450 = pneg %p449
    // Predicated region
    $region9: #{tpu_custom_call.1} parent=5 // pred_check
      _
    $region10: #{tpu_custom_call.1} parent=5 // pred_check_branch
      %452 = sbr.rel (%p449) target = $region12
    $region11: #{tpu_custom_call.1} parent=5 // pred_region
      %s453 = ssub.s32 %s21, 1
      // Predicated region
      $region13: #{tpu_custom_call.1} parent=11 // pred_check
        %p454 = pneg %p80
      $region14: #{tpu_custom_call.1} parent=11 // pred_check_branch
        %456 = sbr.rel (%p454) target = $region16
      $region15: #{tpu_custom_call.1} parent=11 // pred_region
        _
      $region16: #{tpu_custom_call.1} parent=11 // pred_fallthru
        _
      // Predicated region
      $region17: #{tpu_custom_call.1} parent=11 // pred_check
        %p457 = pneg %p413
      $region18: #{tpu_custom_call.1} parent=11 // pred_check_branch
        %459 = sbr.rel (%p457) target = $region20
      $region19: #{tpu_custom_call.1} parent=11 // pred_region
        _
      $region20: #{tpu_custom_call.1} parent=11 // pred_fallthru
        _
    $region12: #{tpu_custom_call.1} parent=5 // pred_fallthru
      _
    %p460 = scmp.lt.s32.totalorder %s21, 4
    // Predicated region
    $region21: #{tpu_custom_call.1} parent=5 // pred_check
      %p461 = pneg %p460
    $region22: #{tpu_custom_call.1} parent=5 // pred_check_branch
      %463 = sbr.rel (%p461) target = $region24
    $region23: #{tpu_custom_call.1} parent=5 // pred_region
      // Predicated region
      $region25: #{tpu_custom_call.1} parent=23 // pred_check
        %p464 = pneg %p53
      $region26: #{tpu_custom_call.1} parent=23 // pred_check_branch
        %466 = sbr.rel (%p464) target = $region28
      $region27: #{tpu_custom_call.1} parent=23 // pred_region
        %s467 = smul.u32 4, %s28
        %p468 = scmp.lt.s32.totalorder %s467, 7
        %s469 = scalar_select %p468, %s467, 7
        %s470 = smul.addr %s469, 8
        %s471 = scalar_lea.vmem %s0, %s470
        %s472 = smul.u32 4, %s28
      $region28: #{tpu_custom_call.1} parent=23 // pred_fallthru
        _
      // Predicated region
      $region29: #{tpu_custom_call.1} parent=23 // pred_check
        %p473 = pneg %p100
      $region30: #{tpu_custom_call.1} parent=23 // pred_check_branch
        %475 = sbr.rel (%p473) target = $region32
      $region31: #{tpu_custom_call.1} parent=23 // pred_region
        %p476 = scmp.lt.s32.totalorder %s29, 1
        %s477 = scalar_select %p476, %s29, 1
        %s478 = smul.addr %s477, 4
        %s479 = smul.addr %s478, 8
        %s480 = scalar_lea.vmem %s2, %s479
      $region32: #{tpu_custom_call.1} parent=23 // pred_fallthru
        _
      // Predicated region
      $region33: #{tpu_custom_call.1} parent=23 // pred_check
        %p481 = pneg %p126
      $region34: #{tpu_custom_call.1} parent=23 // pred_check_branch
        %483 = sbr.rel (%p481) target = $region36
      $region35: #{tpu_custom_call.1} parent=23 // pred_region
        %p484 = scmp.lt.s32.totalorder %s29, 1
        %s485 = scalar_select %p484, %s29, 1
        %s486 = scalar_lea.vmem %s3, %s485
      $region36: #{tpu_custom_call.1} parent=23 // pred_fallthru
        _
      // Predicated region
      $region37: #{tpu_custom_call.1} parent=23 // pred_check
        %p487 = pneg %p152
      $region38: #{tpu_custom_call.1} parent=23 // pred_check_branch
        %489 = sbr.rel (%p487) target = $region40
      $region39: #{tpu_custom_call.1} parent=23 // pred_region
        %p490 = scmp.lt.s32.totalorder %s29, 1
        %s491 = scalar_select %p490, %s29, 1
        %s492 = smul.addr %s491, 4
        %s493 = smul.addr %s492, 8
        %s494 = scalar_lea.vmem %s4, %s493
      $region40: #{tpu_custom_call.1} parent=23 // pred_fallthru
        _
      // Predicated region
      $region41: #{tpu_custom_call.1} parent=23 // pred_check
        %p495 = pneg %p178
      $region42: #{tpu_custom_call.1} parent=23 // pred_check_branch
        %497 = sbr.rel (%p495) target = $region44
      $region43: #{tpu_custom_call.1} parent=23 // pred_region
        %p498 = scmp.lt.s32.totalorder %s29, 1
        %s499 = scalar_select %p498, %s29, 1
        %s500 = scalar_lea.vmem %s5, %s499
      $region44: #{tpu_custom_call.1} parent=23 // pred_fallthru
        _
      // Predicated region
      $region45: #{tpu_custom_call.1} parent=23 // pred_check
        %p501 = pneg %p204
      $region46: #{tpu_custom_call.1} parent=23 // pred_check_branch
        %503 = sbr.rel (%p501) target = $region48
      $region47: #{tpu_custom_call.1} parent=23 // pred_region
        %p504 = scmp.lt.s32.totalorder %s29, 1
        %s505 = scalar_select %p504, %s29, 1
        %s506 = smul.addr %s505, 4
        %s507 = smul.addr %s506, 8
        %s508 = scalar_lea.vmem %s6, %s507
      $region48: #{tpu_custom_call.1} parent=23 // pred_fallthru
        _
      // Predicated region
      $region49: #{tpu_custom_call.1} parent=23 // pred_check
        %p509 = pneg %p230
      $region50: #{tpu_custom_call.1} parent=23 // pred_check_branch
        %511 = sbr.rel (%p509) target = $region52
      $region51: #{tpu_custom_call.1} parent=23 // pred_region
        %p512 = scmp.lt.s32.totalorder %s29, 1
        %s513 = scalar_select %p512, %s29, 1
        %s514 = scalar_lea.vmem %s7, %s513
      $region52: #{tpu_custom_call.1} parent=23 // pred_fallthru
        _
      // Predicated region
      $region53: #{tpu_custom_call.1} parent=23 // pred_check
        %p515 = pneg %p256
      $region54: #{tpu_custom_call.1} parent=23 // pred_check_branch
        %517 = sbr.rel (%p515) target = $region56
      $region55: #{tpu_custom_call.1} parent=23 // pred_region
        %p518 = scmp.lt.s32.totalorder %s29, 1
        %s519 = scalar_select %p518, %s29, 1
        %s520 = smul.addr %s519, 8
        %s521 = smul.addr %s520, 8
        %s522 = scalar_lea.vmem %s8, %s521
      $region56: #{tpu_custom_call.1} parent=23 // pred_fallthru
        _
      // Predicated region
      $region57: #{tpu_custom_call.1} parent=23 // pred_check
        %p523 = pneg %p282
      $region58: #{tpu_custom_call.1} parent=23 // pred_check_branch
        %525 = sbr.rel (%p523) target = $region60
      $region59: #{tpu_custom_call.1} parent=23 // pred_region
        %p526 = scmp.lt.s32.totalorder %s29, 1
        %s527 = scalar_select %p526, %s29, 1
        %s528 = scalar_lea.vmem %s9, %s527
      $region60: #{tpu_custom_call.1} parent=23 // pred_fallthru
        _
      // Predicated region
      $region61: #{tpu_custom_call.1} parent=23 // pred_check
        %p529 = pneg %p308
      $region62: #{tpu_custom_call.1} parent=23 // pred_check_branch
        %531 = sbr.rel (%p529) target = $region64
      $region63: #{tpu_custom_call.1} parent=23 // pred_region
        %p532 = scmp.lt.s32.totalorder %s29, 1
        %s533 = scalar_select %p532, %s29, 1
        %s534 = scalar_lea.vmem %s10, %s533
      $region64: #{tpu_custom_call.1} parent=23 // pred_fallthru
        _
      // Predicated region
      $region65: #{tpu_custom_call.1} parent=23 // pred_check
        %p535 = pneg %p334
      $region66: #{tpu_custom_call.1} parent=23 // pred_check_branch
        %537 = sbr.rel (%p535) target = $region68
      $region67: #{tpu_custom_call.1} parent=23 // pred_region
        %p538 = scmp.lt.s32.totalorder %s29, 1
        %s539 = scalar_select %p538, %s29, 1
        %s540 = scalar_lea.vmem %s11, %s539
      $region68: #{tpu_custom_call.1} parent=23 // pred_fallthru
        _
      // Predicated region
      $region69: #{tpu_custom_call.1} parent=23 // pred_check
        %p541 = pneg %p360
      $region70: #{tpu_custom_call.1} parent=23 // pred_check_branch
        %543 = sbr.rel (%p541) target = $region72
      $region71: #{tpu_custom_call.1} parent=23 // pred_region
        %p544 = scmp.lt.s32.totalorder %s29, 1
        %s545 = scalar_select %p544, %s29, 1
        %s546 = scalar_lea.vmem %s12, %s545
      $region72: #{tpu_custom_call.1} parent=23 // pred_fallthru
        _
      // Predicated region
      $region73: #{tpu_custom_call.1} parent=23 // pred_check
        %p547 = pneg %p386
      $region74: #{tpu_custom_call.1} parent=23 // pred_check_branch
        %549 = sbr.rel (%p547) target = $region76
      $region75: #{tpu_custom_call.1} parent=23 // pred_region
        %p550 = scmp.lt.s32.totalorder %s29, 1
        %s551 = scalar_select %p550, %s29, 1
        %s552 = scalar_lea.vmem %s13, %s551
      $region76: #{tpu_custom_call.1} parent=23 // pred_fallthru
        _
    $region24: #{tpu_custom_call.1} parent=5 // pred_fallthru
      _
    %p553 = scmp.le.s32.totalorder 1, %s21
    %p554 = scmp.lt.s32.totalorder %s21, 5
    %p555 = pnand %p553, %p554
    %p556 = pneg %p555
    // Predicated region
    $region77: #{tpu_custom_call.1} parent=5 // pred_check
      _
    $region78: #{tpu_custom_call.1} parent=5 // pred_check_branch
      %558 = sbr.rel (%p555) target = $region80
    $region79: #{tpu_custom_call.1} parent=5 // pred_region
      %s559 = ssub.s32 %s21, 1
      %s560 = smul.u32 4, %s30
      %p561 = scmp.lt.s32.totalorder %s560, 7
      %s562 = scalar_select %p561, %s560, 7
      %s563 = smul.addr %s562, 8
      %s564 = scalar_lea.vmem %s0, %s563
      %p565 = pneg %p59
      %p566 = pneg %p56
      %p567 = pneg %p80
      %p568 = pneg %p77
      %p569 = scmp.lt.s32.totalorder %s31, 1
      %s570 = scalar_select %p569, %s31, 1
      %s571 = smul.addr %s570, 4
      %s572 = smul.addr %s571, 8
      %s573 = scalar_lea.vmem %s2, %s572
      %p574 = pneg %p106
      %p575 = pneg %p103
      %p576 = scmp.lt.s32.totalorder %s31, 1
      %s577 = scalar_select %p576, %s31, 1
      %s578 = scalar_lea.vmem %s3, %s577
      %p579 = pneg %p132
      %p580 = pneg %p129
      %p581 = scmp.lt.s32.totalorder %s31, 1
      %s582 = scalar_select %p581, %s31, 1
      %s583 = smul.addr %s582, 4
      %s584 = smul.addr %s583, 8
      %s585 = scalar_lea.vmem %s4, %s584
      %p586 = pneg %p158
      %p587 = pneg %p155
      %p588 = scmp.lt.s32.totalorder %s31, 1
      %s589 = scalar_select %p588, %s31, 1
      %s590 = scalar_lea.vmem %s5, %s589
      %p591 = pneg %p184
      %p592 = pneg %p181
      %p593 = scmp.lt.s32.totalorder %s31, 1
      %s594 = scalar_select %p593, %s31, 1
      %s595 = smul.addr %s594, 4
      %s596 = smul.addr %s595, 8
      %s597 = scalar_lea.vmem %s6, %s596
      %p598 = pneg %p210
      %p599 = pneg %p207
      %p600 = scmp.lt.s32.totalorder %s31, 1
      %s601 = scalar_select %p600, %s31, 1
      %s602 = scalar_lea.vmem %s7, %s601
      %p603 = pneg %p236
      %p604 = pneg %p233
      %p605 = scmp.lt.s32.totalorder %s31, 1
      %s606 = scalar_select %p605, %s31, 1
      %s607 = smul.addr %s606, 8
      %s608 = smul.addr %s607, 8
      %s609 = scalar_lea.vmem %s8, %s608
      %p610 = pneg %p262
      %p611 = pneg %p259
      %p612 = scmp.lt.s32.totalorder %s31, 1
      %s613 = scalar_select %p612, %s31, 1
      %s614 = scalar_lea.vmem %s9, %s613
      %p615 = pneg %p288
      %p616 = pneg %p285
      %p617 = scmp.lt.s32.totalorder %s31, 1
      %s618 = scalar_select %p617, %s31, 1
      %s619 = scalar_lea.vmem %s10, %s618
      %p620 = pneg %p314
      %p621 = pneg %p311
      %p622 = scmp.lt.s32.totalorder %s31, 1
      %s623 = scalar_select %p622, %s31, 1
      %s624 = scalar_lea.vmem %s11, %s623
      %p625 = pneg %p340
      %p626 = pneg %p337
      %p627 = scmp.lt.s32.totalorder %s31, 1
      %s628 = scalar_select %p627, %s31, 1
      %s629 = scalar_lea.vmem %s12, %s628
      %p630 = pneg %p366
      %p631 = pneg %p363
      %p632 = scmp.lt.s32.totalorder %s31, 1
      %s633 = scalar_select %p632, %s31, 1
      %s634 = scalar_lea.vmem %s13, %s633
      %p635 = pneg %p392
      %p636 = pneg %p389
      %p637 = pneg %p413
      %p638 = pneg %p410
      %p639 = pneg %p439
      %p640 = pneg %p436
      %p641 = scmp.lt.s32.totalorder %s30, 1
      %s642 = scalar_select %p641, %s30, 1
      %s643 = smul.addr %s642, 8
      %s644 = scalar_lea.vmem %s15, %s643
      %s645 = smul.u32 4, %s30
      %p646 = scmp.lt.s32.totalorder %s645, 7
      %s647 = scalar_select %p646, %s645, 7
      %s648 = smul.addr %s647, 8
      %s649 = scalar_lea.vmem %s0, %s648
      %s650 = smul.u32 4, %s30
      %p651 = scmp.lt.s32.totalorder %s31, 1
      %s652 = scalar_select %p651, %s31, 1
      %s653 = smul.addr %s652, 4
      %s654 = smul.addr %s653, 8
      %s655 = scalar_lea.vmem %s2, %s654
      %p656 = scmp.lt.s32.totalorder %s31, 1
      %s657 = scalar_select %p656, %s31, 1
      %s658 = scalar_lea.vmem %s3, %s657
      %p659 = scmp.lt.s32.totalorder %s31, 1
      %s660 = scalar_select %p659, %s31, 1
      %s661 = smul.addr %s660, 4
      %s662 = smul.addr %s661, 8
      %s663 = scalar_lea.vmem %s4, %s662
      %p664 = scmp.lt.s32.totalorder %s31, 1
      %s665 = scalar_select %p664, %s31, 1
      %s666 = scalar_lea.vmem %s5, %s665
      %p667 = scmp.lt.s32.totalorder %s31, 1
      %s668 = scalar_select %p667, %s31, 1
      %s669 = smul.addr %s668, 4
      %s670 = smul.addr %s669, 8
      %s671 = scalar_lea.vmem %s6, %s670
      %p672 = scmp.lt.s32.totalorder %s31, 1
      %s673 = scalar_select %p672, %s31, 1
      %s674 = scalar_lea.vmem %s7, %s673
      %p675 = scmp.lt.s32.totalorder %s31, 1
      %s676 = scalar_select %p675, %s31, 1
      %s677 = smul.addr %s676, 8
      %s678 = smul.addr %s677, 8
      %s679 = scalar_lea.vmem %s8, %s678
      %p680 = scmp.lt.s32.totalorder %s31, 1
      %s681 = scalar_select %p680, %s31, 1
      %s682 = scalar_lea.vmem %s9, %s681
      %p683 = scmp.lt.s32.totalorder %s31, 1
      %s684 = scalar_select %p683, %s31, 1
      %s685 = scalar_lea.vmem %s10, %s684
      %p686 = scmp.lt.s32.totalorder %s31, 1
      %s687 = scalar_select %p686, %s31, 1
      %s688 = scalar_lea.vmem %s11, %s687
      %p689 = scmp.lt.s32.totalorder %s31, 1
      %s690 = scalar_select %p689, %s31, 1
      %s691 = scalar_lea.vmem %s12, %s690
      %p692 = scmp.lt.s32.totalorder %s31, 1
      %s693 = scalar_select %p692, %s31, 1
      %s694 = scalar_lea.vmem %s13, %s693
      %p695 = scmp.lt.s32.totalorder %s30, 1
      %s696 = scalar_select %p695, %s30, 1
      %s697 = smul.addr %s696, 8
      %s698 = scalar_lea.vmem %s15, %s697
      %p699 = scmp.eq.s32.totalorder %s31, 0
      // Predicated region
      $region81: #{tpu_custom_call.1} parent=79 // pred_check
        %p700 = pneg %p699
      $region82: #{tpu_custom_call.1} parent=79 // pred_check_branch
        %702 = sbr.rel (%p700) target = $region84
      $region83: #{tpu_custom_call.1} parent=79 // pred_region
        %v703 = vld [vmem:[%s649] sm:$0xff]
        %v704 = vld [vmem:[%s649 + $0x8] sm:$0xff]
        %v705 = vld [vmem:[%s649 + $0x10] sm:$0xff]
        %v706 = vld [vmem:[%s649 + $0x18] sm:$0xff]
        %v707 = vmul.f32 %v703, 2.828427
        %v708 = vmul.f32 %v704, 2.828427
        %v709 = vmul.f32 %v705, 2.828427
        %v710 = vmul.f32 %v706, 2.828427
        %v711 = vld [vmem:[%s1] sm:$0xff]
        %v712 = vld [vmem:[%s1 + $0x8] sm:$0xff]
        %v713 = vld [vmem:[%s1 + $0x10] sm:$0xff]
        %v714 = vld [vmem:[%s1 + $0x18] sm:$0xff]
        %v715 = vadd.f32 %v707, %v711
        %v716 = vadd.f32 %v708, %v712
        %v717 = vadd.f32 %v709, %v713
        %v718 = vadd.f32 %v710, %v714
        %vm719 = vcmask 261120
        %720 = vst.msk [vmem:[#allocation2] sm:$0xff] %vm719, %v715
        %721 = vst.msk [vmem:[#allocation2 + $0x8] sm:$0xff] %vm719, %v716
        %722 = vst.msk [vmem:[#allocation2 + $0x10] sm:$0xff] %vm719, %v717
        %723 = vst.msk [vmem:[#allocation2 + $0x18] sm:$0xff] %vm719, %v718
      $region84: #{tpu_custom_call.1} parent=79 // pred_fallthru
        _
      %v724 = vld [vmem:[#allocation2] sm:$0xff]
      %v725 = vld [vmem:[#allocation2 + $0x8] sm:$0xff]
      %v726 = vld [vmem:[#allocation2 + $0x10] sm:$0xff]
      %v727 = vld [vmem:[#allocation2 + $0x18] sm:$0xff]
      %v728 = vld [vmem:[%s655] sm:$0xff]
      %v729 = vld [vmem:[%s655 + $0x8] sm:$0xff]
      %v730 = vld [vmem:[%s655 + $0x10] sm:$0xff]
      %v731 = vld [vmem:[%s655 + $0x18] sm:$0xff]
      %v732 = vld [vmem:[%s658] sm:$0x1]
      %v734 = vlaneseq
      %v735 = vshrl.u32 %v734, 7
      %v736 = vsub.s32 0, %v735
      %v737 = vrot.slane %v732, %v736
      %vm739 = vcmask 261120
      %v741 = vsel %vm739, %v724, 0
      %v744 = vsel %vm739, %v725, 0
      %v747 = vsel %vm739, %v726, 0
      %v750 = vsel %vm739, %v727, 0
      %752 = vmatprep.subr.mxu0 0.0
      %753 = vmatpush1.msra.mxu0 0.0
      %754 = vmatprep.subr.mxu0 0.0
      %755 = vmatpush1.msra.mxu0 0.0
      %756 = vmatprep.subr.mxu0 0.0
      %757 = vmatpush1.msra.mxu0 0.0
      %758 = vmatprep.subr.mxu0 0.0
      %759 = vmatpush1.msra.mxu0 0.0
      %760 = vmatprep.subr.mxu0 0.0
      %761 = vmatpush1.msra.mxu0 0.0
      %762 = vmatprep.subr.mxu0 0.0
      %763 = vmatpush1.msra.mxu0 0.0
      %764 = vmatprep.subr.mxu0 0.0
      %765 = vmatpush1.msra.mxu0 0.0
      %766 = vmatprep.subr.mxu0 0.0
      %767 = vmatpush1.msra.mxu0 0.0
      %768 = vmatprep.subr.mxu0 0.0
      %769 = vmatpush1.msra.mxu0 0.0
      %770 = vmatprep.subr.mxu0 0.0
      %771 = vmatpush1.msra.mxu0 0.0
      %772 = vmatprep.subr.mxu0 0.0
      %773 = vmatpush1.msra.mxu0 0.0
      %774 = vmatprep.subr.mxu0 0.0
      %775 = vmatpush1.msra.mxu0 0.0
      %776 = vmatprep.subr.mxu0 0.0
      %777 = vmatpush1.msra.mxu0 %v731
      %778 = vmatprep.subr.mxu0 0.0
      %779 = vmatpush1.msra.mxu0 %v730
      %780 = vmatprep.subr.mxu0 0.0
      %781 = vmatpush1.msra.mxu0 %v729
      %782 = vmatprep.subr.mxu0 0.0
      %783 = vmatpush1.msra.mxu0 %v728
      %784 = vmatprep.subr.mxu0 0.0
      %785 = vmatpush2.msra.mxu0 0.0
      %786 = vmatprep.subr.mxu0 0.0
      %787 = vmatpush2.msra.mxu0 0.0
      %788 = vmatprep.subr.mxu0 0.0
      %789 = vmatpush2.msra.mxu0 0.0
      %790 = vmatprep.subr.mxu0 0.0
      %791 = vmatpush2.msra.mxu0 0.0
      %792 = vmatprep.subr.mxu0 0.0
      %793 = vmatpush2.msra.mxu0 0.0
      %794 = vmatprep.subr.mxu0 0.0
      %795 = vmatpush2.msra.mxu0 0.0
      %796 = vmatprep.subr.mxu0 0.0
      %797 = vmatpush2.msra.mxu0 0.0
      %798 = vmatprep.subr.mxu0 0.0
      %799 = vmatpush2.msra.mxu0 0.0
      %800 = vmatprep.subr.mxu0 0.0
      %801 = vmatpush2.msra.mxu0 0.0
      %802 = vmatprep.subr.mxu0 0.0
      %803 = vmatpush2.msra.mxu0 0.0
      %804 = vmatprep.subr.mxu0 0.0
      %805 = vmatpush2.msra.mxu0 0.0
      %806 = vmatprep.subr.mxu0 0.0
      %807 = vmatpush2.msra.mxu0 0.0
      %808 = vmatprep.subr.mxu0 0.0
      %809 = vmatpush2.msra.mxu0 0.0
      %810 = vmatprep.subr.mxu0 0.0
      %811 = vmatpush2.msra.mxu0 0.0
      %812 = vmatprep.subr.mxu0 0.0
      %813 = vmatpush2.msra.mxu0 0.0
      %814 = vmatprep.subr.mxu0 0.0
      %815 = vmatpush2.msra.mxu0 0.0
      %816 = vmatprep.mubr.f32.mxu0 0.0
      %817 = vmatmul.mubr.f32.gmra.mxu0 %v741
      %v818 = vpop.f32.mrf.mxu0
      %v819 = vadd.f32 %v737, %v818
      %v820 = vpop.f32.mrf.mxu0
      %821 = vmatprep.mubr.f32.mxu0 0.0
      %822 = vmatmul.mubr.f32.gmra.mxu0 %v744
      %v823 = vpop.f32.mrf.mxu0
      %v824 = vadd.f32 %v737, %v823
      %v825 = vpop.f32.mrf.mxu0
      %826 = vmatprep.mubr.f32.mxu0 0.0
      %827 = vmatmul.mubr.f32.gmra.mxu0 %v747
      %v828 = vpop.f32.mrf.mxu0
      %v829 = vadd.f32 %v737, %v828
      %v830 = vpop.f32.mrf.mxu0
      %831 = vmatprep.mubr.f32.mxu0 0.0
      %832 = vmatmul.mubr.f32.gmra.mxu0 %v750
      %v833 = vpop.f32.mrf.mxu0
      %v834 = vadd.f32 %v737, %v833
      %v835 = vpop.f32.mrf.mxu0
      %836 = vdwg.mxu0
      %v837 = vlaneseq
      %v838 = vand.u32 %v837, 127
      %vm839 = vcmp.ge.s32.totalorder %v838, 2
      %v840 = vsel %vm839, -1e+30, 0.0
      %842 = vrot.lane.b32.xlu0 %v819, 96
      %v843 = vpop.permute.xlu0 %842
      %vm844 = vcmask 64512
      %v845 = vsel %vm844, %v819, 0
      %v847 = vsel %vm844, %v843, 0
      %849 = vmatprep.subr.mxu0 0.0
      %850 = vmatpush1.xpose.msra.mxu0 0.0
      %851 = vmatprep.subr.mxu0 0.0
      %852 = vmatpush1.xpose.msra.mxu0 0.0
      %853 = vmatprep.subr.mxu0 0.0
      %854 = vmatpush1.xpose.msra.mxu0 0.0
      %855 = vmatprep.subr.mxu0 0.0
      %856 = vmatpush1.xpose.msra.mxu0 0.0
      %857 = vmatprep.subr.mxu0 0.0
      %858 = vmatpush1.xpose.msra.mxu0 0.0
      %859 = vmatprep.subr.mxu0 0.0
      %860 = vmatpush1.xpose.msra.mxu0 0.0
      %861 = vmatprep.subr.mxu0 0.0
      %862 = vmatpush1.xpose.msra.mxu0 0.0
      %863 = vmatprep.subr.mxu0 0.0
      %864 = vmatpush1.xpose.msra.mxu0 0.0
      %865 = vmatprep.subr.mxu0 0.0
      %866 = vmatpush1.xpose.msra.mxu0 0.0
      %867 = vmatprep.subr.mxu0 0.0
      %868 = vmatpush1.xpose.msra.mxu0 0.0
      %869 = vmatprep.subr.mxu0 0.0
      %870 = vmatpush1.xpose.msra.mxu0 0.0
      %871 = vmatprep.subr.mxu0 0.0
      %872 = vmatpush1.xpose.msra.mxu0 0.0
      %873 = vmatprep.subr.mxu0 0.0
      %874 = vmatpush1.xpose.msra.mxu0 0.0
      %875 = vmatprep.subr.mxu0 0.0
      %876 = vmatpush1.xpose.msra.mxu0 0.0
      %877 = vmatprep.subr.mxu0 0.0
      %878 = vmatpush1.xpose.msra.mxu0 0.0
      %879 = vmatprep.subr.mxu0 0.0
      %880 = vmatpush1.xpose.msra.mxu0 %v847
      %881 = vmatprep.subr.mxu0 0.0
      %882 = vmatpush2.xpose.msra.mxu0 0.0
      %883 = vmatprep.subr.mxu0 0.0
      %884 = vmatpush2.xpose.msra.mxu0 0.0
      %885 = vmatprep.subr.mxu0 0.0
      %886 = vmatpush2.xpose.msra.mxu0 0.0
      %887 = vmatprep.subr.mxu0 0.0
      %888 = vmatpush2.xpose.msra.mxu0 0.0
      %889 = vmatprep.subr.mxu0 0.0
      %890 = vmatpush2.xpose.msra.mxu0 0.0
      %891 = vmatprep.subr.mxu0 0.0
      %892 = vmatpush2.xpose.msra.mxu0 0.0
      %893 = vmatprep.subr.mxu0 0.0
      %894 = vmatpush2.xpose.msra.mxu0 0.0
      %895 = vmatprep.subr.mxu0 0.0
      %896 = vmatpush2.xpose.msra.mxu0 0.0
      %897 = vmatprep.subr.mxu0 0.0
      %898 = vmatpush2.xpose.msra.mxu0 0.0
      %899 = vmatprep.subr.mxu0 0.0
      %900 = vmatpush2.xpose.msra.mxu0 0.0
      %901 = vmatprep.subr.mxu0 0.0
      %902 = vmatpush2.xpose.msra.mxu0 0.0
      %903 = vmatprep.subr.mxu0 0.0
      %904 = vmatpush2.xpose.msra.mxu0 0.0
      %905 = vmatprep.subr.mxu0 0.0
      %906 = vmatpush2.xpose.msra.mxu0 0.0
      %907 = vmatprep.subr.mxu0 0.0
      %908 = vmatpush2.xpose.msra.mxu0 0.0
      %909 = vmatprep.subr.mxu0 0.0
      %910 = vmatpush2.xpose.msra.mxu0 0.0
      %911 = vmatprep.subr.mxu0 0.0
      %912 = vmatpush2.xpose.msra.mxu0 0.0
      %913 = vmatprep.mubr.f32.mxu0 0.0
      %914 = vmatmul.mubr.f32.gmra.mxu0 %v845
      %v915 = vpop.f32.mrf.mxu0
      %v916 = vadd.f32 %v840, %v915
      %v917 = vpop.f32.mrf.mxu0
      %918 = vdwg.mxu0
      %920 = vrot.lane.b32.xlu0 %v824, 96
      %v921 = vpop.permute.xlu0 %920
      %v922 = vsel %vm844, %v824, 0
      %v924 = vsel %vm844, %v921, 0
      %926 = vmatprep.subr.mxu0 0.0
      %927 = vmatpush1.xpose.msra.mxu0 0.0
      %928 = vmatprep.subr.mxu0 0.0
      %929 = vmatpush1.xpose.msra.mxu0 0.0
      %930 = vmatprep.subr.mxu0 0.0
      %931 = vmatpush1.xpose.msra.mxu0 0.0
      %932 = vmatprep.subr.mxu0 0.0
      %933 = vmatpush1.xpose.msra.mxu0 0.0
      %934 = vmatprep.subr.mxu0 0.0
      %935 = vmatpush1.xpose.msra.mxu0 0.0
      %936 = vmatprep.subr.mxu0 0.0
      %937 = vmatpush1.xpose.msra.mxu0 0.0
      %938 = vmatprep.subr.mxu0 0.0
      %939 = vmatpush1.xpose.msra.mxu0 0.0
      %940 = vmatprep.subr.mxu0 0.0
      %941 = vmatpush1.xpose.msra.mxu0 0.0
      %942 = vmatprep.subr.mxu0 0.0
      %943 = vmatpush1.xpose.msra.mxu0 0.0
      %944 = vmatprep.subr.mxu0 0.0
      %945 = vmatpush1.xpose.msra.mxu0 0.0
      %946 = vmatprep.subr.mxu0 0.0
      %947 = vmatpush1.xpose.msra.mxu0 0.0
      %948 = vmatprep.subr.mxu0 0.0
      %949 = vmatpush1.xpose.msra.mxu0 0.0
      %950 = vmatprep.subr.mxu0 0.0
      %951 = vmatpush1.xpose.msra.mxu0 0.0
      %952 = vmatprep.subr.mxu0 0.0
      %953 = vmatpush1.xpose.msra.mxu0 0.0
      %954 = vmatprep.subr.mxu0 0.0
      %955 = vmatpush1.xpose.msra.mxu0 0.0
      %956 = vmatprep.subr.mxu0 0.0
      %957 = vmatpush1.xpose.msra.mxu0 %v924
      %958 = vmatprep.subr.mxu0 0.0
      %959 = vmatpush2.xpose.msra.mxu0 0.0
      %960 = vmatprep.subr.mxu0 0.0
      %961 = vmatpush2.xpose.msra.mxu0 0.0
      %962 = vmatprep.subr.mxu0 0.0
      %963 = vmatpush2.xpose.msra.mxu0 0.0
      %964 = vmatprep.subr.mxu0 0.0
      %965 = vmatpush2.xpose.msra.mxu0 0.0
      %966 = vmatprep.subr.mxu0 0.0
      %967 = vmatpush2.xpose.msra.mxu0 0.0
      %968 = vmatprep.subr.mxu0 0.0
      %969 = vmatpush2.xpose.msra.mxu0 0.0
      %970 = vmatprep.subr.mxu0 0.0
      %971 = vmatpush2.xpose.msra.mxu0 0.0
      %972 = vmatprep.subr.mxu0 0.0
      %973 = vmatpush2.xpose.msra.mxu0 0.0
      %974 = vmatprep.subr.mxu0 0.0
      %975 = vmatpush2.xpose.msra.mxu0 0.0
      %976 = vmatprep.subr.mxu0 0.0
      %977 = vmatpush2.xpose.msra.mxu0 0.0
      %978 = vmatprep.subr.mxu0 0.0
      %979 = vmatpush2.xpose.msra.mxu0 0.0
      %980 = vmatprep.subr.mxu0 0.0
      %981 = vmatpush2.xpose.msra.mxu0 0.0
      %982 = vmatprep.subr.mxu0 0.0
      %983 = vmatpush2.xpose.msra.mxu0 0.0
      %984 = vmatprep.subr.mxu0 0.0
      %985 = vmatpush2.xpose.msra.mxu0 0.0
      %986 = vmatprep.subr.mxu0 0.0
      %987 = vmatpush2.xpose.msra.mxu0 0.0
      %988 = vmatprep.subr.mxu0 0.0
      %989 = vmatpush2.xpose.msra.mxu0 0.0
      %990 = vmatprep.mubr.f32.mxu0 0.0
      %991 = vmatmul.mubr.f32.gmra.mxu0 %v922
      %v992 = vpop.f32.mrf.mxu0
      %v993 = vadd.f32 %v840, %v992
      %v994 = vpop.f32.mrf.mxu0
      %995 = vdwg.mxu0
      %997 = vrot.lane.b32.xlu0 %v829, 96
      %v998 = vpop.permute.xlu0 %997
      %v999 = vsel %vm844, %v829, 0
      %v1001 = vsel %vm844, %v998, 0
      %1003 = vmatprep.subr.mxu0 0.0
      %1004 = vmatpush1.xpose.msra.mxu0 0.0
      %1005 = vmatprep.subr.mxu0 0.0
      %1006 = vmatpush1.xpose.msra.mxu0 0.0
      %1007 = vmatprep.subr.mxu0 0.0
      %1008 = vmatpush1.xpose.msra.mxu0 0.0
      %1009 = vmatprep.subr.mxu0 0.0
      %1010 = vmatpush1.xpose.msra.mxu0 0.0
      %1011 = vmatprep.subr.mxu0 0.0
      %1012 = vmatpush1.xpose.msra.mxu0 0.0
      %1013 = vmatprep.subr.mxu0 0.0
      %1014 = vmatpush1.xpose.msra.mxu0 0.0
      %1015 = vmatprep.subr.mxu0 0.0
      %1016 = vmatpush1.xpose.msra.mxu0 0.0
      %1017 = vmatprep.subr.mxu0 0.0
      %1018 = vmatpush1.xpose.msra.mxu0 0.0
      %1019 = vmatprep.subr.mxu0 0.0
      %1020 = vmatpush1.xpose.msra.mxu0 0.0
      %1021 = vmatprep.subr.mxu0 0.0
      %1022 = vmatpush1.xpose.msra.mxu0 0.0
      %1023 = vmatprep.subr.mxu0 0.0
      %1024 = vmatpush1.xpose.msra.mxu0 0.0
      %1025 = vmatprep.subr.mxu0 0.0
      %1026 = vmatpush1.xpose.msra.mxu0 0.0
      %1027 = vmatprep.subr.mxu0 0.0
      %1028 = vmatpush1.xpose.msra.mxu0 0.0
      %1029 = vmatprep.subr.mxu0 0.0
      %1030 = vmatpush1.xpose.msra.mxu0 0.0
      %1031 = vmatprep.subr.mxu0 0.0
      %1032 = vmatpush1.xpose.msra.mxu0 0.0
      %1033 = vmatprep.subr.mxu0 0.0
      %1034 = vmatpush1.xpose.msra.mxu0 %v1001
      %1035 = vmatprep.subr.mxu0 0.0
      %1036 = vmatpush2.xpose.msra.mxu0 0.0
      %1037 = vmatprep.subr.mxu0 0.0
      %1038 = vmatpush2.xpose.msra.mxu0 0.0
      %1039 = vmatprep.subr.mxu0 0.0
      %1040 = vmatpush2.xpose.msra.mxu0 0.0
      %1041 = vmatprep.subr.mxu0 0.0
      %1042 = vmatpush2.xpose.msra.mxu0 0.0
      %1043 = vmatprep.subr.mxu0 0.0
      %1044 = vmatpush2.xpose.msra.mxu0 0.0
      %1045 = vmatprep.subr.mxu0 0.0
      %1046 = vmatpush2.xpose.msra.mxu0 0.0
      %1047 = vmatprep.subr.mxu0 0.0
      %1048 = vmatpush2.xpose.msra.mxu0 0.0
      %1049 = vmatprep.subr.mxu0 0.0
      %1050 = vmatpush2.xpose.msra.mxu0 0.0
      %1051 = vmatprep.subr.mxu0 0.0
      %1052 = vmatpush2.xpose.msra.mxu0 0.0
      %1053 = vmatprep.subr.mxu0 0.0
      %1054 = vmatpush2.xpose.msra.mxu0 0.0
      %1055 = vmatprep.subr.mxu0 0.0
      %1056 = vmatpush2.xpose.msra.mxu0 0.0
      %1057 = vmatprep.subr.mxu0 0.0
      %1058 = vmatpush2.xpose.msra.mxu0 0.0
      %1059 = vmatprep.subr.mxu0 0.0
      %1060 = vmatpush2.xpose.msra.mxu0 0.0
      %1061 = vmatprep.subr.mxu0 0.0
      %1062 = vmatpush2.xpose.msra.mxu0 0.0
      %1063 = vmatprep.subr.mxu0 0.0
      %1064 = vmatpush2.xpose.msra.mxu0 0.0
      %1065 = vmatprep.subr.mxu0 0.0
      %1066 = vmatpush2.xpose.msra.mxu0 0.0
      %1067 = vmatprep.mubr.f32.mxu0 0.0
      %1068 = vmatmul.mubr.f32.gmra.mxu0 %v999
      %v1069 = vpop.f32.mrf.mxu0
      %v1070 = vadd.f32 %v840, %v1069
      %v1071 = vpop.f32.mrf.mxu0
      %1072 = vdwg.mxu0
      %1074 = vrot.lane.b32.xlu0 %v834, 96
      %v1075 = vpop.permute.xlu0 %1074
      %v1076 = vsel %vm844, %v834, 0
      %v1078 = vsel %vm844, %v1075, 0
      %1080 = vmatprep.subr.mxu0 0.0
      %1081 = vmatpush1.xpose.msra.mxu0 0.0
      %1082 = vmatprep.subr.mxu0 0.0
      %1083 = vmatpush1.xpose.msra.mxu0 0.0
      %1084 = vmatprep.subr.mxu0 0.0
      %1085 = vmatpush1.xpose.msra.mxu0 0.0
      %1086 = vmatprep.subr.mxu0 0.0
      %1087 = vmatpush1.xpose.msra.mxu0 0.0
      %1088 = vmatprep.subr.mxu0 0.0
      %1089 = vmatpush1.xpose.msra.mxu0 0.0
      %1090 = vmatprep.subr.mxu0 0.0
      %1091 = vmatpush1.xpose.msra.mxu0 0.0
      %1092 = vmatprep.subr.mxu0 0.0
      %1093 = vmatpush1.xpose.msra.mxu0 0.0
      %1094 = vmatprep.subr.mxu0 0.0
      %1095 = vmatpush1.xpose.msra.mxu0 0.0
      %1096 = vmatprep.subr.mxu0 0.0
      %1097 = vmatpush1.xpose.msra.mxu0 0.0
      %1098 = vmatprep.subr.mxu0 0.0
      %1099 = vmatpush1.xpose.msra.mxu0 0.0
      %1100 = vmatprep.subr.mxu0 0.0
      %1101 = vmatpush1.xpose.msra.mxu0 0.0
      %1102 = vmatprep.subr.mxu0 0.0
      %1103 = vmatpush1.xpose.msra.mxu0 0.0
      %1104 = vmatprep.subr.mxu0 0.0
      %1105 = vmatpush1.xpose.msra.mxu0 0.0
      %1106 = vmatprep.subr.mxu0 0.0
      %1107 = vmatpush1.xpose.msra.mxu0 0.0
      %1108 = vmatprep.subr.mxu0 0.0
      %1109 = vmatpush1.xpose.msra.mxu0 0.0
      %1110 = vmatprep.subr.mxu0 0.0
      %1111 = vmatpush1.xpose.msra.mxu0 %v1078
      %1112 = vmatprep.subr.mxu0 0.0
      %1113 = vmatpush2.xpose.msra.mxu0 0.0
      %1114 = vmatprep.subr.mxu0 0.0
      %1115 = vmatpush2.xpose.msra.mxu0 0.0
      %1116 = vmatprep.subr.mxu0 0.0
      %1117 = vmatpush2.xpose.msra.mxu0 0.0
      %1118 = vmatprep.subr.mxu0 0.0
      %1119 = vmatpush2.xpose.msra.mxu0 0.0
      %1120 = vmatprep.subr.mxu0 0.0
      %1121 = vmatpush2.xpose.msra.mxu0 0.0
      %1122 = vmatprep.subr.mxu0 0.0
      %1123 = vmatpush2.xpose.msra.mxu0 0.0
      %1124 = vmatprep.subr.mxu0 0.0
      %1125 = vmatpush2.xpose.msra.mxu0 0.0
      %1126 = vmatprep.subr.mxu0 0.0
      %1127 = vmatpush2.xpose.msra.mxu0 0.0
      %1128 = vmatprep.subr.mxu0 0.0
      %1129 = vmatpush2.xpose.msra.mxu0 0.0
      %1130 = vmatprep.subr.mxu0 0.0
      %1131 = vmatpush2.xpose.msra.mxu0 0.0
      %1132 = vmatprep.subr.mxu0 0.0
      %1133 = vmatpush2.xpose.msra.mxu0 0.0
      %1134 = vmatprep.subr.mxu0 0.0
      %1135 = vmatpush2.xpose.msra.mxu0 0.0
      %1136 = vmatprep.subr.mxu0 0.0
      %1137 = vmatpush2.xpose.msra.mxu0 0.0
      %1138 = vmatprep.subr.mxu0 0.0
      %1139 = vmatpush2.xpose.msra.mxu0 0.0
      %1140 = vmatprep.subr.mxu0 0.0
      %1141 = vmatpush2.xpose.msra.mxu0 0.0
      %1142 = vmatprep.subr.mxu0 0.0
      %1143 = vmatpush2.xpose.msra.mxu0 0.0
      %1144 = vmatprep.mubr.f32.mxu0 0.0
      %1145 = vmatmul.mubr.f32.gmra.mxu0 %v1076
      %v1146 = vpop.f32.mrf.mxu0
      %v1147 = vadd.f32 %v840, %v1146
      %v1148 = vpop.f32.mrf.mxu0
      %1149 = vdwg.mxu0
      %v1150 = vsel %vm844, %v916, -inf
      %1151 = vmax.xlane.f32.xlu0 %v1150
      %v1152 = vpop.xlane.xlu0 %1151
      %v1153 = vsel %vm844, %v993, -inf
      %1154 = vmax.xlane.f32.xlu0 %v1153
      %v1155 = vpop.xlane.xlu0 %1154
      %v1156 = vsel %vm844, %v1070, -inf
      %1157 = vmax.xlane.f32.xlu0 %v1156
      %v1158 = vpop.xlane.xlu0 %1157
      %v1159 = vsel %vm844, %v1147, -inf
      %1160 = vmax.xlane.f32.xlu0 %v1159
      %v1161 = vpop.xlane.xlu0 %1160
      %v1162 = vsub.f32 %v916, %v1152
      %v1163 = vsub.f32 %v993, %v1155
      %v1164 = vsub.f32 %v1070, %v1158
      %v1165 = vsub.f32 %v1147, %v1161
      %v1166 = vmul.f32 %v1162, 1.442695
      %v1167 = vpow.pop %v1166
      %v1168 = vmul.f32 %v1163, 1.442695
      %v1169 = vpow.pop %v1168
      %v1170 = vmul.f32 %v1164, 1.442695
      %v1171 = vpow.pop %v1170
      %v1172 = vmul.f32 %v1165, 1.442695
      %v1173 = vpow.pop %v1172
      %v1174 = vsel %vm844, %v1167, 0.0
      %1175 = vadd.xlane.f32.xlu0 %v1174
      %v1176 = vpop.xlane.xlu0 %1175
      %v1177 = vsel %vm844, %v1169, 0.0
      %1178 = vadd.xlane.f32.xlu0 %v1177
      %v1179 = vpop.xlane.xlu0 %1178
      %v1180 = vsel %vm844, %v1171, 0.0
      %1181 = vadd.xlane.f32.xlu0 %v1180
      %v1182 = vpop.xlane.xlu0 %1181
      %v1183 = vsel %vm844, %v1173, 0.0
      %1184 = vadd.xlane.f32.xlu0 %v1183
      %v1185 = vpop.xlane.xlu0 %1184
      %v1186 = vrcp.pop %v1176
      %v1187 = vrcp.pop %v1179
      %v1188 = vrcp.pop %v1182
      %v1189 = vrcp.pop %v1185
      %v1190 = vmul.f32 %v1167, %v1186
      %v1191 = vmul.f32 %v1169, %v1187
      %v1192 = vmul.f32 %v1171, %v1188
      %v1193 = vmul.f32 %v1173, %v1189
      %1194 = vrot.lane.b32.xlu0 %v819, 64
      %v1195 = vpop.permute.xlu0 %1194
      %v1198 = vsel %vm844, %v1190, 0
      %1200 = vmatprep.subr.mxu0 0.0
      %1201 = vmatpush1.msra.mxu0 0.0
      %1202 = vmatprep.subr.mxu0 0.0
      %1203 = vmatpush1.msra.mxu0 0.0
      %1204 = vmatprep.subr.mxu0 0.0
      %1205 = vmatpush1.msra.mxu0 0.0
      %1206 = vmatprep.subr.mxu0 0.0
      %1207 = vmatpush1.msra.mxu0 0.0
      %1208 = vmatprep.subr.mxu0 0.0
      %1209 = vmatpush1.msra.mxu0 0.0
      %1210 = vmatprep.subr.mxu0 0.0
      %1211 = vmatpush1.msra.mxu0 0.0
      %1212 = vmatprep.subr.mxu0 0.0
      %1213 = vmatpush1.msra.mxu0 0.0
      %1214 = vmatprep.subr.mxu0 0.0
      %1215 = vmatpush1.msra.mxu0 0.0
      %1216 = vmatprep.subr.mxu0 0.0
      %1217 = vmatpush1.msra.mxu0 0.0
      %1218 = vmatprep.subr.mxu0 0.0
      %1219 = vmatpush1.msra.mxu0 0.0
      %1220 = vmatprep.subr.mxu0 0.0
      %1221 = vmatpush1.msra.mxu0 0.0
      %1222 = vmatprep.subr.mxu0 0.0
      %1223 = vmatpush1.msra.mxu0 0.0
      %1224 = vmatprep.subr.mxu0 0.0
      %1225 = vmatpush1.msra.mxu0 0.0
      %1226 = vmatprep.subr.mxu0 0.0
      %1227 = vmatpush1.msra.mxu0 0.0
      %1228 = vmatprep.subr.mxu0 0.0
      %1229 = vmatpush1.msra.mxu0 0.0
      %1230 = vmatprep.subr.mxu0 0.0
      %1231 = vmatpush1.msra.mxu0 %v1195
      %1232 = vmatprep.subr.mxu0 0.0
      %1233 = vmatpush2.msra.mxu0 0.0
      %1234 = vmatprep.subr.mxu0 0.0
      %1235 = vmatpush2.msra.mxu0 0.0
      %1236 = vmatprep.subr.mxu0 0.0
      %1237 = vmatpush2.msra.mxu0 0.0
      %1238 = vmatprep.subr.mxu0 0.0
      %1239 = vmatpush2.msra.mxu0 0.0
      %1240 = vmatprep.subr.mxu0 0.0
      %1241 = vmatpush2.msra.mxu0 0.0
      %1242 = vmatprep.subr.mxu0 0.0
      %1243 = vmatpush2.msra.mxu0 0.0
      %1244 = vmatprep.subr.mxu0 0.0
      %1245 = vmatpush2.msra.mxu0 0.0
      %1246 = vmatprep.subr.mxu0 0.0
      %1247 = vmatpush2.msra.mxu0 0.0
      %1248 = vmatprep.subr.mxu0 0.0
      %1249 = vmatpush2.msra.mxu0 0.0
      %1250 = vmatprep.subr.mxu0 0.0
      %1251 = vmatpush2.msra.mxu0 0.0
      %1252 = vmatprep.subr.mxu0 0.0
      %1253 = vmatpush2.msra.mxu0 0.0
      %1254 = vmatprep.subr.mxu0 0.0
      %1255 = vmatpush2.msra.mxu0 0.0
      %1256 = vmatprep.subr.mxu0 0.0
      %1257 = vmatpush2.msra.mxu0 0.0
      %1258 = vmatprep.subr.mxu0 0.0
      %1259 = vmatpush2.msra.mxu0 0.0
      %1260 = vmatprep.subr.mxu0 0.0
      %1261 = vmatpush2.msra.mxu0 0.0
      %1262 = vmatprep.subr.mxu0 0.0
      %1263 = vmatpush2.msra.mxu0 0.0
      %1264 = vmatprep.mubr.f32.mxu0 0.0
      %1265 = vmatmul.mubr.f32.gmra.mxu0 %v1198
      %v1266 = vpop.f32.mrf.mxu0
      %v1267 = vadd.f32 0.0, %v1266
      %v1268 = vpop.f32.mrf.mxu0
      %1269 = vdwg.mxu0
      %1270 = vrot.lane.b32.xlu0 %v824, 64
      %v1271 = vpop.permute.xlu0 %1270
      %v1274 = vsel %vm844, %v1191, 0
      %1276 = vmatprep.subr.mxu0 0.0
      %1277 = vmatpush1.msra.mxu0 0.0
      %1278 = vmatprep.subr.mxu0 0.0
      %1279 = vmatpush1.msra.mxu0 0.0
      %1280 = vmatprep.subr.mxu0 0.0
      %1281 = vmatpush1.msra.mxu0 0.0
      %1282 = vmatprep.subr.mxu0 0.0
      %1283 = vmatpush1.msra.mxu0 0.0
      %1284 = vmatprep.subr.mxu0 0.0
      %1285 = vmatpush1.msra.mxu0 0.0
      %1286 = vmatprep.subr.mxu0 0.0
      %1287 = vmatpush1.msra.mxu0 0.0
      %1288 = vmatprep.subr.mxu0 0.0
      %1289 = vmatpush1.msra.mxu0 0.0
      %1290 = vmatprep.subr.mxu0 0.0
      %1291 = vmatpush1.msra.mxu0 0.0
      %1292 = vmatprep.subr.mxu0 0.0
      %1293 = vmatpush1.msra.mxu0 0.0
      %1294 = vmatprep.subr.mxu0 0.0
      %1295 = vmatpush1.msra.mxu0 0.0
      %1296 = vmatprep.subr.mxu0 0.0
      %1297 = vmatpush1.msra.mxu0 0.0
      %1298 = vmatprep.subr.mxu0 0.0
      %1299 = vmatpush1.msra.mxu0 0.0
      %1300 = vmatprep.subr.mxu0 0.0
      %1301 = vmatpush1.msra.mxu0 0.0
      %1302 = vmatprep.subr.mxu0 0.0
      %1303 = vmatpush1.msra.mxu0 0.0
      %1304 = vmatprep.subr.mxu0 0.0
      %1305 = vmatpush1.msra.mxu0 0.0
      %1306 = vmatprep.subr.mxu0 0.0
      %1307 = vmatpush1.msra.mxu0 %v1271
      %1308 = vmatprep.subr.mxu0 0.0
      %1309 = vmatpush2.msra.mxu0 0.0
      %1310 = vmatprep.subr.mxu0 0.0
      %1311 = vmatpush2.msra.mxu0 0.0
      %1312 = vmatprep.subr.mxu0 0.0
      %1313 = vmatpush2.msra.mxu0 0.0
      %1314 = vmatprep.subr.mxu0 0.0
      %1315 = vmatpush2.msra.mxu0 0.0
      %1316 = vmatprep.subr.mxu0 0.0
      %1317 = vmatpush2.msra.mxu0 0.0
      %1318 = vmatprep.subr.mxu0 0.0
      %1319 = vmatpush2.msra.mxu0 0.0
      %1320 = vmatprep.subr.mxu0 0.0
      %1321 = vmatpush2.msra.mxu0 0.0
      %1322 = vmatprep.subr.mxu0 0.0
      %1323 = vmatpush2.msra.mxu0 0.0
      %1324 = vmatprep.subr.mxu0 0.0
      %1325 = vmatpush2.msra.mxu0 0.0
      %1326 = vmatprep.subr.mxu0 0.0
      %1327 = vmatpush2.msra.mxu0 0.0
      %1328 = vmatprep.subr.mxu0 0.0
      %1329 = vmatpush2.msra.mxu0 0.0
      %1330 = vmatprep.subr.mxu0 0.0
      %1331 = vmatpush2.msra.mxu0 0.0
      %1332 = vmatprep.subr.mxu0 0.0
      %1333 = vmatpush2.msra.mxu0 0.0
      %1334 = vmatprep.subr.mxu0 0.0
      %1335 = vmatpush2.msra.mxu0 0.0
      %1336 = vmatprep.subr.mxu0 0.0
      %1337 = vmatpush2.msra.mxu0 0.0
      %1338 = vmatprep.subr.mxu0 0.0
      %1339 = vmatpush2.msra.mxu0 0.0
      %1340 = vmatprep.mubr.f32.mxu0 0.0
      %1341 = vmatmul.mubr.f32.gmra.mxu0 %v1274
      %v1342 = vpop.f32.mrf.mxu0
      %v1343 = vadd.f32 0.0, %v1342
      %v1344 = vpop.f32.mrf.mxu0
      %1345 = vdwg.mxu0
      %1346 = vrot.lane.b32.xlu0 %v829, 64
      %v1347 = vpop.permute.xlu0 %1346
      %v1350 = vsel %vm844, %v1192, 0
      %1352 = vmatprep.subr.mxu0 0.0
      %1353 = vmatpush1.msra.mxu0 0.0
      %1354 = vmatprep.subr.mxu0 0.0
      %1355 = vmatpush1.msra.mxu0 0.0
      %1356 = vmatprep.subr.mxu0 0.0
      %1357 = vmatpush1.msra.mxu0 0.0
      %1358 = vmatprep.subr.mxu0 0.0
      %1359 = vmatpush1.msra.mxu0 0.0
      %1360 = vmatprep.subr.mxu0 0.0
      %1361 = vmatpush1.msra.mxu0 0.0
      %1362 = vmatprep.subr.mxu0 0.0
      %1363 = vmatpush1.msra.mxu0 0.0
      %1364 = vmatprep.subr.mxu0 0.0
      %1365 = vmatpush1.msra.mxu0 0.0
      %1366 = vmatprep.subr.mxu0 0.0
      %1367 = vmatpush1.msra.mxu0 0.0
      %1368 = vmatprep.subr.mxu0 0.0
      %1369 = vmatpush1.msra.mxu0 0.0
      %1370 = vmatprep.subr.mxu0 0.0
      %1371 = vmatpush1.msra.mxu0 0.0
      %1372 = vmatprep.subr.mxu0 0.0
      %1373 = vmatpush1.msra.mxu0 0.0
      %1374 = vmatprep.subr.mxu0 0.0
      %1375 = vmatpush1.msra.mxu0 0.0
      %1376 = vmatprep.subr.mxu0 0.0
      %1377 = vmatpush1.msra.mxu0 0.0
      %1378 = vmatprep.subr.mxu0 0.0
      %1379 = vmatpush1.msra.mxu0 0.0
      %1380 = vmatprep.subr.mxu0 0.0
      %1381 = vmatpush1.msra.mxu0 0.0
      %1382 = vmatprep.subr.mxu0 0.0
      %1383 = vmatpush1.msra.mxu0 %v1347
      %1384 = vmatprep.subr.mxu0 0.0
      %1385 = vmatpush2.msra.mxu0 0.0
      %1386 = vmatprep.subr.mxu0 0.0
      %1387 = vmatpush2.msra.mxu0 0.0
      %1388 = vmatprep.subr.mxu0 0.0
      %1389 = vmatpush2.msra.mxu0 0.0
      %1390 = vmatprep.subr.mxu0 0.0
      %1391 = vmatpush2.msra.mxu0 0.0
      %1392 = vmatprep.subr.mxu0 0.0
      %1393 = vmatpush2.msra.mxu0 0.0
      %1394 = vmatprep.subr.mxu0 0.0
      %1395 = vmatpush2.msra.mxu0 0.0
      %1396 = vmatprep.subr.mxu0 0.0
      %1397 = vmatpush2.msra.mxu0 0.0
      %1398 = vmatprep.subr.mxu0 0.0
      %1399 = vmatpush2.msra.mxu0 0.0
      %1400 = vmatprep.subr.mxu0 0.0
      %1401 = vmatpush2.msra.mxu0 0.0
      %1402 = vmatprep.subr.mxu0 0.0
      %1403 = vmatpush2.msra.mxu0 0.0
      %1404 = vmatprep.subr.mxu0 0.0
      %1405 = vmatpush2.msra.mxu0 0.0
      %1406 = vmatprep.subr.mxu0 0.0
      %1407 = vmatpush2.msra.mxu0 0.0
      %1408 = vmatprep.subr.mxu0 0.0
      %1409 = vmatpush2.msra.mxu0 0.0
      %1410 = vmatprep.subr.mxu0 0.0
      %1411 = vmatpush2.msra.mxu0 0.0
      %1412 = vmatprep.subr.mxu0 0.0
      %1413 = vmatpush2.msra.mxu0 0.0
      %1414 = vmatprep.subr.mxu0 0.0
      %1415 = vmatpush2.msra.mxu0 0.0
      %1416 = vmatprep.mubr.f32.mxu0 0.0
      %1417 = vmatmul.mubr.f32.gmra.mxu0 %v1350
      %v1418 = vpop.f32.mrf.mxu0
      %v1419 = vadd.f32 0.0, %v1418
      %v1420 = vpop.f32.mrf.mxu0
      %1421 = vdwg.mxu0
      %1422 = vrot.lane.b32.xlu0 %v834, 64
      %v1423 = vpop.permute.xlu0 %1422
      %v1426 = vsel %vm844, %v1193, 0
      %1428 = vmatprep.subr.mxu0 0.0
      %1429 = vmatpush1.msra.mxu0 0.0
      %1430 = vmatprep.subr.mxu0 0.0
      %1431 = vmatpush1.msra.mxu0 0.0
      %1432 = vmatprep.subr.mxu0 0.0
      %1433 = vmatpush1.msra.mxu0 0.0
      %1434 = vmatprep.subr.mxu0 0.0
      %1435 = vmatpush1.msra.mxu0 0.0
      %1436 = vmatprep.subr.mxu0 0.0
      %1437 = vmatpush1.msra.mxu0 0.0
      %1438 = vmatprep.subr.mxu0 0.0
      %1439 = vmatpush1.msra.mxu0 0.0
      %1440 = vmatprep.subr.mxu0 0.0
      %1441 = vmatpush1.msra.mxu0 0.0
      %1442 = vmatprep.subr.mxu0 0.0
      %1443 = vmatpush1.msra.mxu0 0.0
      %1444 = vmatprep.subr.mxu0 0.0
      %1445 = vmatpush1.msra.mxu0 0.0
      %1446 = vmatprep.subr.mxu0 0.0
      %1447 = vmatpush1.msra.mxu0 0.0
      %1448 = vmatprep.subr.mxu0 0.0
      %1449 = vmatpush1.msra.mxu0 0.0
      %1450 = vmatprep.subr.mxu0 0.0
      %1451 = vmatpush1.msra.mxu0 0.0
      %1452 = vmatprep.subr.mxu0 0.0
      %1453 = vmatpush1.msra.mxu0 0.0
      %1454 = vmatprep.subr.mxu0 0.0
      %1455 = vmatpush1.msra.mxu0 0.0
      %1456 = vmatprep.subr.mxu0 0.0
      %1457 = vmatpush1.msra.mxu0 0.0
      %1458 = vmatprep.subr.mxu0 0.0
      %1459 = vmatpush1.msra.mxu0 %v1423
      %1460 = vmatprep.subr.mxu0 0.0
      %1461 = vmatpush2.msra.mxu0 0.0
      %1462 = vmatprep.subr.mxu0 0.0
      %1463 = vmatpush2.msra.mxu0 0.0
      %1464 = vmatprep.subr.mxu0 0.0
      %1465 = vmatpush2.msra.mxu0 0.0
      %1466 = vmatprep.subr.mxu0 0.0
      %1467 = vmatpush2.msra.mxu0 0.0
      %1468 = vmatprep.subr.mxu0 0.0
      %1469 = vmatpush2.msra.mxu0 0.0
      %1470 = vmatprep.subr.mxu0 0.0
      %1471 = vmatpush2.msra.mxu0 0.0
      %1472 = vmatprep.subr.mxu0 0.0
      %1473 = vmatpush2.msra.mxu0 0.0
      %1474 = vmatprep.subr.mxu0 0.0
      %1475 = vmatpush2.msra.mxu0 0.0
      %1476 = vmatprep.subr.mxu0 0.0
      %1477 = vmatpush2.msra.mxu0 0.0
      %1478 = vmatprep.subr.mxu0 0.0
      %1479 = vmatpush2.msra.mxu0 0.0
      %1480 = vmatprep.subr.mxu0 0.0
      %1481 = vmatpush2.msra.mxu0 0.0
      %1482 = vmatprep.subr.mxu0 0.0
      %1483 = vmatpush2.msra.mxu0 0.0
      %1484 = vmatprep.subr.mxu0 0.0
      %1485 = vmatpush2.msra.mxu0 0.0
      %1486 = vmatprep.subr.mxu0 0.0
      %1487 = vmatpush2.msra.mxu0 0.0
      %1488 = vmatprep.subr.mxu0 0.0
      %1489 = vmatpush2.msra.mxu0 0.0
      %1490 = vmatprep.subr.mxu0 0.0
      %1491 = vmatpush2.msra.mxu0 0.0
      %1492 = vmatprep.mubr.f32.mxu0 0.0
      %1493 = vmatmul.mubr.f32.gmra.mxu0 %v1426
      %v1494 = vpop.f32.mrf.mxu0
      %v1495 = vadd.f32 0.0, %v1494
      %v1496 = vpop.f32.mrf.mxu0
      %1497 = vdwg.mxu0
      %1498 = vrot.lane.b32.xlu0 %v819, 120
      %v1499 = vpop.permute.xlu0 %1498
      %1500 = vrot.lane.b32.xlu0 %v819, 88
      %v1501 = vpop.permute.xlu0 %1500
      %v1502 = vsel %vm844, %v1499, 0
      %v1504 = vsel %vm844, %v1501, 0
      %1506 = vmatprep.subr.mxu0 0.0
      %1507 = vmatpush1.xpose.msra.mxu0 0.0
      %1508 = vmatprep.subr.mxu0 0.0
      %1509 = vmatpush1.xpose.msra.mxu0 0.0
      %1510 = vmatprep.subr.mxu0 0.0
      %1511 = vmatpush1.xpose.msra.mxu0 0.0
      %1512 = vmatprep.subr.mxu0 0.0
      %1513 = vmatpush1.xpose.msra.mxu0 0.0
      %1514 = vmatprep.subr.mxu0 0.0
      %1515 = vmatpush1.xpose.msra.mxu0 0.0
      %1516 = vmatprep.subr.mxu0 0.0
      %1517 = vmatpush1.xpose.msra.mxu0 0.0
      %1518 = vmatprep.subr.mxu0 0.0
      %1519 = vmatpush1.xpose.msra.mxu0 0.0
      %1520 = vmatprep.subr.mxu0 0.0
      %1521 = vmatpush1.xpose.msra.mxu0 0.0
      %1522 = vmatprep.subr.mxu0 0.0
      %1523 = vmatpush1.xpose.msra.mxu0 0.0
      %1524 = vmatprep.subr.mxu0 0.0
      %1525 = vmatpush1.xpose.msra.mxu0 0.0
      %1526 = vmatprep.subr.mxu0 0.0
      %1527 = vmatpush1.xpose.msra.mxu0 0.0
      %1528 = vmatprep.subr.mxu0 0.0
      %1529 = vmatpush1.xpose.msra.mxu0 0.0
      %1530 = vmatprep.subr.mxu0 0.0
      %1531 = vmatpush1.xpose.msra.mxu0 0.0
      %1532 = vmatprep.subr.mxu0 0.0
      %1533 = vmatpush1.xpose.msra.mxu0 0.0
      %1534 = vmatprep.subr.mxu0 0.0
      %1535 = vmatpush1.xpose.msra.mxu0 0.0
      %1536 = vmatprep.subr.mxu0 0.0
      %1537 = vmatpush1.xpose.msra.mxu0 %v1504
      %1538 = vmatprep.subr.mxu0 0.0
      %1539 = vmatpush2.xpose.msra.mxu0 0.0
      %1540 = vmatprep.subr.mxu0 0.0
      %1541 = vmatpush2.xpose.msra.mxu0 0.0
      %1542 = vmatprep.subr.mxu0 0.0
      %1543 = vmatpush2.xpose.msra.mxu0 0.0
      %1544 = vmatprep.subr.mxu0 0.0
      %1545 = vmatpush2.xpose.msra.mxu0 0.0
      %1546 = vmatprep.subr.mxu0 0.0
      %1547 = vmatpush2.xpose.msra.mxu0 0.0
      %1548 = vmatprep.subr.mxu0 0.0
      %1549 = vmatpush2.xpose.msra.mxu0 0.0
      %1550 = vmatprep.subr.mxu0 0.0
      %1551 = vmatpush2.xpose.msra.mxu0 0.0
      %1552 = vmatprep.subr.mxu0 0.0
      %1553 = vmatpush2.xpose.msra.mxu0 0.0
      %1554 = vmatprep.subr.mxu0 0.0
      %1555 = vmatpush2.xpose.msra.mxu0 0.0
      %1556 = vmatprep.subr.mxu0 0.0
      %1557 = vmatpush2.xpose.msra.mxu0 0.0
      %1558 = vmatprep.subr.mxu0 0.0
      %1559 = vmatpush2.xpose.msra.mxu0 0.0
      %1560 = vmatprep.subr.mxu0 0.0
      %1561 = vmatpush2.xpose.msra.mxu0 0.0
      %1562 = vmatprep.subr.mxu0 0.0
      %1563 = vmatpush2.xpose.msra.mxu0 0.0
      %1564 = vmatprep.subr.mxu0 0.0
      %1565 = vmatpush2.xpose.msra.mxu0 0.0
      %1566 = vmatprep.subr.mxu0 0.0
      %1567 = vmatpush2.xpose.msra.mxu0 0.0
      %1568 = vmatprep.subr.mxu0 0.0
      %1569 = vmatpush2.xpose.msra.mxu0 0.0
      %1570 = vmatprep.mubr.f32.mxu0 0.0
      %1571 = vmatmul.mubr.f32.gmra.mxu0 %v1502
      %v1572 = vpop.f32.mrf.mxu0
      %v1573 = vadd.f32 %v840, %v1572
      %v1574 = vpop.f32.mrf.mxu0
      %1575 = vdwg.mxu0
      %1576 = vrot.lane.b32.xlu0 %v824, 120
      %v1577 = vpop.permute.xlu0 %1576
      %1578 = vrot.lane.b32.xlu0 %v824, 88
      %v1579 = vpop.permute.xlu0 %1578
      %v1580 = vsel %vm844, %v1577, 0
      %v1582 = vsel %vm844, %v1579, 0
      %1584 = vmatprep.subr.mxu0 0.0
      %1585 = vmatpush1.xpose.msra.mxu0 0.0
      %1586 = vmatprep.subr.mxu0 0.0
      %1587 = vmatpush1.xpose.msra.mxu0 0.0
      %1588 = vmatprep.subr.mxu0 0.0
      %1589 = vmatpush1.xpose.msra.mxu0 0.0
      %1590 = vmatprep.subr.mxu0 0.0
      %1591 = vmatpush1.xpose.msra.mxu0 0.0
      %1592 = vmatprep.subr.mxu0 0.0
      %1593 = vmatpush1.xpose.msra.mxu0 0.0
      %1594 = vmatprep.subr.mxu0 0.0
      %1595 = vmatpush1.xpose.msra.mxu0 0.0
      %1596 = vmatprep.subr.mxu0 0.0
      %1597 = vmatpush1.xpose.msra.mxu0 0.0
      %1598 = vmatprep.subr.mxu0 0.0
      %1599 = vmatpush1.xpose.msra.mxu0 0.0
      %1600 = vmatprep.subr.mxu0 0.0
      %1601 = vmatpush1.xpose.msra.mxu0 0.0
      %1602 = vmatprep.subr.mxu0 0.0
      %1603 = vmatpush1.xpose.msra.mxu0 0.0
      %1604 = vmatprep.subr.mxu0 0.0
      %1605 = vmatpush1.xpose.msra.mxu0 0.0
      %1606 = vmatprep.subr.mxu0 0.0
      %1607 = vmatpush1.xpose.msra.mxu0 0.0
      %1608 = vmatprep.subr.mxu0 0.0
      %1609 = vmatpush1.xpose.msra.mxu0 0.0
      %1610 = vmatprep.subr.mxu0 0.0
      %1611 = vmatpush1.xpose.msra.mxu0 0.0
      %1612 = vmatprep.subr.mxu0 0.0
      %1613 = vmatpush1.xpose.msra.mxu0 0.0
      %1614 = vmatprep.subr.mxu0 0.0
      %1615 = vmatpush1.xpose.msra.mxu0 %v1582
      %1616 = vmatprep.subr.mxu0 0.0
      %1617 = vmatpush2.xpose.msra.mxu0 0.0
      %1618 = vmatprep.subr.mxu0 0.0
      %1619 = vmatpush2.xpose.msra.mxu0 0.0
      %1620 = vmatprep.subr.mxu0 0.0
      %1621 = vmatpush2.xpose.msra.mxu0 0.0
      %1622 = vmatprep.subr.mxu0 0.0
      %1623 = vmatpush2.xpose.msra.mxu0 0.0
      %1624 = vmatprep.subr.mxu0 0.0
      %1625 = vmatpush2.xpose.msra.mxu0 0.0
      %1626 = vmatprep.subr.mxu0 0.0
      %1627 = vmatpush2.xpose.msra.mxu0 0.0
      %1628 = vmatprep.subr.mxu0 0.0
      %1629 = vmatpush2.xpose.msra.mxu0 0.0
      %1630 = vmatprep.subr.mxu0 0.0
      %1631 = vmatpush2.xpose.msra.mxu0 0.0
      %1632 = vmatprep.subr.mxu0 0.0
      %1633 = vmatpush2.xpose.msra.mxu0 0.0
      %1634 = vmatprep.subr.mxu0 0.0
      %1635 = vmatpush2.xpose.msra.mxu0 0.0
      %1636 = vmatprep.subr.mxu0 0.0
      %1637 = vmatpush2.xpose.msra.mxu0 0.0
      %1638 = vmatprep.subr.mxu0 0.0
      %1639 = vmatpush2.xpose.msra.mxu0 0.0
      %1640 = vmatprep.subr.mxu0 0.0
      %1641 = vmatpush2.xpose.msra.mxu0 0.0
      %1642 = vmatprep.subr.mxu0 0.0
      %1643 = vmatpush2.xpose.msra.mxu0 0.0
      %1644 = vmatprep.subr.mxu0 0.0
      %1645 = vmatpush2.xpose.msra.mxu0 0.0
      %1646 = vmatprep.subr.mxu0 0.0
      %1647 = vmatpush2.xpose.msra.mxu0 0.0
      %1648 = vmatprep.mubr.f32.mxu0 0.0
      %1649 = vmatmul.mubr.f32.gmra.mxu0 %v1580
      %v1650 = vpop.f32.mrf.mxu0
      %v1651 = vadd.f32 %v840, %v1650
      %v1652 = vpop.f32.mrf.mxu0
      %1653 = vdwg.mxu0
      %1654 = vrot.lane.b32.xlu0 %v829, 120
      %v1655 = vpop.permute.xlu0 %1654
      %1656 = vrot.lane.b32.xlu0 %v829, 88
      %v1657 = vpop.permute.xlu0 %1656
      %v1658 = vsel %vm844, %v1655, 0
      %v1660 = vsel %vm844, %v1657, 0
      %1662 = vmatprep.subr.mxu0 0.0
      %1663 = vmatpush1.xpose.msra.mxu0 0.0
      %1664 = vmatprep.subr.mxu0 0.0
      %1665 = vmatpush1.xpose.msra.mxu0 0.0
      %1666 = vmatprep.subr.mxu0 0.0
      %1667 = vmatpush1.xpose.msra.mxu0 0.0
      %1668 = vmatprep.subr.mxu0 0.0
      %1669 = vmatpush1.xpose.msra.mxu0 0.0
      %1670 = vmatprep.subr.mxu0 0.0
      %1671 = vmatpush1.xpose.msra.mxu0 0.0
      %1672 = vmatprep.subr.mxu0 0.0
      %1673 = vmatpush1.xpose.msra.mxu0 0.0
      %1674 = vmatprep.subr.mxu0 0.0
      %1675 = vmatpush1.xpose.msra.mxu0 0.0
      %1676 = vmatprep.subr.mxu0 0.0
      %1677 = vmatpush1.xpose.msra.mxu0 0.0
      %1678 = vmatprep.subr.mxu0 0.0
      %1679 = vmatpush1.xpose.msra.mxu0 0.0
      %1680 = vmatprep.subr.mxu0 0.0
      %1681 = vmatpush1.xpose.msra.mxu0 0.0
      %1682 = vmatprep.subr.mxu0 0.0
      %1683 = vmatpush1.xpose.msra.mxu0 0.0
      %1684 = vmatprep.subr.mxu0 0.0
      %1685 = vmatpush1.xpose.msra.mxu0 0.0
      %1686 = vmatprep.subr.mxu0 0.0
      %1687 = vmatpush1.xpose.msra.mxu0 0.0
      %1688 = vmatprep.subr.mxu0 0.0
      %1689 = vmatpush1.xpose.msra.mxu0 0.0
      %1690 = vmatprep.subr.mxu0 0.0
      %1691 = vmatpush1.xpose.msra.mxu0 0.0
      %1692 = vmatprep.subr.mxu0 0.0
      %1693 = vmatpush1.xpose.msra.mxu0 %v1660
      %1694 = vmatprep.subr.mxu0 0.0
      %1695 = vmatpush2.xpose.msra.mxu0 0.0
      %1696 = vmatprep.subr.mxu0 0.0
      %1697 = vmatpush2.xpose.msra.mxu0 0.0
      %1698 = vmatprep.subr.mxu0 0.0
      %1699 = vmatpush2.xpose.msra.mxu0 0.0
      %1700 = vmatprep.subr.mxu0 0.0
      %1701 = vmatpush2.xpose.msra.mxu0 0.0
      %1702 = vmatprep.subr.mxu0 0.0
      %1703 = vmatpush2.xpose.msra.mxu0 0.0
      %1704 = vmatprep.subr.mxu0 0.0
      %1705 = vmatpush2.xpose.msra.mxu0 0.0
      %1706 = vmatprep.subr.mxu0 0.0
      %1707 = vmatpush2.xpose.msra.mxu0 0.0
      %1708 = vmatprep.subr.mxu0 0.0
      %1709 = vmatpush2.xpose.msra.mxu0 0.0
      %1710 = vmatprep.subr.mxu0 0.0
      %1711 = vmatpush2.xpose.msra.mxu0 0.0
      %1712 = vmatprep.subr.mxu0 0.0
      %1713 = vmatpush2.xpose.msra.mxu0 0.0
      %1714 = vmatprep.subr.mxu0 0.0
      %1715 = vmatpush2.xpose.msra.mxu0 0.0
      %1716 = vmatprep.subr.mxu0 0.0
      %1717 = vmatpush2.xpose.msra.mxu0 0.0
      %1718 = vmatprep.subr.mxu0 0.0
      %1719 = vmatpush2.xpose.msra.mxu0 0.0
      %1720 = vmatprep.subr.mxu0 0.0
      %1721 = vmatpush2.xpose.msra.mxu0 0.0
      %1722 = vmatprep.subr.mxu0 0.0
      %1723 = vmatpush2.xpose.msra.mxu0 0.0
      %1724 = vmatprep.subr.mxu0 0.0
      %1725 = vmatpush2.xpose.msra.mxu0 0.0
      %1726 = vmatprep.mubr.f32.mxu0 0.0
      %1727 = vmatmul.mubr.f32.gmra.mxu0 %v1658
      %v1728 = vpop.f32.mrf.mxu0
      %v1729 = vadd.f32 %v840, %v1728
      %v1730 = vpop.f32.mrf.mxu0
      %1731 = vdwg.mxu0
      %1732 = vrot.lane.b32.xlu0 %v834, 120
      %v1733 = vpop.permute.xlu0 %1732
      %1734 = vrot.lane.b32.xlu0 %v834, 88
      %v1735 = vpop.permute.xlu0 %1734
      %v1736 = vsel %vm844, %v1733, 0
      %v1738 = vsel %vm844, %v1735, 0
      %1740 = vmatprep.subr.mxu0 0.0
      %1741 = vmatpush1.xpose.msra.mxu0 0.0
      %1742 = vmatprep.subr.mxu0 0.0
      %1743 = vmatpush1.xpose.msra.mxu0 0.0
      %1744 = vmatprep.subr.mxu0 0.0
      %1745 = vmatpush1.xpose.msra.mxu0 0.0
      %1746 = vmatprep.subr.mxu0 0.0
      %1747 = vmatpush1.xpose.msra.mxu0 0.0
      %1748 = vmatprep.subr.mxu0 0.0
      %1749 = vmatpush1.xpose.msra.mxu0 0.0
      %1750 = vmatprep.subr.mxu0 0.0
      %1751 = vmatpush1.xpose.msra.mxu0 0.0
      %1752 = vmatprep.subr.mxu0 0.0
      %1753 = vmatpush1.xpose.msra.mxu0 0.0
      %1754 = vmatprep.subr.mxu0 0.0
      %1755 = vmatpush1.xpose.msra.mxu0 0.0
      %1756 = vmatprep.subr.mxu0 0.0
      %1757 = vmatpush1.xpose.msra.mxu0 0.0
      %1758 = vmatprep.subr.mxu0 0.0
      %1759 = vmatpush1.xpose.msra.mxu0 0.0
      %1760 = vmatprep.subr.mxu0 0.0
      %1761 = vmatpush1.xpose.msra.mxu0 0.0
      %1762 = vmatprep.subr.mxu0 0.0
      %1763 = vmatpush1.xpose.msra.mxu0 0.0
      %1764 = vmatprep.subr.mxu0 0.0
      %1765 = vmatpush1.xpose.msra.mxu0 0.0
      %1766 = vmatprep.subr.mxu0 0.0
      %1767 = vmatpush1.xpose.msra.mxu0 0.0
      %1768 = vmatprep.subr.mxu0 0.0
      %1769 = vmatpush1.xpose.msra.mxu0 0.0
      %1770 = vmatprep.subr.mxu0 0.0
      %1771 = vmatpush1.xpose.msra.mxu0 %v1738
      %1772 = vmatprep.subr.mxu0 0.0
      %1773 = vmatpush2.xpose.msra.mxu0 0.0
      %1774 = vmatprep.subr.mxu0 0.0
      %1775 = vmatpush2.xpose.msra.mxu0 0.0
      %1776 = vmatprep.subr.mxu0 0.0
      %1777 = vmatpush2.xpose.msra.mxu0 0.0
      %1778 = vmatprep.subr.mxu0 0.0
      %1779 = vmatpush2.xpose.msra.mxu0 0.0
      %1780 = vmatprep.subr.mxu0 0.0
      %1781 = vmatpush2.xpose.msra.mxu0 0.0
      %1782 = vmatprep.subr.mxu0 0.0
      %1783 = vmatpush2.xpose.msra.mxu0 0.0
      %1784 = vmatprep.subr.mxu0 0.0
      %1785 = vmatpush2.xpose.msra.mxu0 0.0
      %1786 = vmatprep.subr.mxu0 0.0
      %1787 = vmatpush2.xpose.msra.mxu0 0.0
      %1788 = vmatprep.subr.mxu0 0.0
      %1789 = vmatpush2.xpose.msra.mxu0 0.0
      %1790 = vmatprep.subr.mxu0 0.0
      %1791 = vmatpush2.xpose.msra.mxu0 0.0
      %1792 = vmatprep.subr.mxu0 0.0
      %1793 = vmatpush2.xpose.msra.mxu0 0.0
      %1794 = vmatprep.subr.mxu0 0.0
      %1795 = vmatpush2.xpose.msra.mxu0 0.0
      %1796 = vmatprep.subr.mxu0 0.0
      %1797 = vmatpush2.xpose.msra.mxu0 0.0
      %1798 = vmatprep.subr.mxu0 0.0
      %1799 = vmatpush2.xpose.msra.mxu0 0.0
      %1800 = vmatprep.subr.mxu0 0.0
      %1801 = vmatpush2.xpose.msra.mxu0 0.0
      %1802 = vmatprep.subr.mxu0 0.0
      %1803 = vmatpush2.xpose.msra.mxu0 0.0
      %1804 = vmatprep.mubr.f32.mxu0 0.0
      %1805 = vmatmul.mubr.f32.gmra.mxu0 %v1736
      %v1806 = vpop.f32.mrf.mxu0
      %v1807 = vadd.f32 %v840, %v1806
      %v1808 = vpop.f32.mrf.mxu0
      %1809 = vdwg.mxu0
      %v1810 = vsel %vm844, %v1573, -inf
      %1811 = vmax.xlane.f32.xlu0 %v1810
      %v1812 = vpop.xlane.xlu0 %1811
      %v1813 = vsel %vm844, %v1651, -inf
      %1814 = vmax.xlane.f32.xlu0 %v1813
      %v1815 = vpop.xlane.xlu0 %1814
      %v1816 = vsel %vm844, %v1729, -inf
      %1817 = vmax.xlane.f32.xlu0 %v1816
      %v1818 = vpop.xlane.xlu0 %1817
      %v1819 = vsel %vm844, %v1807, -inf
      %1820 = vmax.xlane.f32.xlu0 %v1819
      %v1821 = vpop.xlane.xlu0 %1820
      %v1822 = vsub.f32 %v1573, %v1812
      %v1823 = vsub.f32 %v1651, %v1815
      %v1824 = vsub.f32 %v1729, %v1818
      %v1825 = vsub.f32 %v1807, %v1821
      %v1826 = vmul.f32 %v1822, 1.442695
      %v1827 = vpow.pop %v1826
      %v1828 = vmul.f32 %v1823, 1.442695
      %v1829 = vpow.pop %v1828
      %v1830 = vmul.f32 %v1824, 1.442695
      %v1831 = vpow.pop %v1830
      %v1832 = vmul.f32 %v1825, 1.442695
      %v1833 = vpow.pop %v1832
      %v1834 = vsel %vm844, %v1827, 0.0
      %1835 = vadd.xlane.f32.xlu0 %v1834
      %v1836 = vpop.xlane.xlu0 %1835
      %v1837 = vsel %vm844, %v1829, 0.0
      %1838 = vadd.xlane.f32.xlu0 %v1837
      %v1839 = vpop.xlane.xlu0 %1838
      %v1840 = vsel %vm844, %v1831, 0.0
      %1841 = vadd.xlane.f32.xlu0 %v1840
      %v1842 = vpop.xlane.xlu0 %1841
      %v1843 = vsel %vm844, %v1833, 0.0
      %1844 = vadd.xlane.f32.xlu0 %v1843
      %v1845 = vpop.xlane.xlu0 %1844
      %v1846 = vrcp.pop %v1836
      %v1847 = vrcp.pop %v1839
      %v1848 = vrcp.pop %v1842
      %v1849 = vrcp.pop %v1845
      %v1850 = vmul.f32 %v1827, %v1846
      %v1851 = vmul.f32 %v1829, %v1847
      %v1852 = vmul.f32 %v1831, %v1848
      %v1853 = vmul.f32 %v1833, %v1849
      %1854 = vrot.lane.b32.xlu0 %v819, 56
      %v1855 = vpop.permute.xlu0 %1854
      %v1858 = vsel %vm844, %v1850, 0
      %1860 = vmatprep.subr.mxu0 0.0
      %1861 = vmatpush1.msra.mxu0 0.0
      %1862 = vmatprep.subr.mxu0 0.0
      %1863 = vmatpush1.msra.mxu0 0.0
      %1864 = vmatprep.subr.mxu0 0.0
      %1865 = vmatpush1.msra.mxu0 0.0
      %1866 = vmatprep.subr.mxu0 0.0
      %1867 = vmatpush1.msra.mxu0 0.0
      %1868 = vmatprep.subr.mxu0 0.0
      %1869 = vmatpush1.msra.mxu0 0.0
      %1870 = vmatprep.subr.mxu0 0.0
      %1871 = vmatpush1.msra.mxu0 0.0
      %1872 = vmatprep.subr.mxu0 0.0
      %1873 = vmatpush1.msra.mxu0 0.0
      %1874 = vmatprep.subr.mxu0 0.0
      %1875 = vmatpush1.msra.mxu0 0.0
      %1876 = vmatprep.subr.mxu0 0.0
      %1877 = vmatpush1.msra.mxu0 0.0
      %1878 = vmatprep.subr.mxu0 0.0
      %1879 = vmatpush1.msra.mxu0 0.0
      %1880 = vmatprep.subr.mxu0 0.0
      %1881 = vmatpush1.msra.mxu0 0.0
      %1882 = vmatprep.subr.mxu0 0.0
      %1883 = vmatpush1.msra.mxu0 0.0
      %1884 = vmatprep.subr.mxu0 0.0
      %1885 = vmatpush1.msra.mxu0 0.0
      %1886 = vmatprep.subr.mxu0 0.0
      %1887 = vmatpush1.msra.mxu0 0.0
      %1888 = vmatprep.subr.mxu0 0.0
      %1889 = vmatpush1.msra.mxu0 0.0
      %1890 = vmatprep.subr.mxu0 0.0
      %1891 = vmatpush1.msra.mxu0 %v1855
      %1892 = vmatprep.subr.mxu0 0.0
      %1893 = vmatpush2.msra.mxu0 0.0
      %1894 = vmatprep.subr.mxu0 0.0
      %1895 = vmatpush2.msra.mxu0 0.0
      %1896 = vmatprep.subr.mxu0 0.0
      %1897 = vmatpush2.msra.mxu0 0.0
      %1898 = vmatprep.subr.mxu0 0.0
      %1899 = vmatpush2.msra.mxu0 0.0
      %1900 = vmatprep.subr.mxu0 0.0
      %1901 = vmatpush2.msra.mxu0 0.0
      %1902 = vmatprep.subr.mxu0 0.0
      %1903 = vmatpush2.msra.mxu0 0.0
      %1904 = vmatprep.subr.mxu0 0.0
      %1905 = vmatpush2.msra.mxu0 0.0
      %1906 = vmatprep.subr.mxu0 0.0
      %1907 = vmatpush2.msra.mxu0 0.0
      %1908 = vmatprep.subr.mxu0 0.0
      %1909 = vmatpush2.msra.mxu0 0.0
      %1910 = vmatprep.subr.mxu0 0.0
      %1911 = vmatpush2.msra.mxu0 0.0
      %1912 = vmatprep.subr.mxu0 0.0
      %1913 = vmatpush2.msra.mxu0 0.0
      %1914 = vmatprep.subr.mxu0 0.0
      %1915 = vmatpush2.msra.mxu0 0.0
      %1916 = vmatprep.subr.mxu0 0.0
      %1917 = vmatpush2.msra.mxu0 0.0
      %1918 = vmatprep.subr.mxu0 0.0
      %1919 = vmatpush2.msra.mxu0 0.0
      %1920 = vmatprep.subr.mxu0 0.0
      %1921 = vmatpush2.msra.mxu0 0.0
      %1922 = vmatprep.subr.mxu0 0.0
      %1923 = vmatpush2.msra.mxu0 0.0
      %1924 = vmatprep.mubr.f32.mxu0 0.0
      %1925 = vmatmul.mubr.f32.gmra.mxu0 %v1858
      %v1926 = vpop.f32.mrf.mxu0
      %v1927 = vadd.f32 0.0, %v1926
      %v1928 = vpop.f32.mrf.mxu0
      %1929 = vdwg.mxu0
      %1930 = vrot.lane.b32.xlu0 %v824, 56
      %v1931 = vpop.permute.xlu0 %1930
      %v1934 = vsel %vm844, %v1851, 0
      %1936 = vmatprep.subr.mxu0 0.0
      %1937 = vmatpush1.msra.mxu0 0.0
      %1938 = vmatprep.subr.mxu0 0.0
      %1939 = vmatpush1.msra.mxu0 0.0
      %1940 = vmatprep.subr.mxu0 0.0
      %1941 = vmatpush1.msra.mxu0 0.0
      %1942 = vmatprep.subr.mxu0 0.0
      %1943 = vmatpush1.msra.mxu0 0.0
      %1944 = vmatprep.subr.mxu0 0.0
      %1945 = vmatpush1.msra.mxu0 0.0
      %1946 = vmatprep.subr.mxu0 0.0
      %1947 = vmatpush1.msra.mxu0 0.0
      %1948 = vmatprep.subr.mxu0 0.0
      %1949 = vmatpush1.msra.mxu0 0.0
      %1950 = vmatprep.subr.mxu0 0.0
      %1951 = vmatpush1.msra.mxu0 0.0
      %1952 = vmatprep.subr.mxu0 0.0
      %1953 = vmatpush1.msra.mxu0 0.0
      %1954 = vmatprep.subr.mxu0 0.0
      %1955 = vmatpush1.msra.mxu0 0.0
      %1956 = vmatprep.subr.mxu0 0.0
      %1957 = vmatpush1.msra.mxu0 0.0
      %1958 = vmatprep.subr.mxu0 0.0
      %1959 = vmatpush1.msra.mxu0 0.0
      %1960 = vmatprep.subr.mxu0 0.0
      %1961 = vmatpush1.msra.mxu0 0.0
      %1962 = vmatprep.subr.mxu0 0.0
      %1963 = vmatpush1.msra.mxu0 0.0
      %1964 = vmatprep.subr.mxu0 0.0
      %1965 = vmatpush1.msra.mxu0 0.0
      %1966 = vmatprep.subr.mxu0 0.0
      %1967 = vmatpush1.msra.mxu0 %v1931
      %1968 = vmatprep.subr.mxu0 0.0
      %1969 = vmatpush2.msra.mxu0 0.0
      %1970 = vmatprep.subr.mxu0 0.0
      %1971 = vmatpush2.msra.mxu0 0.0
      %1972 = vmatprep.subr.mxu0 0.0
      %1973 = vmatpush2.msra.mxu0 0.0
      %1974 = vmatprep.subr.mxu0 0.0
      %1975 = vmatpush2.msra.mxu0 0.0
      %1976 = vmatprep.subr.mxu0 0.0
      %1977 = vmatpush2.msra.mxu0 0.0
      %1978 = vmatprep.subr.mxu0 0.0
      %1979 = vmatpush2.msra.mxu0 0.0
      %1980 = vmatprep.subr.mxu0 0.0
      %1981 = vmatpush2.msra.mxu0 0.0
      %1982 = vmatprep.subr.mxu0 0.0
      %1983 = vmatpush2.msra.mxu0 0.0
      %1984 = vmatprep.subr.mxu0 0.0
      %1985 = vmatpush2.msra.mxu0 0.0
      %1986 = vmatprep.subr.mxu0 0.0
      %1987 = vmatpush2.msra.mxu0 0.0
      %1988 = vmatprep.subr.mxu0 0.0
      %1989 = vmatpush2.msra.mxu0 0.0
      %1990 = vmatprep.subr.mxu0 0.0
      %1991 = vmatpush2.msra.mxu0 0.0
      %1992 = vmatprep.subr.mxu0 0.0
      %1993 = vmatpush2.msra.mxu0 0.0
      %1994 = vmatprep.subr.mxu0 0.0
      %1995 = vmatpush2.msra.mxu0 0.0
      %1996 = vmatprep.subr.mxu0 0.0
      %1997 = vmatpush2.msra.mxu0 0.0
      %1998 = vmatprep.subr.mxu0 0.0
      %1999 = vmatpush2.msra.mxu0 0.0
      %2000 = vmatprep.mubr.f32.mxu0 0.0
      %2001 = vmatmul.mubr.f32.gmra.mxu0 %v1934
      %v2002 = vpop.f32.mrf.mxu0
      %v2003 = vadd.f32 0.0, %v2002
      %v2004 = vpop.f32.mrf.mxu0
      %2005 = vdwg.mxu0
      %2006 = vrot.lane.b32.xlu0 %v829, 56
      %v2007 = vpop.permute.xlu0 %2006
      %v2010 = vsel %vm844, %v1852, 0
      %2012 = vmatprep.subr.mxu0 0.0
      %2013 = vmatpush1.msra.mxu0 0.0
      %2014 = vmatprep.subr.mxu0 0.0
      %2015 = vmatpush1.msra.mxu0 0.0
      %2016 = vmatprep.subr.mxu0 0.0
      %2017 = vmatpush1.msra.mxu0 0.0
      %2018 = vmatprep.subr.mxu0 0.0
      %2019 = vmatpush1.msra.mxu0 0.0
      %2020 = vmatprep.subr.mxu0 0.0
      %2021 = vmatpush1.msra.mxu0 0.0
      %2022 = vmatprep.subr.mxu0 0.0
      %2023 = vmatpush1.msra.mxu0 0.0
      %2024 = vmatprep.subr.mxu0 0.0
      %2025 = vmatpush1.msra.mxu0 0.0
      %2026 = vmatprep.subr.mxu0 0.0
      %2027 = vmatpush1.msra.mxu0 0.0
      %2028 = vmatprep.subr.mxu0 0.0
      %2029 = vmatpush1.msra.mxu0 0.0
      %2030 = vmatprep.subr.mxu0 0.0
      %2031 = vmatpush1.msra.mxu0 0.0
      %2032 = vmatprep.subr.mxu0 0.0
      %2033 = vmatpush1.msra.mxu0 0.0
      %2034 = vmatprep.subr.mxu0 0.0
      %2035 = vmatpush1.msra.mxu0 0.0
      %2036 = vmatprep.subr.mxu0 0.0
      %2037 = vmatpush1.msra.mxu0 0.0
      %2038 = vmatprep.subr.mxu0 0.0
      %2039 = vmatpush1.msra.mxu0 0.0
      %2040 = vmatprep.subr.mxu0 0.0
      %2041 = vmatpush1.msra.mxu0 0.0
      %2042 = vmatprep.subr.mxu0 0.0
      %2043 = vmatpush1.msra.mxu0 %v2007
      %2044 = vmatprep.subr.mxu0 0.0
      %2045 = vmatpush2.msra.mxu0 0.0
      %2046 = vmatprep.subr.mxu0 0.0
      %2047 = vmatpush2.msra.mxu0 0.0
      %2048 = vmatprep.subr.mxu0 0.0
      %2049 = vmatpush2.msra.mxu0 0.0
      %2050 = vmatprep.subr.mxu0 0.0
      %2051 = vmatpush2.msra.mxu0 0.0
      %2052 = vmatprep.subr.mxu0 0.0
      %2053 = vmatpush2.msra.mxu0 0.0
      %2054 = vmatprep.subr.mxu0 0.0
      %2055 = vmatpush2.msra.mxu0 0.0
      %2056 = vmatprep.subr.mxu0 0.0
      %2057 = vmatpush2.msra.mxu0 0.0
      %2058 = vmatprep.subr.mxu0 0.0
      %2059 = vmatpush2.msra.mxu0 0.0
      %2060 = vmatprep.subr.mxu0 0.0
      %2061 = vmatpush2.msra.mxu0 0.0
      %2062 = vmatprep.subr.mxu0 0.0
      %2063 = vmatpush2.msra.mxu0 0.0
      %2064 = vmatprep.subr.mxu0 0.0
      %2065 = vmatpush2.msra.mxu0 0.0
      %2066 = vmatprep.subr.mxu0 0.0
      %2067 = vmatpush2.msra.mxu0 0.0
      %2068 = vmatprep.subr.mxu0 0.0
      %2069 = vmatpush2.msra.mxu0 0.0
      %2070 = vmatprep.subr.mxu0 0.0
      %2071 = vmatpush2.msra.mxu0 0.0
      %2072 = vmatprep.subr.mxu0 0.0
      %2073 = vmatpush2.msra.mxu0 0.0
      %2074 = vmatprep.subr.mxu0 0.0
      %2075 = vmatpush2.msra.mxu0 0.0
      %2076 = vmatprep.mubr.f32.mxu0 0.0
      %2077 = vmatmul.mubr.f32.gmra.mxu0 %v2010
      %v2078 = vpop.f32.mrf.mxu0
      %v2079 = vadd.f32 0.0, %v2078
      %v2080 = vpop.f32.mrf.mxu0
      %2081 = vdwg.mxu0
      %2082 = vrot.lane.b32.xlu0 %v834, 56
      %v2083 = vpop.permute.xlu0 %2082
      %v2086 = vsel %vm844, %v1853, 0
      %2088 = vmatprep.subr.mxu0 0.0
      %2089 = vmatpush1.msra.mxu0 0.0
      %2090 = vmatprep.subr.mxu0 0.0
      %2091 = vmatpush1.msra.mxu0 0.0
      %2092 = vmatprep.subr.mxu0 0.0
      %2093 = vmatpush1.msra.mxu0 0.0
      %2094 = vmatprep.subr.mxu0 0.0
      %2095 = vmatpush1.msra.mxu0 0.0
      %2096 = vmatprep.subr.mxu0 0.0
      %2097 = vmatpush1.msra.mxu0 0.0
      %2098 = vmatprep.subr.mxu0 0.0
      %2099 = vmatpush1.msra.mxu0 0.0
      %2100 = vmatprep.subr.mxu0 0.0
      %2101 = vmatpush1.msra.mxu0 0.0
      %2102 = vmatprep.subr.mxu0 0.0
      %2103 = vmatpush1.msra.mxu0 0.0
      %2104 = vmatprep.subr.mxu0 0.0
      %2105 = vmatpush1.msra.mxu0 0.0
      %2106 = vmatprep.subr.mxu0 0.0
      %2107 = vmatpush1.msra.mxu0 0.0
      %2108 = vmatprep.subr.mxu0 0.0
      %2109 = vmatpush1.msra.mxu0 0.0
      %2110 = vmatprep.subr.mxu0 0.0
      %2111 = vmatpush1.msra.mxu0 0.0
      %2112 = vmatprep.subr.mxu0 0.0
      %2113 = vmatpush1.msra.mxu0 0.0
      %2114 = vmatprep.subr.mxu0 0.0
      %2115 = vmatpush1.msra.mxu0 0.0
      %2116 = vmatprep.subr.mxu0 0.0
      %2117 = vmatpush1.msra.mxu0 0.0
      %2118 = vmatprep.subr.mxu0 0.0
      %2119 = vmatpush1.msra.mxu0 %v2083
      %2120 = vmatprep.subr.mxu0 0.0
      %2121 = vmatpush2.msra.mxu0 0.0
      %2122 = vmatprep.subr.mxu0 0.0
      %2123 = vmatpush2.msra.mxu0 0.0
      %2124 = vmatprep.subr.mxu0 0.0
      %2125 = vmatpush2.msra.mxu0 0.0
      %2126 = vmatprep.subr.mxu0 0.0
      %2127 = vmatpush2.msra.mxu0 0.0
      %2128 = vmatprep.subr.mxu0 0.0
      %2129 = vmatpush2.msra.mxu0 0.0
      %2130 = vmatprep.subr.mxu0 0.0
      %2131 = vmatpush2.msra.mxu0 0.0
      %2132 = vmatprep.subr.mxu0 0.0
      %2133 = vmatpush2.msra.mxu0 0.0
      %2134 = vmatprep.subr.mxu0 0.0
      %2135 = vmatpush2.msra.mxu0 0.0
      %2136 = vmatprep.subr.mxu0 0.0
      %2137 = vmatpush2.msra.mxu0 0.0
      %2138 = vmatprep.subr.mxu0 0.0
      %2139 = vmatpush2.msra.mxu0 0.0
      %2140 = vmatprep.subr.mxu0 0.0
      %2141 = vmatpush2.msra.mxu0 0.0
      %2142 = vmatprep.subr.mxu0 0.0
      %2143 = vmatpush2.msra.mxu0 0.0
      %2144 = vmatprep.subr.mxu0 0.0
      %2145 = vmatpush2.msra.mxu0 0.0
      %2146 = vmatprep.subr.mxu0 0.0
      %2147 = vmatpush2.msra.mxu0 0.0
      %2148 = vmatprep.subr.mxu0 0.0
      %2149 = vmatpush2.msra.mxu0 0.0
      %2150 = vmatprep.subr.mxu0 0.0
      %2151 = vmatpush2.msra.mxu0 0.0
      %2152 = vmatprep.mubr.f32.mxu0 0.0
      %2153 = vmatmul.mubr.f32.gmra.mxu0 %v2086
      %v2154 = vpop.f32.mrf.mxu0
      %v2155 = vadd.f32 0.0, %v2154
      %v2156 = vpop.f32.mrf.mxu0
      %2157 = vdwg.mxu0
      %2158 = vrot.lane.b32.xlu0 %v819, 112
      %v2159 = vpop.permute.xlu0 %2158
      %2160 = vrot.lane.b32.xlu0 %v819, 80
      %v2161 = vpop.permute.xlu0 %2160
      %v2162 = vsel %vm844, %v2159, 0
      %v2164 = vsel %vm844, %v2161, 0
      %2166 = vmatprep.subr.mxu0 0.0
      %2167 = vmatpush1.xpose.msra.mxu0 0.0
      %2168 = vmatprep.subr.mxu0 0.0
      %2169 = vmatpush1.xpose.msra.mxu0 0.0
      %2170 = vmatprep.subr.mxu0 0.0
      %2171 = vmatpush1.xpose.msra.mxu0 0.0
      %2172 = vmatprep.subr.mxu0 0.0
      %2173 = vmatpush1.xpose.msra.mxu0 0.0
      %2174 = vmatprep.subr.mxu0 0.0
      %2175 = vmatpush1.xpose.msra.mxu0 0.0
      %2176 = vmatprep.subr.mxu0 0.0
      %2177 = vmatpush1.xpose.msra.mxu0 0.0
      %2178 = vmatprep.subr.mxu0 0.0
      %2179 = vmatpush1.xpose.msra.mxu0 0.0
      %2180 = vmatprep.subr.mxu0 0.0
      %2181 = vmatpush1.xpose.msra.mxu0 0.0
      %2182 = vmatprep.subr.mxu0 0.0
      %2183 = vmatpush1.xpose.msra.mxu0 0.0
      %2184 = vmatprep.subr.mxu0 0.0
      %2185 = vmatpush1.xpose.msra.mxu0 0.0
      %2186 = vmatprep.subr.mxu0 0.0
      %2187 = vmatpush1.xpose.msra.mxu0 0.0
      %2188 = vmatprep.subr.mxu0 0.0
      %2189 = vmatpush1.xpose.msra.mxu0 0.0
      %2190 = vmatprep.subr.mxu0 0.0
      %2191 = vmatpush1.xpose.msra.mxu0 0.0
      %2192 = vmatprep.subr.mxu0 0.0
      %2193 = vmatpush1.xpose.msra.mxu0 0.0
      %2194 = vmatprep.subr.mxu0 0.0
      %2195 = vmatpush1.xpose.msra.mxu0 0.0
      %2196 = vmatprep.subr.mxu0 0.0
      %2197 = vmatpush1.xpose.msra.mxu0 %v2164
      %2198 = vmatprep.subr.mxu0 0.0
      %2199 = vmatpush2.xpose.msra.mxu0 0.0
      %2200 = vmatprep.subr.mxu0 0.0
      %2201 = vmatpush2.xpose.msra.mxu0 0.0
      %2202 = vmatprep.subr.mxu0 0.0
      %2203 = vmatpush2.xpose.msra.mxu0 0.0
      %2204 = vmatprep.subr.mxu0 0.0
      %2205 = vmatpush2.xpose.msra.mxu0 0.0
      %2206 = vmatprep.subr.mxu0 0.0
      %2207 = vmatpush2.xpose.msra.mxu0 0.0
      %2208 = vmatprep.subr.mxu0 0.0
      %2209 = vmatpush2.xpose.msra.mxu0 0.0
      %2210 = vmatprep.subr.mxu0 0.0
      %2211 = vmatpush2.xpose.msra.mxu0 0.0
      %2212 = vmatprep.subr.mxu0 0.0
      %2213 = vmatpush2.xpose.msra.mxu0 0.0
      %2214 = vmatprep.subr.mxu0 0.0
      %2215 = vmatpush2.xpose.msra.mxu0 0.0
      %2216 = vmatprep.subr.mxu0 0.0
      %2217 = vmatpush2.xpose.msra.mxu0 0.0
      %2218 = vmatprep.subr.mxu0 0.0
      %2219 = vmatpush2.xpose.msra.mxu0 0.0
      %2220 = vmatprep.subr.mxu0 0.0
      %2221 = vmatpush2.xpose.msra.mxu0 0.0
      %2222 = vmatprep.subr.mxu0 0.0
      %2223 = vmatpush2.xpose.msra.mxu0 0.0
      %2224 = vmatprep.subr.mxu0 0.0
      %2225 = vmatpush2.xpose.msra.mxu0 0.0
      %2226 = vmatprep.subr.mxu0 0.0
      %2227 = vmatpush2.xpose.msra.mxu0 0.0
      %2228 = vmatprep.subr.mxu0 0.0
      %2229 = vmatpush2.xpose.msra.mxu0 0.0
      %2230 = vmatprep.mubr.f32.mxu0 0.0
      %2231 = vmatmul.mubr.f32.gmra.mxu0 %v2162
      %v2232 = vpop.f32.mrf.mxu0
      %v2233 = vadd.f32 %v840, %v2232
      %v2234 = vpop.f32.mrf.mxu0
      %2235 = vdwg.mxu0
      %2236 = vrot.lane.b32.xlu0 %v824, 112
      %v2237 = vpop.permute.xlu0 %2236
      %2238 = vrot.lane.b32.xlu0 %v824, 80
      %v2239 = vpop.permute.xlu0 %2238
      %v2240 = vsel %vm844, %v2237, 0
      %v2242 = vsel %vm844, %v2239, 0
      %2244 = vmatprep.subr.mxu0 0.0
      %2245 = vmatpush1.xpose.msra.mxu0 0.0
      %2246 = vmatprep.subr.mxu0 0.0
      %2247 = vmatpush1.xpose.msra.mxu0 0.0
      %2248 = vmatprep.subr.mxu0 0.0
      %2249 = vmatpush1.xpose.msra.mxu0 0.0
      %2250 = vmatprep.subr.mxu0 0.0
      %2251 = vmatpush1.xpose.msra.mxu0 0.0
      %2252 = vmatprep.subr.mxu0 0.0
      %2253 = vmatpush1.xpose.msra.mxu0 0.0
      %2254 = vmatprep.subr.mxu0 0.0
      %2255 = vmatpush1.xpose.msra.mxu0 0.0
      %2256 = vmatprep.subr.mxu0 0.0
      %2257 = vmatpush1.xpose.msra.mxu0 0.0
      %2258 = vmatprep.subr.mxu0 0.0
      %2259 = vmatpush1.xpose.msra.mxu0 0.0
      %2260 = vmatprep.subr.mxu0 0.0
      %2261 = vmatpush1.xpose.msra.mxu0 0.0
      %2262 = vmatprep.subr.mxu0 0.0
      %2263 = vmatpush1.xpose.msra.mxu0 0.0
      %2264 = vmatprep.subr.mxu0 0.0
      %2265 = vmatpush1.xpose.msra.mxu0 0.0
      %2266 = vmatprep.subr.mxu0 0.0
      %2267 = vmatpush1.xpose.msra.mxu0 0.0
      %2268 = vmatprep.subr.mxu0 0.0
      %2269 = vmatpush1.xpose.msra.mxu0 0.0
      %2270 = vmatprep.subr.mxu0 0.0
      %2271 = vmatpush1.xpose.msra.mxu0 0.0
      %2272 = vmatprep.subr.mxu0 0.0
      %2273 = vmatpush1.xpose.msra.mxu0 0.0
      %2274 = vmatprep.subr.mxu0 0.0
      %2275 = vmatpush1.xpose.msra.mxu0 %v2242
      %2276 = vmatprep.subr.mxu0 0.0
      %2277 = vmatpush2.xpose.msra.mxu0 0.0
      %2278 = vmatprep.subr.mxu0 0.0
      %2279 = vmatpush2.xpose.msra.mxu0 0.0
      %2280 = vmatprep.subr.mxu0 0.0
      %2281 = vmatpush2.xpose.msra.mxu0 0.0
      %2282 = vmatprep.subr.mxu0 0.0
      %2283 = vmatpush2.xpose.msra.mxu0 0.0
      %2284 = vmatprep.subr.mxu0 0.0
      %2285 = vmatpush2.xpose.msra.mxu0 0.0
      %2286 = vmatprep.subr.mxu0 0.0
      %2287 = vmatpush2.xpose.msra.mxu0 0.0
      %2288 = vmatprep.subr.mxu0 0.0
      %2289 = vmatpush2.xpose.msra.mxu0 0.0
      %2290 = vmatprep.subr.mxu0 0.0
      %2291 = vmatpush2.xpose.msra.mxu0 0.0
      %2292 = vmatprep.subr.mxu0 0.0
      %2293 = vmatpush2.xpose.msra.mxu0 0.0
      %2294 = vmatprep.subr.mxu0 0.0
      %2295 = vmatpush2.xpose.msra.mxu0 0.0
      %2296 = vmatprep.subr.mxu0 0.0
      %2297 = vmatpush2.xpose.msra.mxu0 0.0
      %2298 = vmatprep.subr.mxu0 0.0
      %2299 = vmatpush2.xpose.msra.mxu0 0.0
      %2300 = vmatprep.subr.mxu0 0.0
      %2301 = vmatpush2.xpose.msra.mxu0 0.0
      %2302 = vmatprep.subr.mxu0 0.0
      %2303 = vmatpush2.xpose.msra.mxu0 0.0
      %2304 = vmatprep.subr.mxu0 0.0
      %2305 = vmatpush2.xpose.msra.mxu0 0.0
      %2306 = vmatprep.subr.mxu0 0.0
      %2307 = vmatpush2.xpose.msra.mxu0 0.0
      %2308 = vmatprep.mubr.f32.mxu0 0.0
      %2309 = vmatmul.mubr.f32.gmra.mxu0 %v2240
      %v2310 = vpop.f32.mrf.mxu0
      %v2311 = vadd.f32 %v840, %v2310
      %v2312 = vpop.f32.mrf.mxu0
      %2313 = vdwg.mxu0
      %2314 = vrot.lane.b32.xlu0 %v829, 112
      %v2315 = vpop.permute.xlu0 %2314
      %2316 = vrot.lane.b32.xlu0 %v829, 80
      %v2317 = vpop.permute.xlu0 %2316
      %v2318 = vsel %vm844, %v2315, 0
      %v2320 = vsel %vm844, %v2317, 0
      %2322 = vmatprep.subr.mxu0 0.0
      %2323 = vmatpush1.xpose.msra.mxu0 0.0
      %2324 = vmatprep.subr.mxu0 0.0
      %2325 = vmatpush1.xpose.msra.mxu0 0.0
      %2326 = vmatprep.subr.mxu0 0.0
      %2327 = vmatpush1.xpose.msra.mxu0 0.0
      %2328 = vmatprep.subr.mxu0 0.0
      %2329 = vmatpush1.xpose.msra.mxu0 0.0
      %2330 = vmatprep.subr.mxu0 0.0
      %2331 = vmatpush1.xpose.msra.mxu0 0.0
      %2332 = vmatprep.subr.mxu0 0.0
      %2333 = vmatpush1.xpose.msra.mxu0 0.0
      %2334 = vmatprep.subr.mxu0 0.0
      %2335 = vmatpush1.xpose.msra.mxu0 0.0
      %2336 = vmatprep.subr.mxu0 0.0
      %2337 = vmatpush1.xpose.msra.mxu0 0.0
      %2338 = vmatprep.subr.mxu0 0.0
      %2339 = vmatpush1.xpose.msra.mxu0 0.0
      %2340 = vmatprep.subr.mxu0 0.0
      %2341 = vmatpush1.xpose.msra.mxu0 0.0
      %2342 = vmatprep.subr.mxu0 0.0
      %2343 = vmatpush1.xpose.msra.mxu0 0.0
      %2344 = vmatprep.subr.mxu0 0.0
      %2345 = vmatpush1.xpose.msra.mxu0 0.0
      %2346 = vmatprep.subr.mxu0 0.0
      %2347 = vmatpush1.xpose.msra.mxu0 0.0
      %2348 = vmatprep.subr.mxu0 0.0
      %2349 = vmatpush1.xpose.msra.mxu0 0.0
      %2350 = vmatprep.subr.mxu0 0.0
      %2351 = vmatpush1.xpose.msra.mxu0 0.0
      %2352 = vmatprep.subr.mxu0 0.0
      %2353 = vmatpush1.xpose.msra.mxu0 %v2320
      %2354 = vmatprep.subr.mxu0 0.0
      %2355 = vmatpush2.xpose.msra.mxu0 0.0
      %2356 = vmatprep.subr.mxu0 0.0
      %2357 = vmatpush2.xpose.msra.mxu0 0.0
      %2358 = vmatprep.subr.mxu0 0.0
      %2359 = vmatpush2.xpose.msra.mxu0 0.0
      %2360 = vmatprep.subr.mxu0 0.0
      %2361 = vmatpush2.xpose.msra.mxu0 0.0
      %2362 = vmatprep.subr.mxu0 0.0
      %2363 = vmatpush2.xpose.msra.mxu0 0.0
      %2364 = vmatprep.subr.mxu0 0.0
      %2365 = vmatpush2.xpose.msra.mxu0 0.0
      %2366 = vmatprep.subr.mxu0 0.0
      %2367 = vmatpush2.xpose.msra.mxu0 0.0
      %2368 = vmatprep.subr.mxu0 0.0
      %2369 = vmatpush2.xpose.msra.mxu0 0.0
      %2370 = vmatprep.subr.mxu0 0.0
      %2371 = vmatpush2.xpose.msra.mxu0 0.0
      %2372 = vmatprep.subr.mxu0 0.0
      %2373 = vmatpush2.xpose.msra.mxu0 0.0
      %2374 = vmatprep.subr.mxu0 0.0
      %2375 = vmatpush2.xpose.msra.mxu0 0.0
      %2376 = vmatprep.subr.mxu0 0.0
      %2377 = vmatpush2.xpose.msra.mxu0 0.0
      %2378 = vmatprep.subr.mxu0 0.0
      %2379 = vmatpush2.xpose.msra.mxu0 0.0
      %2380 = vmatprep.subr.mxu0 0.0
      %2381 = vmatpush2.xpose.msra.mxu0 0.0
      %2382 = vmatprep.subr.mxu0 0.0
      %2383 = vmatpush2.xpose.msra.mxu0 0.0
      %2384 = vmatprep.subr.mxu0 0.0
      %2385 = vmatpush2.xpose.msra.mxu0 0.0
      %2386 = vmatprep.mubr.f32.mxu0 0.0
      %2387 = vmatmul.mubr.f32.gmra.mxu0 %v2318
      %v2388 = vpop.f32.mrf.mxu0
      %v2389 = vadd.f32 %v840, %v2388
      %v2390 = vpop.f32.mrf.mxu0
      %2391 = vdwg.mxu0
      %2392 = vrot.lane.b32.xlu0 %v834, 112
      %v2393 = vpop.permute.xlu0 %2392
      %2394 = vrot.lane.b32.xlu0 %v834, 80
      %v2395 = vpop.permute.xlu0 %2394
      %v2396 = vsel %vm844, %v2393, 0
      %v2398 = vsel %vm844, %v2395, 0
      %2400 = vmatprep.subr.mxu0 0.0
      %2401 = vmatpush1.xpose.msra.mxu0 0.0
      %2402 = vmatprep.subr.mxu0 0.0
      %2403 = vmatpush1.xpose.msra.mxu0 0.0
      %2404 = vmatprep.subr.mxu0 0.0
      %2405 = vmatpush1.xpose.msra.mxu0 0.0
      %2406 = vmatprep.subr.mxu0 0.0
      %2407 = vmatpush1.xpose.msra.mxu0 0.0
      %2408 = vmatprep.subr.mxu0 0.0
      %2409 = vmatpush1.xpose.msra.mxu0 0.0
      %2410 = vmatprep.subr.mxu0 0.0
      %2411 = vmatpush1.xpose.msra.mxu0 0.0
      %2412 = vmatprep.subr.mxu0 0.0
      %2413 = vmatpush1.xpose.msra.mxu0 0.0
      %2414 = vmatprep.subr.mxu0 0.0
      %2415 = vmatpush1.xpose.msra.mxu0 0.0
      %2416 = vmatprep.subr.mxu0 0.0
      %2417 = vmatpush1.xpose.msra.mxu0 0.0
      %2418 = vmatprep.subr.mxu0 0.0
      %2419 = vmatpush1.xpose.msra.mxu0 0.0
      %2420 = vmatprep.subr.mxu0 0.0
      %2421 = vmatpush1.xpose.msra.mxu0 0.0
      %2422 = vmatprep.subr.mxu0 0.0
      %2423 = vmatpush1.xpose.msra.mxu0 0.0
      %2424 = vmatprep.subr.mxu0 0.0
      %2425 = vmatpush1.xpose.msra.mxu0 0.0
      %2426 = vmatprep.subr.mxu0 0.0
      %2427 = vmatpush1.xpose.msra.mxu0 0.0
      %2428 = vmatprep.subr.mxu0 0.0
      %2429 = vmatpush1.xpose.msra.mxu0 0.0
      %2430 = vmatprep.subr.mxu0 0.0
      %2431 = vmatpush1.xpose.msra.mxu0 %v2398
      %2432 = vmatprep.subr.mxu0 0.0
      %2433 = vmatpush2.xpose.msra.mxu0 0.0
      %2434 = vmatprep.subr.mxu0 0.0
      %2435 = vmatpush2.xpose.msra.mxu0 0.0
      %2436 = vmatprep.subr.mxu0 0.0
      %2437 = vmatpush2.xpose.msra.mxu0 0.0
      %2438 = vmatprep.subr.mxu0 0.0
      %2439 = vmatpush2.xpose.msra.mxu0 0.0
      %2440 = vmatprep.subr.mxu0 0.0
      %2441 = vmatpush2.xpose.msra.mxu0 0.0
      %2442 = vmatprep.subr.mxu0 0.0
      %2443 = vmatpush2.xpose.msra.mxu0 0.0
      %2444 = vmatprep.subr.mxu0 0.0
      %2445 = vmatpush2.xpose.msra.mxu0 0.0
      %2446 = vmatprep.subr.mxu0 0.0
      %2447 = vmatpush2.xpose.msra.mxu0 0.0
      %2448 = vmatprep.subr.mxu0 0.0
      %2449 = vmatpush2.xpose.msra.mxu0 0.0
      %2450 = vmatprep.subr.mxu0 0.0
      %2451 = vmatpush2.xpose.msra.mxu0 0.0
      %2452 = vmatprep.subr.mxu0 0.0
      %2453 = vmatpush2.xpose.msra.mxu0 0.0
      %2454 = vmatprep.subr.mxu0 0.0
      %2455 = vmatpush2.xpose.msra.mxu0 0.0
      %2456 = vmatprep.subr.mxu0 0.0
      %2457 = vmatpush2.xpose.msra.mxu0 0.0
      %2458 = vmatprep.subr.mxu0 0.0
      %2459 = vmatpush2.xpose.msra.mxu0 0.0
      %2460 = vmatprep.subr.mxu0 0.0
      %2461 = vmatpush2.xpose.msra.mxu0 0.0
      %2462 = vmatprep.subr.mxu0 0.0
      %2463 = vmatpush2.xpose.msra.mxu0 0.0
      %2464 = vmatprep.mubr.f32.mxu0 0.0
      %2465 = vmatmul.mubr.f32.gmra.mxu0 %v2396
      %v2466 = vpop.f32.mrf.mxu0
      %v2467 = vadd.f32 %v840, %v2466
      %v2468 = vpop.f32.mrf.mxu0
      %2469 = vdwg.mxu0
      %v2470 = vsel %vm844, %v2233, -inf
      %2471 = vmax.xlane.f32.xlu0 %v2470
      %v2472 = vpop.xlane.xlu0 %2471
      %v2473 = vsel %vm844, %v2311, -inf
      %2474 = vmax.xlane.f32.xlu0 %v2473
      %v2475 = vpop.xlane.xlu0 %2474
      %v2476 = vsel %vm844, %v2389, -inf
      %2477 = vmax.xlane.f32.xlu0 %v2476
      %v2478 = vpop.xlane.xlu0 %2477
      %v2479 = vsel %vm844, %v2467, -inf
      %2480 = vmax.xlane.f32.xlu0 %v2479
      %v2481 = vpop.xlane.xlu0 %2480
      %v2482 = vsub.f32 %v2233, %v2472
      %v2483 = vsub.f32 %v2311, %v2475
      %v2484 = vsub.f32 %v2389, %v2478
      %v2485 = vsub.f32 %v2467, %v2481
      %v2486 = vmul.f32 %v2482, 1.442695
      %v2487 = vpow.pop %v2486
      %v2488 = vmul.f32 %v2483, 1.442695
      %v2489 = vpow.pop %v2488
      %v2490 = vmul.f32 %v2484, 1.442695
      %v2491 = vpow.pop %v2490
      %v2492 = vmul.f32 %v2485, 1.442695
      %v2493 = vpow.pop %v2492
      %v2494 = vsel %vm844, %v2487, 0.0
      %2495 = vadd.xlane.f32.xlu0 %v2494
      %v2496 = vpop.xlane.xlu0 %2495
      %v2497 = vsel %vm844, %v2489, 0.0
      %2498 = vadd.xlane.f32.xlu0 %v2497
      %v2499 = vpop.xlane.xlu0 %2498
      %v2500 = vsel %vm844, %v2491, 0.0
      %2501 = vadd.xlane.f32.xlu0 %v2500
      %v2502 = vpop.xlane.xlu0 %2501
      %v2503 = vsel %vm844, %v2493, 0.0
      %2504 = vadd.xlane.f32.xlu0 %v2503
      %v2505 = vpop.xlane.xlu0 %2504
      %v2506 = vrcp.pop %v2496
      %v2507 = vrcp.pop %v2499
      %v2508 = vrcp.pop %v2502
      %v2509 = vrcp.pop %v2505
      %v2510 = vmul.f32 %v2487, %v2506
      %v2511 = vmul.f32 %v2489, %v2507
      %v2512 = vmul.f32 %v2491, %v2508
      %v2513 = vmul.f32 %v2493, %v2509
      %2514 = vrot.lane.b32.xlu0 %v819, 48
      %v2515 = vpop.permute.xlu0 %2514
      %v2518 = vsel %vm844, %v2510, 0
      %2520 = vmatprep.subr.mxu0 0.0
      %2521 = vmatpush1.msra.mxu0 0.0
      %2522 = vmatprep.subr.mxu0 0.0
      %2523 = vmatpush1.msra.mxu0 0.0
      %2524 = vmatprep.subr.mxu0 0.0
      %2525 = vmatpush1.msra.mxu0 0.0
      %2526 = vmatprep.subr.mxu0 0.0
      %2527 = vmatpush1.msra.mxu0 0.0
      %2528 = vmatprep.subr.mxu0 0.0
      %2529 = vmatpush1.msra.mxu0 0.0
      %2530 = vmatprep.subr.mxu0 0.0
      %2531 = vmatpush1.msra.mxu0 0.0
      %2532 = vmatprep.subr.mxu0 0.0
      %2533 = vmatpush1.msra.mxu0 0.0
      %2534 = vmatprep.subr.mxu0 0.0
      %2535 = vmatpush1.msra.mxu0 0.0
      %2536 = vmatprep.subr.mxu0 0.0
      %2537 = vmatpush1.msra.mxu0 0.0
      %2538 = vmatprep.subr.mxu0 0.0
      %2539 = vmatpush1.msra.mxu0 0.0
      %2540 = vmatprep.subr.mxu0 0.0
      %2541 = vmatpush1.msra.mxu0 0.0
      %2542 = vmatprep.subr.mxu0 0.0
      %2543 = vmatpush1.msra.mxu0 0.0
      %2544 = vmatprep.subr.mxu0 0.0
      %2545 = vmatpush1.msra.mxu0 0.0
      %2546 = vmatprep.subr.mxu0 0.0
      %2547 = vmatpush1.msra.mxu0 0.0
      %2548 = vmatprep.subr.mxu0 0.0
      %2549 = vmatpush1.msra.mxu0 0.0
      %2550 = vmatprep.subr.mxu0 0.0
      %2551 = vmatpush1.msra.mxu0 %v2515
      %2552 = vmatprep.subr.mxu0 0.0
      %2553 = vmatpush2.msra.mxu0 0.0
      %2554 = vmatprep.subr.mxu0 0.0
      %2555 = vmatpush2.msra.mxu0 0.0
      %2556 = vmatprep.subr.mxu0 0.0
      %2557 = vmatpush2.msra.mxu0 0.0
      %2558 = vmatprep.subr.mxu0 0.0
      %2559 = vmatpush2.msra.mxu0 0.0
      %2560 = vmatprep.subr.mxu0 0.0
      %2561 = vmatpush2.msra.mxu0 0.0
      %2562 = vmatprep.subr.mxu0 0.0
      %2563 = vmatpush2.msra.mxu0 0.0
      %2564 = vmatprep.subr.mxu0 0.0
      %2565 = vmatpush2.msra.mxu0 0.0
      %2566 = vmatprep.subr.mxu0 0.0
      %2567 = vmatpush2.msra.mxu0 0.0
      %2568 = vmatprep.subr.mxu0 0.0
      %2569 = vmatpush2.msra.mxu0 0.0
      %2570 = vmatprep.subr.mxu0 0.0
      %2571 = vmatpush2.msra.mxu0 0.0
      %2572 = vmatprep.subr.mxu0 0.0
      %2573 = vmatpush2.msra.mxu0 0.0
      %2574 = vmatprep.subr.mxu0 0.0
      %2575 = vmatpush2.msra.mxu0 0.0
      %2576 = vmatprep.subr.mxu0 0.0
      %2577 = vmatpush2.msra.mxu0 0.0
      %2578 = vmatprep.subr.mxu0 0.0
      %2579 = vmatpush2.msra.mxu0 0.0
      %2580 = vmatprep.subr.mxu0 0.0
      %2581 = vmatpush2.msra.mxu0 0.0
      %2582 = vmatprep.subr.mxu0 0.0
      %2583 = vmatpush2.msra.mxu0 0.0
      %2584 = vmatprep.mubr.f32.mxu0 0.0
      %2585 = vmatmul.mubr.f32.gmra.mxu0 %v2518
      %v2586 = vpop.f32.mrf.mxu0
      %v2587 = vadd.f32 0.0, %v2586
      %v2588 = vpop.f32.mrf.mxu0
      %2589 = vdwg.mxu0
      %2590 = vrot.lane.b32.xlu0 %v824, 48
      %v2591 = vpop.permute.xlu0 %2590
      %v2594 = vsel %vm844, %v2511, 0
      %2596 = vmatprep.subr.mxu0 0.0
      %2597 = vmatpush1.msra.mxu0 0.0
      %2598 = vmatprep.subr.mxu0 0.0
      %2599 = vmatpush1.msra.mxu0 0.0
      %2600 = vmatprep.subr.mxu0 0.0
      %2601 = vmatpush1.msra.mxu0 0.0
      %2602 = vmatprep.subr.mxu0 0.0
      %2603 = vmatpush1.msra.mxu0 0.0
      %2604 = vmatprep.subr.mxu0 0.0
      %2605 = vmatpush1.msra.mxu0 0.0
      %2606 = vmatprep.subr.mxu0 0.0
      %2607 = vmatpush1.msra.mxu0 0.0
      %2608 = vmatprep.subr.mxu0 0.0
      %2609 = vmatpush1.msra.mxu0 0.0
      %2610 = vmatprep.subr.mxu0 0.0
      %2611 = vmatpush1.msra.mxu0 0.0
      %2612 = vmatprep.subr.mxu0 0.0
      %2613 = vmatpush1.msra.mxu0 0.0
      %2614 = vmatprep.subr.mxu0 0.0
      %2615 = vmatpush1.msra.mxu0 0.0
      %2616 = vmatprep.subr.mxu0 0.0
      %2617 = vmatpush1.msra.mxu0 0.0
      %2618 = vmatprep.subr.mxu0 0.0
      %2619 = vmatpush1.msra.mxu0 0.0
      %2620 = vmatprep.subr.mxu0 0.0
      %2621 = vmatpush1.msra.mxu0 0.0
      %2622 = vmatprep.subr.mxu0 0.0
      %2623 = vmatpush1.msra.mxu0 0.0
      %2624 = vmatprep.subr.mxu0 0.0
      %2625 = vmatpush1.msra.mxu0 0.0
      %2626 = vmatprep.subr.mxu0 0.0
      %2627 = vmatpush1.msra.mxu0 %v2591
      %2628 = vmatprep.subr.mxu0 0.0
      %2629 = vmatpush2.msra.mxu0 0.0
      %2630 = vmatprep.subr.mxu0 0.0
      %2631 = vmatpush2.msra.mxu0 0.0
      %2632 = vmatprep.subr.mxu0 0.0
      %2633 = vmatpush2.msra.mxu0 0.0
      %2634 = vmatprep.subr.mxu0 0.0
      %2635 = vmatpush2.msra.mxu0 0.0
      %2636 = vmatprep.subr.mxu0 0.0
      %2637 = vmatpush2.msra.mxu0 0.0
      %2638 = vmatprep.subr.mxu0 0.0
      %2639 = vmatpush2.msra.mxu0 0.0
      %2640 = vmatprep.subr.mxu0 0.0
      %2641 = vmatpush2.msra.mxu0 0.0
      %2642 = vmatprep.subr.mxu0 0.0
      %2643 = vmatpush2.msra.mxu0 0.0
      %2644 = vmatprep.subr.mxu0 0.0
      %2645 = vmatpush2.msra.mxu0 0.0
      %2646 = vmatprep.subr.mxu0 0.0
      %2647 = vmatpush2.msra.mxu0 0.0
      %2648 = vmatprep.subr.mxu0 0.0
      %2649 = vmatpush2.msra.mxu0 0.0
      %2650 = vmatprep.subr.mxu0 0.0
      %2651 = vmatpush2.msra.mxu0 0.0
      %2652 = vmatprep.subr.mxu0 0.0
      %2653 = vmatpush2.msra.mxu0 0.0
      %2654 = vmatprep.subr.mxu0 0.0
      %2655 = vmatpush2.msra.mxu0 0.0
      %2656 = vmatprep.subr.mxu0 0.0
      %2657 = vmatpush2.msra.mxu0 0.0
      %2658 = vmatprep.subr.mxu0 0.0
      %2659 = vmatpush2.msra.mxu0 0.0
      %2660 = vmatprep.mubr.f32.mxu0 0.0
      %2661 = vmatmul.mubr.f32.gmra.mxu0 %v2594
      %v2662 = vpop.f32.mrf.mxu0
      %v2663 = vadd.f32 0.0, %v2662
      %v2664 = vpop.f32.mrf.mxu0
      %2665 = vdwg.mxu0
      %2666 = vrot.lane.b32.xlu0 %v829, 48
      %v2667 = vpop.permute.xlu0 %2666
      %v2670 = vsel %vm844, %v2512, 0
      %2672 = vmatprep.subr.mxu0 0.0
      %2673 = vmatpush1.msra.mxu0 0.0
      %2674 = vmatprep.subr.mxu0 0.0
      %2675 = vmatpush1.msra.mxu0 0.0
      %2676 = vmatprep.subr.mxu0 0.0
      %2677 = vmatpush1.msra.mxu0 0.0
      %2678 = vmatprep.subr.mxu0 0.0
      %2679 = vmatpush1.msra.mxu0 0.0
      %2680 = vmatprep.subr.mxu0 0.0
      %2681 = vmatpush1.msra.mxu0 0.0
      %2682 = vmatprep.subr.mxu0 0.0
      %2683 = vmatpush1.msra.mxu0 0.0
      %2684 = vmatprep.subr.mxu0 0.0
      %2685 = vmatpush1.msra.mxu0 0.0
      %2686 = vmatprep.subr.mxu0 0.0
      %2687 = vmatpush1.msra.mxu0 0.0
      %2688 = vmatprep.subr.mxu0 0.0
      %2689 = vmatpush1.msra.mxu0 0.0
      %2690 = vmatprep.subr.mxu0 0.0
      %2691 = vmatpush1.msra.mxu0 0.0
      %2692 = vmatprep.subr.mxu0 0.0
      %2693 = vmatpush1.msra.mxu0 0.0
      %2694 = vmatprep.subr.mxu0 0.0
      %2695 = vmatpush1.msra.mxu0 0.0
      %2696 = vmatprep.subr.mxu0 0.0
      %2697 = vmatpush1.msra.mxu0 0.0
      %2698 = vmatprep.subr.mxu0 0.0
      %2699 = vmatpush1.msra.mxu0 0.0
      %2700 = vmatprep.subr.mxu0 0.0
      %2701 = vmatpush1.msra.mxu0 0.0
      %2702 = vmatprep.subr.mxu0 0.0
      %2703 = vmatpush1.msra.mxu0 %v2667
      %2704 = vmatprep.subr.mxu0 0.0
      %2705 = vmatpush2.msra.mxu0 0.0
      %2706 = vmatprep.subr.mxu0 0.0
      %2707 = vmatpush2.msra.mxu0 0.0
      %2708 = vmatprep.subr.mxu0 0.0
      %2709 = vmatpush2.msra.mxu0 0.0
      %2710 = vmatprep.subr.mxu0 0.0
      %2711 = vmatpush2.msra.mxu0 0.0
      %2712 = vmatprep.subr.mxu0 0.0
      %2713 = vmatpush2.msra.mxu0 0.0
      %2714 = vmatprep.subr.mxu0 0.0
      %2715 = vmatpush2.msra.mxu0 0.0
      %2716 = vmatprep.subr.mxu0 0.0
      %2717 = vmatpush2.msra.mxu0 0.0
      %2718 = vmatprep.subr.mxu0 0.0
      %2719 = vmatpush2.msra.mxu0 0.0
      %2720 = vmatprep.subr.mxu0 0.0
      %2721 = vmatpush2.msra.mxu0 0.0
      %2722 = vmatprep.subr.mxu0 0.0
      %2723 = vmatpush2.msra.mxu0 0.0
      %2724 = vmatprep.subr.mxu0 0.0
      %2725 = vmatpush2.msra.mxu0 0.0
      %2726 = vmatprep.subr.mxu0 0.0
      %2727 = vmatpush2.msra.mxu0 0.0
      %2728 = vmatprep.subr.mxu0 0.0
      %2729 = vmatpush2.msra.mxu0 0.0
      %2730 = vmatprep.subr.mxu0 0.0
      %2731 = vmatpush2.msra.mxu0 0.0
      %2732 = vmatprep.subr.mxu0 0.0
      %2733 = vmatpush2.msra.mxu0 0.0
      %2734 = vmatprep.subr.mxu0 0.0
      %2735 = vmatpush2.msra.mxu0 0.0
      %2736 = vmatprep.mubr.f32.mxu0 0.0
      %2737 = vmatmul.mubr.f32.gmra.mxu0 %v2670
      %v2738 = vpop.f32.mrf.mxu0
      %v2739 = vadd.f32 0.0, %v2738
      %v2740 = vpop.f32.mrf.mxu0
      %2741 = vdwg.mxu0
      %2742 = vrot.lane.b32.xlu0 %v834, 48
      %v2743 = vpop.permute.xlu0 %2742
      %v2746 = vsel %vm844, %v2513, 0
      %2748 = vmatprep.subr.mxu0 0.0
      %2749 = vmatpush1.msra.mxu0 0.0
      %2750 = vmatprep.subr.mxu0 0.0
      %2751 = vmatpush1.msra.mxu0 0.0
      %2752 = vmatprep.subr.mxu0 0.0
      %2753 = vmatpush1.msra.mxu0 0.0
      %2754 = vmatprep.subr.mxu0 0.0
      %2755 = vmatpush1.msra.mxu0 0.0
      %2756 = vmatprep.subr.mxu0 0.0
      %2757 = vmatpush1.msra.mxu0 0.0
      %2758 = vmatprep.subr.mxu0 0.0
      %2759 = vmatpush1.msra.mxu0 0.0
      %2760 = vmatprep.subr.mxu0 0.0
      %2761 = vmatpush1.msra.mxu0 0.0
      %2762 = vmatprep.subr.mxu0 0.0
      %2763 = vmatpush1.msra.mxu0 0.0
      %2764 = vmatprep.subr.mxu0 0.0
      %2765 = vmatpush1.msra.mxu0 0.0
      %2766 = vmatprep.subr.mxu0 0.0
      %2767 = vmatpush1.msra.mxu0 0.0
      %2768 = vmatprep.subr.mxu0 0.0
      %2769 = vmatpush1.msra.mxu0 0.0
      %2770 = vmatprep.subr.mxu0 0.0
      %2771 = vmatpush1.msra.mxu0 0.0
      %2772 = vmatprep.subr.mxu0 0.0
      %2773 = vmatpush1.msra.mxu0 0.0
      %2774 = vmatprep.subr.mxu0 0.0
      %2775 = vmatpush1.msra.mxu0 0.0
      %2776 = vmatprep.subr.mxu0 0.0
      %2777 = vmatpush1.msra.mxu0 0.0
      %2778 = vmatprep.subr.mxu0 0.0
      %2779 = vmatpush1.msra.mxu0 %v2743
      %2780 = vmatprep.subr.mxu0 0.0
      %2781 = vmatpush2.msra.mxu0 0.0
      %2782 = vmatprep.subr.mxu0 0.0
      %2783 = vmatpush2.msra.mxu0 0.0
      %2784 = vmatprep.subr.mxu0 0.0
      %2785 = vmatpush2.msra.mxu0 0.0
      %2786 = vmatprep.subr.mxu0 0.0
      %2787 = vmatpush2.msra.mxu0 0.0
      %2788 = vmatprep.subr.mxu0 0.0
      %2789 = vmatpush2.msra.mxu0 0.0
      %2790 = vmatprep.subr.mxu0 0.0
      %2791 = vmatpush2.msra.mxu0 0.0
      %2792 = vmatprep.subr.mxu0 0.0
      %2793 = vmatpush2.msra.mxu0 0.0
      %2794 = vmatprep.subr.mxu0 0.0
      %2795 = vmatpush2.msra.mxu0 0.0
      %2796 = vmatprep.subr.mxu0 0.0
      %2797 = vmatpush2.msra.mxu0 0.0
      %2798 = vmatprep.subr.mxu0 0.0
      %2799 = vmatpush2.msra.mxu0 0.0
      %2800 = vmatprep.subr.mxu0 0.0
      %2801 = vmatpush2.msra.mxu0 0.0
      %2802 = vmatprep.subr.mxu0 0.0
      %2803 = vmatpush2.msra.mxu0 0.0
      %2804 = vmatprep.subr.mxu0 0.0
      %2805 = vmatpush2.msra.mxu0 0.0
      %2806 = vmatprep.subr.mxu0 0.0
      %2807 = vmatpush2.msra.mxu0 0.0
      %2808 = vmatprep.subr.mxu0 0.0
      %2809 = vmatpush2.msra.mxu0 0.0
      %2810 = vmatprep.subr.mxu0 0.0
      %2811 = vmatpush2.msra.mxu0 0.0
      %2812 = vmatprep.mubr.f32.mxu0 0.0
      %2813 = vmatmul.mubr.f32.gmra.mxu0 %v2746
      %v2814 = vpop.f32.mrf.mxu0
      %v2815 = vadd.f32 0.0, %v2814
      %v2816 = vpop.f32.mrf.mxu0
      %2817 = vdwg.mxu0
      %2818 = vrot.lane.b32.xlu0 %v819, 104
      %v2819 = vpop.permute.xlu0 %2818
      %2820 = vrot.lane.b32.xlu0 %v819, 72
      %v2821 = vpop.permute.xlu0 %2820
      %v2822 = vsel %vm844, %v2819, 0
      %v2824 = vsel %vm844, %v2821, 0
      %2826 = vmatprep.subr.mxu0 0.0
      %2827 = vmatpush1.xpose.msra.mxu0 0.0
      %2828 = vmatprep.subr.mxu0 0.0
      %2829 = vmatpush1.xpose.msra.mxu0 0.0
      %2830 = vmatprep.subr.mxu0 0.0
      %2831 = vmatpush1.xpose.msra.mxu0 0.0
      %2832 = vmatprep.subr.mxu0 0.0
      %2833 = vmatpush1.xpose.msra.mxu0 0.0
      %2834 = vmatprep.subr.mxu0 0.0
      %2835 = vmatpush1.xpose.msra.mxu0 0.0
      %2836 = vmatprep.subr.mxu0 0.0
      %2837 = vmatpush1.xpose.msra.mxu0 0.0
      %2838 = vmatprep.subr.mxu0 0.0
      %2839 = vmatpush1.xpose.msra.mxu0 0.0
      %2840 = vmatprep.subr.mxu0 0.0
      %2841 = vmatpush1.xpose.msra.mxu0 0.0
      %2842 = vmatprep.subr.mxu0 0.0
      %2843 = vmatpush1.xpose.msra.mxu0 0.0
      %2844 = vmatprep.subr.mxu0 0.0
      %2845 = vmatpush1.xpose.msra.mxu0 0.0
      %2846 = vmatprep.subr.mxu0 0.0
      %2847 = vmatpush1.xpose.msra.mxu0 0.0
      %2848 = vmatprep.subr.mxu0 0.0
      %2849 = vmatpush1.xpose.msra.mxu0 0.0
      %2850 = vmatprep.subr.mxu0 0.0
      %2851 = vmatpush1.xpose.msra.mxu0 0.0
      %2852 = vmatprep.subr.mxu0 0.0
      %2853 = vmatpush1.xpose.msra.mxu0 0.0
      %2854 = vmatprep.subr.mxu0 0.0
      %2855 = vmatpush1.xpose.msra.mxu0 0.0
      %2856 = vmatprep.subr.mxu0 0.0
      %2857 = vmatpush1.xpose.msra.mxu0 %v2824
      %2858 = vmatprep.subr.mxu0 0.0
      %2859 = vmatpush2.xpose.msra.mxu0 0.0
      %2860 = vmatprep.subr.mxu0 0.0
      %2861 = vmatpush2.xpose.msra.mxu0 0.0
      %2862 = vmatprep.subr.mxu0 0.0
      %2863 = vmatpush2.xpose.msra.mxu0 0.0
      %2864 = vmatprep.subr.mxu0 0.0
      %2865 = vmatpush2.xpose.msra.mxu0 0.0
      %2866 = vmatprep.subr.mxu0 0.0
      %2867 = vmatpush2.xpose.msra.mxu0 0.0
      %2868 = vmatprep.subr.mxu0 0.0
      %2869 = vmatpush2.xpose.msra.mxu0 0.0
      %2870 = vmatprep.subr.mxu0 0.0
      %2871 = vmatpush2.xpose.msra.mxu0 0.0
      %2872 = vmatprep.subr.mxu0 0.0
      %2873 = vmatpush2.xpose.msra.mxu0 0.0
      %2874 = vmatprep.subr.mxu0 0.0
      %2875 = vmatpush2.xpose.msra.mxu0 0.0
      %2876 = vmatprep.subr.mxu0 0.0
      %2877 = vmatpush2.xpose.msra.mxu0 0.0
      %2878 = vmatprep.subr.mxu0 0.0
      %2879 = vmatpush2.xpose.msra.mxu0 0.0
      %2880 = vmatprep.subr.mxu0 0.0
      %2881 = vmatpush2.xpose.msra.mxu0 0.0
      %2882 = vmatprep.subr.mxu0 0.0
      %2883 = vmatpush2.xpose.msra.mxu0 0.0
      %2884 = vmatprep.subr.mxu0 0.0
      %2885 = vmatpush2.xpose.msra.mxu0 0.0
      %2886 = vmatprep.subr.mxu0 0.0
      %2887 = vmatpush2.xpose.msra.mxu0 0.0
      %2888 = vmatprep.subr.mxu0 0.0
      %2889 = vmatpush2.xpose.msra.mxu0 0.0
      %2890 = vmatprep.mubr.f32.mxu0 0.0
      %2891 = vmatmul.mubr.f32.gmra.mxu0 %v2822
      %v2892 = vpop.f32.mrf.mxu0
      %v2893 = vadd.f32 %v840, %v2892
      %v2894 = vpop.f32.mrf.mxu0
      %2895 = vdwg.mxu0
      %2896 = vrot.lane.b32.xlu0 %v824, 104
      %v2897 = vpop.permute.xlu0 %2896
      %2898 = vrot.lane.b32.xlu0 %v824, 72
      %v2899 = vpop.permute.xlu0 %2898
      %v2900 = vsel %vm844, %v2897, 0
      %v2902 = vsel %vm844, %v2899, 0
      %2904 = vmatprep.subr.mxu0 0.0
      %2905 = vmatpush1.xpose.msra.mxu0 0.0
      %2906 = vmatprep.subr.mxu0 0.0
      %2907 = vmatpush1.xpose.msra.mxu0 0.0
      %2908 = vmatprep.subr.mxu0 0.0
      %2909 = vmatpush1.xpose.msra.mxu0 0.0
      %2910 = vmatprep.subr.mxu0 0.0
      %2911 = vmatpush1.xpose.msra.mxu0 0.0
      %2912 = vmatprep.subr.mxu0 0.0
      %2913 = vmatpush1.xpose.msra.mxu0 0.0
      %2914 = vmatprep.subr.mxu0 0.0
      %2915 = vmatpush1.xpose.msra.mxu0 0.0
      %2916 = vmatprep.subr.mxu0 0.0
      %2917 = vmatpush1.xpose.msra.mxu0 0.0
      %2918 = vmatprep.subr.mxu0 0.0
      %2919 = vmatpush1.xpose.msra.mxu0 0.0
      %2920 = vmatprep.subr.mxu0 0.0
      %2921 = vmatpush1.xpose.msra.mxu0 0.0
      %2922 = vmatprep.subr.mxu0 0.0
      %2923 = vmatpush1.xpose.msra.mxu0 0.0
      %2924 = vmatprep.subr.mxu0 0.0
      %2925 = vmatpush1.xpose.msra.mxu0 0.0
      %2926 = vmatprep.subr.mxu0 0.0
      %2927 = vmatpush1.xpose.msra.mxu0 0.0
      %2928 = vmatprep.subr.mxu0 0.0
      %2929 = vmatpush1.xpose.msra.mxu0 0.0
      %2930 = vmatprep.subr.mxu0 0.0
      %2931 = vmatpush1.xpose.msra.mxu0 0.0
      %2932 = vmatprep.subr.mxu0 0.0
      %2933 = vmatpush1.xpose.msra.mxu0 0.0
      %2934 = vmatprep.subr.mxu0 0.0
      %2935 = vmatpush1.xpose.msra.mxu0 %v2902
      %2936 = vmatprep.subr.mxu0 0.0
      %2937 = vmatpush2.xpose.msra.mxu0 0.0
      %2938 = vmatprep.subr.mxu0 0.0
      %2939 = vmatpush2.xpose.msra.mxu0 0.0
      %2940 = vmatprep.subr.mxu0 0.0
      %2941 = vmatpush2.xpose.msra.mxu0 0.0
      %2942 = vmatprep.subr.mxu0 0.0
      %2943 = vmatpush2.xpose.msra.mxu0 0.0
      %2944 = vmatprep.subr.mxu0 0.0
      %2945 = vmatpush2.xpose.msra.mxu0 0.0
      %2946 = vmatprep.subr.mxu0 0.0
      %2947 = vmatpush2.xpose.msra.mxu0 0.0
      %2948 = vmatprep.subr.mxu0 0.0
      %2949 = vmatpush2.xpose.msra.mxu0 0.0
      %2950 = vmatprep.subr.mxu0 0.0
      %2951 = vmatpush2.xpose.msra.mxu0 0.0
      %2952 = vmatprep.subr.mxu0 0.0
      %2953 = vmatpush2.xpose.msra.mxu0 0.0
      %2954 = vmatprep.subr.mxu0 0.0
      %2955 = vmatpush2.xpose.msra.mxu0 0.0
      %2956 = vmatprep.subr.mxu0 0.0
      %2957 = vmatpush2.xpose.msra.mxu0 0.0
      %2958 = vmatprep.subr.mxu0 0.0
      %2959 = vmatpush2.xpose.msra.mxu0 0.0
      %2960 = vmatprep.subr.mxu0 0.0
      %2961 = vmatpush2.xpose.msra.mxu0 0.0
      %2962 = vmatprep.subr.mxu0 0.0
      %2963 = vmatpush2.xpose.msra.mxu0 0.0
      %2964 = vmatprep.subr.mxu0 0.0
      %2965 = vmatpush2.xpose.msra.mxu0 0.0
      %2966 = vmatprep.subr.mxu0 0.0
      %2967 = vmatpush2.xpose.msra.mxu0 0.0
      %2968 = vmatprep.mubr.f32.mxu0 0.0
      %2969 = vmatmul.mubr.f32.gmra.mxu0 %v2900
      %v2970 = vpop.f32.mrf.mxu0
      %v2971 = vadd.f32 %v840, %v2970
      %v2972 = vpop.f32.mrf.mxu0
      %2973 = vdwg.mxu0
      %2974 = vrot.lane.b32.xlu0 %v829, 104
      %v2975 = vpop.permute.xlu0 %2974
      %2976 = vrot.lane.b32.xlu0 %v829, 72
      %v2977 = vpop.permute.xlu0 %2976
      %v2978 = vsel %vm844, %v2975, 0
      %v2980 = vsel %vm844, %v2977, 0
      %2982 = vmatprep.subr.mxu0 0.0
      %2983 = vmatpush1.xpose.msra.mxu0 0.0
      %2984 = vmatprep.subr.mxu0 0.0
      %2985 = vmatpush1.xpose.msra.mxu0 0.0
      %2986 = vmatprep.subr.mxu0 0.0
      %2987 = vmatpush1.xpose.msra.mxu0 0.0
      %2988 = vmatprep.subr.mxu0 0.0
      %2989 = vmatpush1.xpose.msra.mxu0 0.0
      %2990 = vmatprep.subr.mxu0 0.0
      %2991 = vmatpush1.xpose.msra.mxu0 0.0
      %2992 = vmatprep.subr.mxu0 0.0
      %2993 = vmatpush1.xpose.msra.mxu0 0.0
      %2994 = vmatprep.subr.mxu0 0.0
      %2995 = vmatpush1.xpose.msra.mxu0 0.0
      %2996 = vmatprep.subr.mxu0 0.0
      %2997 = vmatpush1.xpose.msra.mxu0 0.0
      %2998 = vmatprep.subr.mxu0 0.0
      %2999 = vmatpush1.xpose.msra.mxu0 0.0
      %3000 = vmatprep.subr.mxu0 0.0
      %3001 = vmatpush1.xpose.msra.mxu0 0.0
      %3002 = vmatprep.subr.mxu0 0.0
      %3003 = vmatpush1.xpose.msra.mxu0 0.0
      %3004 = vmatprep.subr.mxu0 0.0
      %3005 = vmatpush1.xpose.msra.mxu0 0.0
      %3006 = vmatprep.subr.mxu0 0.0
      %3007 = vmatpush1.xpose.msra.mxu0 0.0
      %3008 = vmatprep.subr.mxu0 0.0
      %3009 = vmatpush1.xpose.msra.mxu0 0.0
      %3010 = vmatprep.subr.mxu0 0.0
      %3011 = vmatpush1.xpose.msra.mxu0 0.0
      %3012 = vmatprep.subr.mxu0 0.0
      %3013 = vmatpush1.xpose.msra.mxu0 %v2980
      %3014 = vmatprep.subr.mxu0 0.0
      %3015 = vmatpush2.xpose.msra.mxu0 0.0
      %3016 = vmatprep.subr.mxu0 0.0
      %3017 = vmatpush2.xpose.msra.mxu0 0.0
      %3018 = vmatprep.subr.mxu0 0.0
      %3019 = vmatpush2.xpose.msra.mxu0 0.0
      %3020 = vmatprep.subr.mxu0 0.0
      %3021 = vmatpush2.xpose.msra.mxu0 0.0
      %3022 = vmatprep.subr.mxu0 0.0
      %3023 = vmatpush2.xpose.msra.mxu0 0.0
      %3024 = vmatprep.subr.mxu0 0.0
      %3025 = vmatpush2.xpose.msra.mxu0 0.0
      %3026 = vmatprep.subr.mxu0 0.0
      %3027 = vmatpush2.xpose.msra.mxu0 0.0
      %3028 = vmatprep.subr.mxu0 0.0
      %3029 = vmatpush2.xpose.msra.mxu0 0.0
      %3030 = vmatprep.subr.mxu0 0.0
      %3031 = vmatpush2.xpose.msra.mxu0 0.0
      %3032 = vmatprep.subr.mxu0 0.0
      %3033 = vmatpush2.xpose.msra.mxu0 0.0
      %3034 = vmatprep.subr.mxu0 0.0
      %3035 = vmatpush2.xpose.msra.mxu0 0.0
      %3036 = vmatprep.subr.mxu0 0.0
      %3037 = vmatpush2.xpose.msra.mxu0 0.0
      %3038 = vmatprep.subr.mxu0 0.0
      %3039 = vmatpush2.xpose.msra.mxu0 0.0
      %3040 = vmatprep.subr.mxu0 0.0
      %3041 = vmatpush2.xpose.msra.mxu0 0.0
      %3042 = vmatprep.subr.mxu0 0.0
      %3043 = vmatpush2.xpose.msra.mxu0 0.0
      %3044 = vmatprep.subr.mxu0 0.0
      %3045 = vmatpush2.xpose.msra.mxu0 0.0
      %3046 = vmatprep.mubr.f32.mxu0 0.0
      %3047 = vmatmul.mubr.f32.gmra.mxu0 %v2978
      %v3048 = vpop.f32.mrf.mxu0
      %v3049 = vadd.f32 %v840, %v3048
      %v3050 = vpop.f32.mrf.mxu0
      %3051 = vdwg.mxu0
      %3052 = vrot.lane.b32.xlu0 %v834, 104
      %v3053 = vpop.permute.xlu0 %3052
      %3054 = vrot.lane.b32.xlu0 %v834, 72
      %v3055 = vpop.permute.xlu0 %3054
      %v3056 = vsel %vm844, %v3053, 0
      %v3058 = vsel %vm844, %v3055, 0
      %3060 = vmatprep.subr.mxu0 0.0
      %3061 = vmatpush1.xpose.msra.mxu0 0.0
      %3062 = vmatprep.subr.mxu0 0.0
      %3063 = vmatpush1.xpose.msra.mxu0 0.0
      %3064 = vmatprep.subr.mxu0 0.0
      %3065 = vmatpush1.xpose.msra.mxu0 0.0
      %3066 = vmatprep.subr.mxu0 0.0
      %3067 = vmatpush1.xpose.msra.mxu0 0.0
      %3068 = vmatprep.subr.mxu0 0.0
      %3069 = vmatpush1.xpose.msra.mxu0 0.0
      %3070 = vmatprep.subr.mxu0 0.0
      %3071 = vmatpush1.xpose.msra.mxu0 0.0
      %3072 = vmatprep.subr.mxu0 0.0
      %3073 = vmatpush1.xpose.msra.mxu0 0.0
      %3074 = vmatprep.subr.mxu0 0.0
      %3075 = vmatpush1.xpose.msra.mxu0 0.0
      %3076 = vmatprep.subr.mxu0 0.0
      %3077 = vmatpush1.xpose.msra.mxu0 0.0
      %3078 = vmatprep.subr.mxu0 0.0
      %3079 = vmatpush1.xpose.msra.mxu0 0.0
      %3080 = vmatprep.subr.mxu0 0.0
      %3081 = vmatpush1.xpose.msra.mxu0 0.0
      %3082 = vmatprep.subr.mxu0 0.0
      %3083 = vmatpush1.xpose.msra.mxu0 0.0
      %3084 = vmatprep.subr.mxu0 0.0
      %3085 = vmatpush1.xpose.msra.mxu0 0.0
      %3086 = vmatprep.subr.mxu0 0.0
      %3087 = vmatpush1.xpose.msra.mxu0 0.0
      %3088 = vmatprep.subr.mxu0 0.0
      %3089 = vmatpush1.xpose.msra.mxu0 0.0
      %3090 = vmatprep.subr.mxu0 0.0
      %3091 = vmatpush1.xpose.msra.mxu0 %v3058
      %3092 = vmatprep.subr.mxu0 0.0
      %3093 = vmatpush2.xpose.msra.mxu0 0.0
      %3094 = vmatprep.subr.mxu0 0.0
      %3095 = vmatpush2.xpose.msra.mxu0 0.0
      %3096 = vmatprep.subr.mxu0 0.0
      %3097 = vmatpush2.xpose.msra.mxu0 0.0
      %3098 = vmatprep.subr.mxu0 0.0
      %3099 = vmatpush2.xpose.msra.mxu0 0.0
      %3100 = vmatprep.subr.mxu0 0.0
      %3101 = vmatpush2.xpose.msra.mxu0 0.0
      %3102 = vmatprep.subr.mxu0 0.0
      %3103 = vmatpush2.xpose.msra.mxu0 0.0
      %3104 = vmatprep.subr.mxu0 0.0
      %3105 = vmatpush2.xpose.msra.mxu0 0.0
      %3106 = vmatprep.subr.mxu0 0.0
      %3107 = vmatpush2.xpose.msra.mxu0 0.0
      %3108 = vmatprep.subr.mxu0 0.0
      %3109 = vmatpush2.xpose.msra.mxu0 0.0
      %3110 = vmatprep.subr.mxu0 0.0
      %3111 = vmatpush2.xpose.msra.mxu0 0.0
      %3112 = vmatprep.subr.mxu0 0.0
      %3113 = vmatpush2.xpose.msra.mxu0 0.0
      %3114 = vmatprep.subr.mxu0 0.0
      %3115 = vmatpush2.xpose.msra.mxu0 0.0
      %3116 = vmatprep.subr.mxu0 0.0
      %3117 = vmatpush2.xpose.msra.mxu0 0.0
      %3118 = vmatprep.subr.mxu0 0.0
      %3119 = vmatpush2.xpose.msra.mxu0 0.0
      %3120 = vmatprep.subr.mxu0 0.0
      %3121 = vmatpush2.xpose.msra.mxu0 0.0
      %3122 = vmatprep.subr.mxu0 0.0
      %3123 = vmatpush2.xpose.msra.mxu0 0.0
      %3124 = vmatprep.mubr.f32.mxu0 0.0
      %3125 = vmatmul.mubr.f32.gmra.mxu0 %v3056
      %v3126 = vpop.f32.mrf.mxu0
      %v3127 = vadd.f32 %v840, %v3126
      %v3128 = vpop.f32.mrf.mxu0
      %3129 = vdwg.mxu0
      %v3130 = vsel %vm844, %v2893, -inf
      %3131 = vmax.xlane.f32.xlu0 %v3130
      %v3132 = vpop.xlane.xlu0 %3131
      %v3133 = vsel %vm844, %v2971, -inf
      %3134 = vmax.xlane.f32.xlu0 %v3133
      %v3135 = vpop.xlane.xlu0 %3134
      %v3136 = vsel %vm844, %v3049, -inf
      %3137 = vmax.xlane.f32.xlu0 %v3136
      %v3138 = vpop.xlane.xlu0 %3137
      %v3139 = vsel %vm844, %v3127, -inf
      %3140 = vmax.xlane.f32.xlu0 %v3139
      %v3141 = vpop.xlane.xlu0 %3140
      %v3142 = vsub.f32 %v2893, %v3132
      %v3143 = vsub.f32 %v2971, %v3135
      %v3144 = vsub.f32 %v3049, %v3138
      %v3145 = vsub.f32 %v3127, %v3141
      %v3146 = vmul.f32 %v3142, 1.442695
      %v3147 = vpow.pop %v3146
      %v3148 = vmul.f32 %v3143, 1.442695
      %v3149 = vpow.pop %v3148
      %v3150 = vmul.f32 %v3144, 1.442695
      %v3151 = vpow.pop %v3150
      %v3152 = vmul.f32 %v3145, 1.442695
      %v3153 = vpow.pop %v3152
      %v3154 = vsel %vm844, %v3147, 0.0
      %3155 = vadd.xlane.f32.xlu0 %v3154
      %v3156 = vpop.xlane.xlu0 %3155
      %v3157 = vsel %vm844, %v3149, 0.0
      %3158 = vadd.xlane.f32.xlu0 %v3157
      %v3159 = vpop.xlane.xlu0 %3158
      %v3160 = vsel %vm844, %v3151, 0.0
      %3161 = vadd.xlane.f32.xlu0 %v3160
      %v3162 = vpop.xlane.xlu0 %3161
      %v3163 = vsel %vm844, %v3153, 0.0
      %3164 = vadd.xlane.f32.xlu0 %v3163
      %v3165 = vpop.xlane.xlu0 %3164
      %v3166 = vrcp.pop %v3156
      %v3167 = vrcp.pop %v3159
      %v3168 = vrcp.pop %v3162
      %v3169 = vrcp.pop %v3165
      %v3170 = vmul.f32 %v3147, %v3166
      %v3171 = vmul.f32 %v3149, %v3167
      %v3172 = vmul.f32 %v3151, %v3168
      %v3173 = vmul.f32 %v3153, %v3169
      %3174 = vrot.lane.b32.xlu0 %v819, 40
      %v3175 = vpop.permute.xlu0 %3174
      %v3178 = vsel %vm844, %v3170, 0
      %3180 = vmatprep.subr.mxu0 0.0
      %3181 = vmatpush1.msra.mxu0 0.0
      %3182 = vmatprep.subr.mxu0 0.0
      %3183 = vmatpush1.msra.mxu0 0.0
      %3184 = vmatprep.subr.mxu0 0.0
      %3185 = vmatpush1.msra.mxu0 0.0
      %3186 = vmatprep.subr.mxu0 0.0
      %3187 = vmatpush1.msra.mxu0 0.0
      %3188 = vmatprep.subr.mxu0 0.0
      %3189 = vmatpush1.msra.mxu0 0.0
      %3190 = vmatprep.subr.mxu0 0.0
      %3191 = vmatpush1.msra.mxu0 0.0
      %3192 = vmatprep.subr.mxu0 0.0
      %3193 = vmatpush1.msra.mxu0 0.0
      %3194 = vmatprep.subr.mxu0 0.0
      %3195 = vmatpush1.msra.mxu0 0.0
      %3196 = vmatprep.subr.mxu0 0.0
      %3197 = vmatpush1.msra.mxu0 0.0
      %3198 = vmatprep.subr.mxu0 0.0
      %3199 = vmatpush1.msra.mxu0 0.0
      %3200 = vmatprep.subr.mxu0 0.0
      %3201 = vmatpush1.msra.mxu0 0.0
      %3202 = vmatprep.subr.mxu0 0.0
      %3203 = vmatpush1.msra.mxu0 0.0
      %3204 = vmatprep.subr.mxu0 0.0
      %3205 = vmatpush1.msra.mxu0 0.0
      %3206 = vmatprep.subr.mxu0 0.0
      %3207 = vmatpush1.msra.mxu0 0.0
      %3208 = vmatprep.subr.mxu0 0.0
      %3209 = vmatpush1.msra.mxu0 0.0
      %3210 = vmatprep.subr.mxu0 0.0
      %3211 = vmatpush1.msra.mxu0 %v3175
      %3212 = vmatprep.subr.mxu0 0.0
      %3213 = vmatpush2.msra.mxu0 0.0
      %3214 = vmatprep.subr.mxu0 0.0
      %3215 = vmatpush2.msra.mxu0 0.0
      %3216 = vmatprep.subr.mxu0 0.0
      %3217 = vmatpush2.msra.mxu0 0.0
      %3218 = vmatprep.subr.mxu0 0.0
      %3219 = vmatpush2.msra.mxu0 0.0
      %3220 = vmatprep.subr.mxu0 0.0
      %3221 = vmatpush2.msra.mxu0 0.0
      %3222 = vmatprep.subr.mxu0 0.0
      %3223 = vmatpush2.msra.mxu0 0.0
      %3224 = vmatprep.subr.mxu0 0.0
      %3225 = vmatpush2.msra.mxu0 0.0
      %3226 = vmatprep.subr.mxu0 0.0
      %3227 = vmatpush2.msra.mxu0 0.0
      %3228 = vmatprep.subr.mxu0 0.0
      %3229 = vmatpush2.msra.mxu0 0.0
      %3230 = vmatprep.subr.mxu0 0.0
      %3231 = vmatpush2.msra.mxu0 0.0
      %3232 = vmatprep.subr.mxu0 0.0
      %3233 = vmatpush2.msra.mxu0 0.0
      %3234 = vmatprep.subr.mxu0 0.0
      %3235 = vmatpush2.msra.mxu0 0.0
      %3236 = vmatprep.subr.mxu0 0.0
      %3237 = vmatpush2.msra.mxu0 0.0
      %3238 = vmatprep.subr.mxu0 0.0
      %3239 = vmatpush2.msra.mxu0 0.0
      %3240 = vmatprep.subr.mxu0 0.0
      %3241 = vmatpush2.msra.mxu0 0.0
      %3242 = vmatprep.subr.mxu0 0.0
      %3243 = vmatpush2.msra.mxu0 0.0
      %3244 = vmatprep.mubr.f32.mxu0 0.0
      %3245 = vmatmul.mubr.f32.gmra.mxu0 %v3178
      %v3246 = vpop.f32.mrf.mxu0
      %v3247 = vadd.f32 0.0, %v3246
      %v3248 = vpop.f32.mrf.mxu0
      %3249 = vdwg.mxu0
      %3250 = vrot.lane.b32.xlu0 %v824, 40
      %v3251 = vpop.permute.xlu0 %3250
      %v3254 = vsel %vm844, %v3171, 0
      %3256 = vmatprep.subr.mxu0 0.0
      %3257 = vmatpush1.msra.mxu0 0.0
      %3258 = vmatprep.subr.mxu0 0.0
      %3259 = vmatpush1.msra.mxu0 0.0
      %3260 = vmatprep.subr.mxu0 0.0
      %3261 = vmatpush1.msra.mxu0 0.0
      %3262 = vmatprep.subr.mxu0 0.0
      %3263 = vmatpush1.msra.mxu0 0.0
      %3264 = vmatprep.subr.mxu0 0.0
      %3265 = vmatpush1.msra.mxu0 0.0
      %3266 = vmatprep.subr.mxu0 0.0
      %3267 = vmatpush1.msra.mxu0 0.0
      %3268 = vmatprep.subr.mxu0 0.0
      %3269 = vmatpush1.msra.mxu0 0.0
      %3270 = vmatprep.subr.mxu0 0.0
      %3271 = vmatpush1.msra.mxu0 0.0
      %3272 = vmatprep.subr.mxu0 0.0
      %3273 = vmatpush1.msra.mxu0 0.0
      %3274 = vmatprep.subr.mxu0 0.0
      %3275 = vmatpush1.msra.mxu0 0.0
      %3276 = vmatprep.subr.mxu0 0.0
      %3277 = vmatpush1.msra.mxu0 0.0
      %3278 = vmatprep.subr.mxu0 0.0
      %3279 = vmatpush1.msra.mxu0 0.0
      %3280 = vmatprep.subr.mxu0 0.0
      %3281 = vmatpush1.msra.mxu0 0.0
      %3282 = vmatprep.subr.mxu0 0.0
      %3283 = vmatpush1.msra.mxu0 0.0
      %3284 = vmatprep.subr.mxu0 0.0
      %3285 = vmatpush1.msra.mxu0 0.0
      %3286 = vmatprep.subr.mxu0 0.0
      %3287 = vmatpush1.msra.mxu0 %v3251
      %3288 = vmatprep.subr.mxu0 0.0
      %3289 = vmatpush2.msra.mxu0 0.0
      %3290 = vmatprep.subr.mxu0 0.0
      %3291 = vmatpush2.msra.mxu0 0.0
      %3292 = vmatprep.subr.mxu0 0.0
      %3293 = vmatpush2.msra.mxu0 0.0
      %3294 = vmatprep.subr.mxu0 0.0
      %3295 = vmatpush2.msra.mxu0 0.0
      %3296 = vmatprep.subr.mxu0 0.0
      %3297 = vmatpush2.msra.mxu0 0.0
      %3298 = vmatprep.subr.mxu0 0.0
      %3299 = vmatpush2.msra.mxu0 0.0
      %3300 = vmatprep.subr.mxu0 0.0
      %3301 = vmatpush2.msra.mxu0 0.0
      %3302 = vmatprep.subr.mxu0 0.0
      %3303 = vmatpush2.msra.mxu0 0.0
      %3304 = vmatprep.subr.mxu0 0.0
      %3305 = vmatpush2.msra.mxu0 0.0
      %3306 = vmatprep.subr.mxu0 0.0
      %3307 = vmatpush2.msra.mxu0 0.0
      %3308 = vmatprep.subr.mxu0 0.0
      %3309 = vmatpush2.msra.mxu0 0.0
      %3310 = vmatprep.subr.mxu0 0.0
      %3311 = vmatpush2.msra.mxu0 0.0
      %3312 = vmatprep.subr.mxu0 0.0
      %3313 = vmatpush2.msra.mxu0 0.0
      %3314 = vmatprep.subr.mxu0 0.0
      %3315 = vmatpush2.msra.mxu0 0.0
      %3316 = vmatprep.subr.mxu0 0.0
      %3317 = vmatpush2.msra.mxu0 0.0
      %3318 = vmatprep.subr.mxu0 0.0
      %3319 = vmatpush2.msra.mxu0 0.0
      %3320 = vmatprep.mubr.f32.mxu0 0.0
      %3321 = vmatmul.mubr.f32.gmra.mxu0 %v3254
      %v3322 = vpop.f32.mrf.mxu0
      %v3323 = vadd.f32 0.0, %v3322
      %v3324 = vpop.f32.mrf.mxu0
      %3325 = vdwg.mxu0
      %3326 = vrot.lane.b32.xlu0 %v829, 40
      %v3327 = vpop.permute.xlu0 %3326
      %v3330 = vsel %vm844, %v3172, 0
      %3332 = vmatprep.subr.mxu0 0.0
      %3333 = vmatpush1.msra.mxu0 0.0
      %3334 = vmatprep.subr.mxu0 0.0
      %3335 = vmatpush1.msra.mxu0 0.0
      %3336 = vmatprep.subr.mxu0 0.0
      %3337 = vmatpush1.msra.mxu0 0.0
      %3338 = vmatprep.subr.mxu0 0.0
      %3339 = vmatpush1.msra.mxu0 0.0
      %3340 = vmatprep.subr.mxu0 0.0
      %3341 = vmatpush1.msra.mxu0 0.0
      %3342 = vmatprep.subr.mxu0 0.0
      %3343 = vmatpush1.msra.mxu0 0.0
      %3344 = vmatprep.subr.mxu0 0.0
      %3345 = vmatpush1.msra.mxu0 0.0
      %3346 = vmatprep.subr.mxu0 0.0
      %3347 = vmatpush1.msra.mxu0 0.0
      %3348 = vmatprep.subr.mxu0 0.0
      %3349 = vmatpush1.msra.mxu0 0.0
      %3350 = vmatprep.subr.mxu0 0.0
      %3351 = vmatpush1.msra.mxu0 0.0
      %3352 = vmatprep.subr.mxu0 0.0
      %3353 = vmatpush1.msra.mxu0 0.0
      %3354 = vmatprep.subr.mxu0 0.0
      %3355 = vmatpush1.msra.mxu0 0.0
      %3356 = vmatprep.subr.mxu0 0.0
      %3357 = vmatpush1.msra.mxu0 0.0
      %3358 = vmatprep.subr.mxu0 0.0
      %3359 = vmatpush1.msra.mxu0 0.0
      %3360 = vmatprep.subr.mxu0 0.0
      %3361 = vmatpush1.msra.mxu0 0.0
      %3362 = vmatprep.subr.mxu0 0.0
      %3363 = vmatpush1.msra.mxu0 %v3327
      %3364 = vmatprep.subr.mxu0 0.0
      %3365 = vmatpush2.msra.mxu0 0.0
      %3366 = vmatprep.subr.mxu0 0.0
      %3367 = vmatpush2.msra.mxu0 0.0
      %3368 = vmatprep.subr.mxu0 0.0
      %3369 = vmatpush2.msra.mxu0 0.0
      %3370 = vmatprep.subr.mxu0 0.0
      %3371 = vmatpush2.msra.mxu0 0.0
      %3372 = vmatprep.subr.mxu0 0.0
      %3373 = vmatpush2.msra.mxu0 0.0
      %3374 = vmatprep.subr.mxu0 0.0
      %3375 = vmatpush2.msra.mxu0 0.0
      %3376 = vmatprep.subr.mxu0 0.0
      %3377 = vmatpush2.msra.mxu0 0.0
      %3378 = vmatprep.subr.mxu0 0.0
      %3379 = vmatpush2.msra.mxu0 0.0
      %3380 = vmatprep.subr.mxu0 0.0
      %3381 = vmatpush2.msra.mxu0 0.0
      %3382 = vmatprep.subr.mxu0 0.0
      %3383 = vmatpush2.msra.mxu0 0.0
      %3384 = vmatprep.subr.mxu0 0.0
      %3385 = vmatpush2.msra.mxu0 0.0
      %3386 = vmatprep.subr.mxu0 0.0
      %3387 = vmatpush2.msra.mxu0 0.0
      %3388 = vmatprep.subr.mxu0 0.0
      %3389 = vmatpush2.msra.mxu0 0.0
      %3390 = vmatprep.subr.mxu0 0.0
      %3391 = vmatpush2.msra.mxu0 0.0
      %3392 = vmatprep.subr.mxu0 0.0
      %3393 = vmatpush2.msra.mxu0 0.0
      %3394 = vmatprep.subr.mxu0 0.0
      %3395 = vmatpush2.msra.mxu0 0.0
      %3396 = vmatprep.mubr.f32.mxu0 0.0
      %3397 = vmatmul.mubr.f32.gmra.mxu0 %v3330
      %v3398 = vpop.f32.mrf.mxu0
      %v3399 = vadd.f32 0.0, %v3398
      %v3400 = vpop.f32.mrf.mxu0
      %3401 = vdwg.mxu0
      %3402 = vrot.lane.b32.xlu0 %v834, 40
      %v3403 = vpop.permute.xlu0 %3402
      %v3406 = vsel %vm844, %v3173, 0
      %3408 = vmatprep.subr.mxu0 0.0
      %3409 = vmatpush1.msra.mxu0 0.0
      %3410 = vmatprep.subr.mxu0 0.0
      %3411 = vmatpush1.msra.mxu0 0.0
      %3412 = vmatprep.subr.mxu0 0.0
      %3413 = vmatpush1.msra.mxu0 0.0
      %3414 = vmatprep.subr.mxu0 0.0
      %3415 = vmatpush1.msra.mxu0 0.0
      %3416 = vmatprep.subr.mxu0 0.0
      %3417 = vmatpush1.msra.mxu0 0.0
      %3418 = vmatprep.subr.mxu0 0.0
      %3419 = vmatpush1.msra.mxu0 0.0
      %3420 = vmatprep.subr.mxu0 0.0
      %3421 = vmatpush1.msra.mxu0 0.0
      %3422 = vmatprep.subr.mxu0 0.0
      %3423 = vmatpush1.msra.mxu0 0.0
      %3424 = vmatprep.subr.mxu0 0.0
      %3425 = vmatpush1.msra.mxu0 0.0
      %3426 = vmatprep.subr.mxu0 0.0
      %3427 = vmatpush1.msra.mxu0 0.0
      %3428 = vmatprep.subr.mxu0 0.0
      %3429 = vmatpush1.msra.mxu0 0.0
      %3430 = vmatprep.subr.mxu0 0.0
      %3431 = vmatpush1.msra.mxu0 0.0
      %3432 = vmatprep.subr.mxu0 0.0
      %3433 = vmatpush1.msra.mxu0 0.0
      %3434 = vmatprep.subr.mxu0 0.0
      %3435 = vmatpush1.msra.mxu0 0.0
      %3436 = vmatprep.subr.mxu0 0.0
      %3437 = vmatpush1.msra.mxu0 0.0
      %3438 = vmatprep.subr.mxu0 0.0
      %3439 = vmatpush1.msra.mxu0 %v3403
      %3440 = vmatprep.subr.mxu0 0.0
      %3441 = vmatpush2.msra.mxu0 0.0
      %3442 = vmatprep.subr.mxu0 0.0
      %3443 = vmatpush2.msra.mxu0 0.0
      %3444 = vmatprep.subr.mxu0 0.0
      %3445 = vmatpush2.msra.mxu0 0.0
      %3446 = vmatprep.subr.mxu0 0.0
      %3447 = vmatpush2.msra.mxu0 0.0
      %3448 = vmatprep.subr.mxu0 0.0
      %3449 = vmatpush2.msra.mxu0 0.0
      %3450 = vmatprep.subr.mxu0 0.0
      %3451 = vmatpush2.msra.mxu0 0.0
      %3452 = vmatprep.subr.mxu0 0.0
      %3453 = vmatpush2.msra.mxu0 0.0
      %3454 = vmatprep.subr.mxu0 0.0
      %3455 = vmatpush2.msra.mxu0 0.0
      %3456 = vmatprep.subr.mxu0 0.0
      %3457 = vmatpush2.msra.mxu0 0.0
      %3458 = vmatprep.subr.mxu0 0.0
      %3459 = vmatpush2.msra.mxu0 0.0
      %3460 = vmatprep.subr.mxu0 0.0
      %3461 = vmatpush2.msra.mxu0 0.0
      %3462 = vmatprep.subr.mxu0 0.0
      %3463 = vmatpush2.msra.mxu0 0.0
      %3464 = vmatprep.subr.mxu0 0.0
      %3465 = vmatpush2.msra.mxu0 0.0
      %3466 = vmatprep.subr.mxu0 0.0
      %3467 = vmatpush2.msra.mxu0 0.0
      %3468 = vmatprep.subr.mxu0 0.0
      %3469 = vmatpush2.msra.mxu0 0.0
      %3470 = vmatprep.subr.mxu0 0.0
      %3471 = vmatpush2.msra.mxu0 0.0
      %3472 = vmatprep.mubr.f32.mxu0 0.0
      %3473 = vmatmul.mubr.f32.gmra.mxu0 %v3406
      %v3474 = vpop.f32.mrf.mxu0
      %v3475 = vadd.f32 0.0, %v3474
      %v3476 = vpop.f32.mrf.mxu0
      %3477 = vdwg.mxu0
      %3482 = vrot.lane.b32.xlu0 %v1927, 8
      %v3483 = vpop.permute.xlu0 %3482
      %3484 = vrot.lane.b32.xlu0 %v2003, 8
      %v3485 = vpop.permute.xlu0 %3484
      %3486 = vrot.lane.b32.xlu0 %v2079, 8
      %v3487 = vpop.permute.xlu0 %3486
      %3488 = vrot.lane.b32.xlu0 %v2155, 8
      %v3489 = vpop.permute.xlu0 %3488
      %3498 = vrot.lane.b32.xlu0 %v2587, 16
      %v3499 = vpop.permute.xlu0 %3498
      %3500 = vrot.lane.b32.xlu0 %v2663, 16
      %v3501 = vpop.permute.xlu0 %3500
      %3502 = vrot.lane.b32.xlu0 %v2739, 16
      %v3503 = vpop.permute.xlu0 %3502
      %3504 = vrot.lane.b32.xlu0 %v2815, 16
      %v3505 = vpop.permute.xlu0 %3504
      %3514 = vrot.lane.b32.xlu0 %v3247, 24
      %v3515 = vpop.permute.xlu0 %3514
      %3516 = vrot.lane.b32.xlu0 %v3323, 24
      %v3517 = vpop.permute.xlu0 %3516
      %3518 = vrot.lane.b32.xlu0 %v3399, 24
      %v3519 = vpop.permute.xlu0 %3518
      %3520 = vrot.lane.b32.xlu0 %v3475, 24
      %v3521 = vpop.permute.xlu0 %3520
      %v3526 = vsel %vm844, %v1267, %v3483
      %v3527 = vsel %vm844, %v1343, %v3485
      %v3528 = vsel %vm844, %v1419, %v3487
      %v3529 = vsel %vm844, %v1495, %v3489
      %vm3530 = vcmask 130048
      %v3531 = vsel %vm3530, %v3526, %v3499
      %v3532 = vsel %vm3530, %v3527, %v3501
      %v3533 = vsel %vm3530, %v3528, %v3503
      %v3534 = vsel %vm3530, %v3529, %v3505
      %vm3535 = vcmask 195584
      %v3536 = vsel %vm3535, %v3531, %v3515
      %v3537 = vsel %vm3535, %v3532, %v3517
      %v3538 = vsel %vm3535, %v3533, %v3519
      %v3539 = vsel %vm3535, %v3534, %v3521
      %v3540 = vld [vmem:[%s663] sm:$0xff]
      %v3541 = vld [vmem:[%s663 + $0x8] sm:$0xff]
      %v3542 = vld [vmem:[%s663 + $0x10] sm:$0xff]
      %v3543 = vld [vmem:[%s663 + $0x18] sm:$0xff]
      %v3544 = vld [vmem:[%s666] sm:$0x1]
      %v3546 = vlaneseq
      %v3547 = vshrl.u32 %v3546, 7
      %v3548 = vsub.s32 0, %v3547
      %v3549 = vrot.slane %v3544, %v3548
      %v3552 = vsel %vm739, %v3536, 0
      %v3555 = vsel %vm739, %v3537, 0
      %v3558 = vsel %vm739, %v3538, 0
      %v3561 = vsel %vm739, %v3539, 0
      %3563 = vmatprep.subr.mxu0 0.0
      %3564 = vmatpush1.msra.mxu0 0.0
      %3565 = vmatprep.subr.mxu0 0.0
      %3566 = vmatpush1.msra.mxu0 0.0
      %3567 = vmatprep.subr.mxu0 0.0
      %3568 = vmatpush1.msra.mxu0 0.0
      %3569 = vmatprep.subr.mxu0 0.0
      %3570 = vmatpush1.msra.mxu0 0.0
      %3571 = vmatprep.subr.mxu0 0.0
      %3572 = vmatpush1.msra.mxu0 0.0
      %3573 = vmatprep.subr.mxu0 0.0
      %3574 = vmatpush1.msra.mxu0 0.0
      %3575 = vmatprep.subr.mxu0 0.0
      %3576 = vmatpush1.msra.mxu0 0.0
      %3577 = vmatprep.subr.mxu0 0.0
      %3578 = vmatpush1.msra.mxu0 0.0
      %3579 = vmatprep.subr.mxu0 0.0
      %3580 = vmatpush1.msra.mxu0 0.0
      %3581 = vmatprep.subr.mxu0 0.0
      %3582 = vmatpush1.msra.mxu0 0.0
      %3583 = vmatprep.subr.mxu0 0.0
      %3584 = vmatpush1.msra.mxu0 0.0
      %3585 = vmatprep.subr.mxu0 0.0
      %3586 = vmatpush1.msra.mxu0 0.0
      %3587 = vmatprep.subr.mxu0 0.0
      %3588 = vmatpush1.msra.mxu0 %v3543
      %3589 = vmatprep.subr.mxu0 0.0
      %3590 = vmatpush1.msra.mxu0 %v3542
      %3591 = vmatprep.subr.mxu0 0.0
      %3592 = vmatpush1.msra.mxu0 %v3541
      %3593 = vmatprep.subr.mxu0 0.0
      %3594 = vmatpush1.msra.mxu0 %v3540
      %3595 = vmatprep.subr.mxu0 0.0
      %3596 = vmatpush2.msra.mxu0 0.0
      %3597 = vmatprep.subr.mxu0 0.0
      %3598 = vmatpush2.msra.mxu0 0.0
      %3599 = vmatprep.subr.mxu0 0.0
      %3600 = vmatpush2.msra.mxu0 0.0
      %3601 = vmatprep.subr.mxu0 0.0
      %3602 = vmatpush2.msra.mxu0 0.0
      %3603 = vmatprep.subr.mxu0 0.0
      %3604 = vmatpush2.msra.mxu0 0.0
      %3605 = vmatprep.subr.mxu0 0.0
      %3606 = vmatpush2.msra.mxu0 0.0
      %3607 = vmatprep.subr.mxu0 0.0
      %3608 = vmatpush2.msra.mxu0 0.0
      %3609 = vmatprep.subr.mxu0 0.0
      %3610 = vmatpush2.msra.mxu0 0.0
      %3611 = vmatprep.subr.mxu0 0.0
      %3612 = vmatpush2.msra.mxu0 0.0
      %3613 = vmatprep.subr.mxu0 0.0
      %3614 = vmatpush2.msra.mxu0 0.0
      %3615 = vmatprep.subr.mxu0 0.0
      %3616 = vmatpush2.msra.mxu0 0.0
      %3617 = vmatprep.subr.mxu0 0.0
      %3618 = vmatpush2.msra.mxu0 0.0
      %3619 = vmatprep.subr.mxu0 0.0
      %3620 = vmatpush2.msra.mxu0 0.0
      %3621 = vmatprep.subr.mxu0 0.0
      %3622 = vmatpush2.msra.mxu0 0.0
      %3623 = vmatprep.subr.mxu0 0.0
      %3624 = vmatpush2.msra.mxu0 0.0
      %3625 = vmatprep.subr.mxu0 0.0
      %3626 = vmatpush2.msra.mxu0 0.0
      %3627 = vmatprep.mubr.f32.mxu0 0.0
      %3628 = vmatmul.mubr.f32.gmra.mxu0 %v3552
      %v3629 = vpop.f32.mrf.mxu0
      %v3630 = vadd.f32 %v3549, %v3629
      %v3631 = vpop.f32.mrf.mxu0
      %3632 = vmatprep.mubr.f32.mxu0 0.0
      %3633 = vmatmul.mubr.f32.gmra.mxu0 %v3555
      %v3634 = vpop.f32.mrf.mxu0
      %v3635 = vadd.f32 %v3549, %v3634
      %v3636 = vpop.f32.mrf.mxu0
      %3637 = vmatprep.mubr.f32.mxu0 0.0
      %3638 = vmatmul.mubr.f32.gmra.mxu0 %v3558
      %v3639 = vpop.f32.mrf.mxu0
      %v3640 = vadd.f32 %v3549, %v3639
      %v3641 = vpop.f32.mrf.mxu0
      %3642 = vmatprep.mubr.f32.mxu0 0.0
      %3643 = vmatmul.mubr.f32.gmra.mxu0 %v3561
      %v3644 = vpop.f32.mrf.mxu0
      %v3645 = vadd.f32 %v3549, %v3644
      %v3646 = vpop.f32.mrf.mxu0
      %3647 = vdwg.mxu0
      %v3648 = vadd.f32 %v724, %v3630
      %v3649 = vadd.f32 %v725, %v3635
      %v3650 = vadd.f32 %v726, %v3640
      %v3651 = vadd.f32 %v727, %v3645
      %v3652 = vld [vmem:[%s685] sm:$0x1]
      %v3653 = vld [vmem:[%s688] sm:$0x1]
      %v3654 = vsel %vm739, %v3648, 0.0
      %3655 = vadd.xlane.f32.xlu0 %v3654
      %v3656 = vpop.xlane.xlu0 %3655
      %v3657 = vsel %vm739, %v3649, 0.0
      %3658 = vadd.xlane.f32.xlu0 %v3657
      %v3659 = vpop.xlane.xlu0 %3658
      %v3660 = vsel %vm739, %v3650, 0.0
      %3661 = vadd.xlane.f32.xlu0 %v3660
      %v3662 = vpop.xlane.xlu0 %3661
      %v3663 = vsel %vm739, %v3651, 0.0
      %3664 = vadd.xlane.f32.xlu0 %v3663
      %v3665 = vpop.xlane.xlu0 %3664
      %v3666 = vrcp.pop 32.0
      %v3667 = vmul.f32 %v3656, %v3666
      %v3668 = vmul.f32 %v3659, %v3666
      %v3669 = vmul.f32 %v3662, %v3666
      %v3670 = vmul.f32 %v3665, %v3666
      %v3671 = vsub.f32 %v3648, %v3667
      %v3672 = vsub.f32 %v3649, %v3668
      %v3673 = vsub.f32 %v3650, %v3669
      %v3674 = vsub.f32 %v3651, %v3670
      %v3675 = vmul.f32 %v3671, %v3671
      %v3676 = vmul.f32 %v3672, %v3672
      %v3677 = vmul.f32 %v3673, %v3673
      %v3678 = vmul.f32 %v3674, %v3674
      %v3679 = vsel %vm739, %v3675, 0.0
      %3680 = vadd.xlane.f32.xlu0 %v3679
      %v3681 = vpop.xlane.xlu0 %3680
      %v3682 = vsel %vm739, %v3676, 0.0
      %3683 = vadd.xlane.f32.xlu0 %v3682
      %v3684 = vpop.xlane.xlu0 %3683
      %v3685 = vsel %vm739, %v3677, 0.0
      %3686 = vadd.xlane.f32.xlu0 %v3685
      %v3687 = vpop.xlane.xlu0 %3686
      %v3688 = vsel %vm739, %v3678, 0.0
      %3689 = vadd.xlane.f32.xlu0 %v3688
      %v3690 = vpop.xlane.xlu0 %3689
      %v3691 = vmul.f32 %v3681, %v3666
      %v3692 = vmul.f32 %v3684, %v3666
      %v3693 = vmul.f32 %v3687, %v3666
      %v3694 = vmul.f32 %v3690, %v3666
      %v3695 = vadd.f32 %v3691, 1e-05
      %v3696 = vadd.f32 %v3692, 1e-05
      %v3697 = vadd.f32 %v3693, 1e-05
      %v3698 = vadd.f32 %v3694, 1e-05
      %v3699 = vrsqrt.pop %v3695
      %v3700 = vrsqrt.pop %v3696
      %v3701 = vrsqrt.pop %v3697
      %v3702 = vrsqrt.pop %v3698
      %v3703 = vmul.f32 %v3671, %v3699
      %v3704 = vmul.f32 %v3672, %v3700
      %v3705 = vmul.f32 %v3673, %v3701
      %v3706 = vmul.f32 %v3674, %v3702
      %v3708 = vlaneseq
      %v3709 = vshrl.u32 %v3708, 7
      %v3710 = vsub.s32 0, %v3709
      %v3711 = vrot.slane %v3652, %v3710
      %v3713 = vmul.f32 %v3703, %v3711
      %v3714 = vmul.f32 %v3704, %v3711
      %v3715 = vmul.f32 %v3705, %v3711
      %v3716 = vmul.f32 %v3706, %v3711
      %v3718 = vlaneseq
      %v3719 = vshrl.u32 %v3718, 7
      %v3720 = vsub.s32 0, %v3719
      %v3721 = vrot.slane %v3653, %v3720
      %v3723 = vadd.f32 %v3713, %v3721
      %v3724 = vadd.f32 %v3714, %v3721
      %v3725 = vadd.f32 %v3715, %v3721
      %v3726 = vadd.f32 %v3716, %v3721
      %v3727 = vld [vmem:[%s671] sm:$0xff]
      %v3728 = vld [vmem:[%s671 + $0x8] sm:$0xff]
      %v3729 = vld [vmem:[%s671 + $0x10] sm:$0xff]
      %v3730 = vld [vmem:[%s671 + $0x18] sm:$0xff]
      %v3731 = vld [vmem:[%s674] sm:$0x1]
      %v3733 = vlaneseq
      %v3734 = vshrl.u32 %v3733, 7
      %v3735 = vsub.s32 0, %v3734
      %v3736 = vrot.slane %v3731, %v3735
      %v3739 = vsel %vm739, %v3723, 0
      %v3742 = vsel %vm739, %v3724, 0
      %v3745 = vsel %vm739, %v3725, 0
      %v3748 = vsel %vm739, %v3726, 0
      %3750 = vmatprep.subr.mxu0 0.0
      %3751 = vmatpush1.msra.mxu0 0.0
      %3752 = vmatprep.subr.mxu0 0.0
      %3753 = vmatpush1.msra.mxu0 0.0
      %3754 = vmatprep.subr.mxu0 0.0
      %3755 = vmatpush1.msra.mxu0 0.0
      %3756 = vmatprep.subr.mxu0 0.0
      %3757 = vmatpush1.msra.mxu0 0.0
      %3758 = vmatprep.subr.mxu0 0.0
      %3759 = vmatpush1.msra.mxu0 0.0
      %3760 = vmatprep.subr.mxu0 0.0
      %3761 = vmatpush1.msra.mxu0 0.0
      %3762 = vmatprep.subr.mxu0 0.0
      %3763 = vmatpush1.msra.mxu0 0.0
      %3764 = vmatprep.subr.mxu0 0.0
      %3765 = vmatpush1.msra.mxu0 0.0
      %3766 = vmatprep.subr.mxu0 0.0
      %3767 = vmatpush1.msra.mxu0 0.0
      %3768 = vmatprep.subr.mxu0 0.0
      %3769 = vmatpush1.msra.mxu0 0.0
      %3770 = vmatprep.subr.mxu0 0.0
      %3771 = vmatpush1.msra.mxu0 0.0
      %3772 = vmatprep.subr.mxu0 0.0
      %3773 = vmatpush1.msra.mxu0 0.0
      %3774 = vmatprep.subr.mxu0 0.0
      %3775 = vmatpush1.msra.mxu0 %v3730
      %3776 = vmatprep.subr.mxu0 0.0
      %3777 = vmatpush1.msra.mxu0 %v3729
      %3778 = vmatprep.subr.mxu0 0.0
      %3779 = vmatpush1.msra.mxu0 %v3728
      %3780 = vmatprep.subr.mxu0 0.0
      %3781 = vmatpush1.msra.mxu0 %v3727
      %3782 = vmatprep.subr.mxu0 0.0
      %3783 = vmatpush2.msra.mxu0 0.0
      %3784 = vmatprep.subr.mxu0 0.0
      %3785 = vmatpush2.msra.mxu0 0.0
      %3786 = vmatprep.subr.mxu0 0.0
      %3787 = vmatpush2.msra.mxu0 0.0
      %3788 = vmatprep.subr.mxu0 0.0
      %3789 = vmatpush2.msra.mxu0 0.0
      %3790 = vmatprep.subr.mxu0 0.0
      %3791 = vmatpush2.msra.mxu0 0.0
      %3792 = vmatprep.subr.mxu0 0.0
      %3793 = vmatpush2.msra.mxu0 0.0
      %3794 = vmatprep.subr.mxu0 0.0
      %3795 = vmatpush2.msra.mxu0 0.0
      %3796 = vmatprep.subr.mxu0 0.0
      %3797 = vmatpush2.msra.mxu0 0.0
      %3798 = vmatprep.subr.mxu0 0.0
      %3799 = vmatpush2.msra.mxu0 0.0
      %3800 = vmatprep.subr.mxu0 0.0
      %3801 = vmatpush2.msra.mxu0 0.0
      %3802 = vmatprep.subr.mxu0 0.0
      %3803 = vmatpush2.msra.mxu0 0.0
      %3804 = vmatprep.subr.mxu0 0.0
      %3805 = vmatpush2.msra.mxu0 0.0
      %3806 = vmatprep.subr.mxu0 0.0
      %3807 = vmatpush2.msra.mxu0 0.0
      %3808 = vmatprep.subr.mxu0 0.0
      %3809 = vmatpush2.msra.mxu0 0.0
      %3810 = vmatprep.subr.mxu0 0.0
      %3811 = vmatpush2.msra.mxu0 0.0
      %3812 = vmatprep.subr.mxu0 0.0
      %3813 = vmatpush2.msra.mxu0 0.0
      %3814 = vmatprep.mubr.f32.mxu0 0.0
      %3815 = vmatmul.mubr.f32.gmra.mxu0 %v3739
      %v3816 = vpop.f32.mrf.mxu0
      %v3817 = vadd.f32 %v3736, %v3816
      %v3818 = vpop.f32.mrf.mxu0
      %3819 = vmatprep.mubr.f32.mxu0 0.0
      %3820 = vmatmul.mubr.f32.gmra.mxu0 %v3742
      %v3821 = vpop.f32.mrf.mxu0
      %v3822 = vadd.f32 %v3736, %v3821
      %v3823 = vpop.f32.mrf.mxu0
      %3824 = vmatprep.mubr.f32.mxu0 0.0
      %3825 = vmatmul.mubr.f32.gmra.mxu0 %v3745
      %v3826 = vpop.f32.mrf.mxu0
      %v3827 = vadd.f32 %v3736, %v3826
      %v3828 = vpop.f32.mrf.mxu0
      %3829 = vmatprep.mubr.f32.mxu0 0.0
      %3830 = vmatmul.mubr.f32.gmra.mxu0 %v3748
      %v3831 = vpop.f32.mrf.mxu0
      %v3832 = vadd.f32 %v3736, %v3831
      %v3833 = vpop.f32.mrf.mxu0
      %3834 = vdwg.mxu0
      %v3835 = vmax.f32 %v3817, 0.0
      %v3836 = vmax.f32 %v3822, 0.0
      %v3837 = vmax.f32 %v3827, 0.0
      %v3838 = vmax.f32 %v3832, 0.0
      %v3839 = vld [vmem:[%s679] sm:$0xff]
      %v3840 = vld [vmem:[%s679 + $0x8] sm:$0xff]
      %v3841 = vld [vmem:[%s679 + $0x10] sm:$0xff]
      %v3842 = vld [vmem:[%s679 + $0x18] sm:$0xff]
      %v3843 = vld [vmem:[%s679 + $0x20] sm:$0xff]
      %v3844 = vld [vmem:[%s679 + $0x28] sm:$0xff]
      %v3845 = vld [vmem:[%s679 + $0x30] sm:$0xff]
      %v3846 = vld [vmem:[%s679 + $0x38] sm:$0xff]
      %v3847 = vld [vmem:[%s682] sm:$0x1]
      %v3849 = vlaneseq
      %v3850 = vshrl.u32 %v3849, 7
      %v3851 = vsub.s32 0, %v3850
      %v3852 = vrot.slane %v3847, %v3851
      %vm3854 = vcmask 523264
      %v3856 = vsel %vm3854, %v3835, 0
      %v3859 = vsel %vm3854, %v3836, 0
      %v3862 = vsel %vm3854, %v3837, 0
      %v3865 = vsel %vm3854, %v3838, 0
      %3867 = vmatprep.subr.mxu0 0.0
      %3868 = vmatpush1.msra.mxu0 0.0
      %3869 = vmatprep.subr.mxu0 0.0
      %3870 = vmatpush1.msra.mxu0 0.0
      %3871 = vmatprep.subr.mxu0 0.0
      %3872 = vmatpush1.msra.mxu0 0.0
      %3873 = vmatprep.subr.mxu0 0.0
      %3874 = vmatpush1.msra.mxu0 0.0
      %3875 = vmatprep.subr.mxu0 0.0
      %3876 = vmatpush1.msra.mxu0 0.0
      %3877 = vmatprep.subr.mxu0 0.0
      %3878 = vmatpush1.msra.mxu0 0.0
      %3879 = vmatprep.subr.mxu0 0.0
      %3880 = vmatpush1.msra.mxu0 0.0
      %3881 = vmatprep.subr.mxu0 0.0
      %3882 = vmatpush1.msra.mxu0 0.0
      %3883 = vmatprep.subr.mxu0 0.0
      %3884 = vmatpush1.msra.mxu0 %v3846
      %3885 = vmatprep.subr.mxu0 0.0
      %3886 = vmatpush1.msra.mxu0 %v3845
      %3887 = vmatprep.subr.mxu0 0.0
      %3888 = vmatpush1.msra.mxu0 %v3844
      %3889 = vmatprep.subr.mxu0 0.0
      %3890 = vmatpush1.msra.mxu0 %v3843
      %3891 = vmatprep.subr.mxu0 0.0
      %3892 = vmatpush1.msra.mxu0 %v3842
      %3893 = vmatprep.subr.mxu0 0.0
      %3894 = vmatpush1.msra.mxu0 %v3841
      %3895 = vmatprep.subr.mxu0 0.0
      %3896 = vmatpush1.msra.mxu0 %v3840
      %3897 = vmatprep.subr.mxu0 0.0
      %3898 = vmatpush1.msra.mxu0 %v3839
      %3899 = vmatprep.subr.mxu0 0.0
      %3900 = vmatpush2.msra.mxu0 0.0
      %3901 = vmatprep.subr.mxu0 0.0
      %3902 = vmatpush2.msra.mxu0 0.0
      %3903 = vmatprep.subr.mxu0 0.0
      %3904 = vmatpush2.msra.mxu0 0.0
      %3905 = vmatprep.subr.mxu0 0.0
      %3906 = vmatpush2.msra.mxu0 0.0
      %3907 = vmatprep.subr.mxu0 0.0
      %3908 = vmatpush2.msra.mxu0 0.0
      %3909 = vmatprep.subr.mxu0 0.0
      %3910 = vmatpush2.msra.mxu0 0.0
      %3911 = vmatprep.subr.mxu0 0.0
      %3912 = vmatpush2.msra.mxu0 0.0
      %3913 = vmatprep.subr.mxu0 0.0
      %3914 = vmatpush2.msra.mxu0 0.0
      %3915 = vmatprep.subr.mxu0 0.0
      %3916 = vmatpush2.msra.mxu0 0.0
      %3917 = vmatprep.subr.mxu0 0.0
      %3918 = vmatpush2.msra.mxu0 0.0
      %3919 = vmatprep.subr.mxu0 0.0
      %3920 = vmatpush2.msra.mxu0 0.0
      %3921 = vmatprep.subr.mxu0 0.0
      %3922 = vmatpush2.msra.mxu0 0.0
      %3923 = vmatprep.subr.mxu0 0.0
      %3924 = vmatpush2.msra.mxu0 0.0
      %3925 = vmatprep.subr.mxu0 0.0
      %3926 = vmatpush2.msra.mxu0 0.0
      %3927 = vmatprep.subr.mxu0 0.0
      %3928 = vmatpush2.msra.mxu0 0.0
      %3929 = vmatprep.subr.mxu0 0.0
      %3930 = vmatpush2.msra.mxu0 0.0
      %3931 = vmatprep.mubr.f32.mxu0 0.0
      %3932 = vmatmul.mubr.f32.gmra.mxu0 %v3856
      %v3933 = vpop.f32.mrf.mxu0
      %v3934 = vadd.f32 %v3852, %v3933
      %v3935 = vpop.f32.mrf.mxu0
      %3936 = vmatprep.mubr.f32.mxu0 0.0
      %3937 = vmatmul.mubr.f32.gmra.mxu0 %v3859
      %v3938 = vpop.f32.mrf.mxu0
      %v3939 = vadd.f32 %v3852, %v3938
      %v3940 = vpop.f32.mrf.mxu0
      %3941 = vmatprep.mubr.f32.mxu0 0.0
      %3942 = vmatmul.mubr.f32.gmra.mxu0 %v3862
      %v3943 = vpop.f32.mrf.mxu0
      %v3944 = vadd.f32 %v3852, %v3943
      %v3945 = vpop.f32.mrf.mxu0
      %3946 = vmatprep.mubr.f32.mxu0 0.0
      %3947 = vmatmul.mubr.f32.gmra.mxu0 %v3865
      %v3948 = vpop.f32.mrf.mxu0
      %v3949 = vadd.f32 %v3852, %v3948
      %v3950 = vpop.f32.mrf.mxu0
      %3951 = vdwg.mxu0
      %v3952 = vadd.f32 %v3723, %v3934
      %v3953 = vadd.f32 %v3724, %v3939
      %v3954 = vadd.f32 %v3725, %v3944
      %v3955 = vadd.f32 %v3726, %v3949
      %v3956 = vld [vmem:[%s691] sm:$0x1]
      %v3957 = vld [vmem:[%s694] sm:$0x1]
      %v3958 = vsel %vm739, %v3952, 0.0
      %3959 = vadd.xlane.f32.xlu0 %v3958
      %v3960 = vpop.xlane.xlu0 %3959
      %v3961 = vsel %vm739, %v3953, 0.0
      %3962 = vadd.xlane.f32.xlu0 %v3961
      %v3963 = vpop.xlane.xlu0 %3962
      %v3964 = vsel %vm739, %v3954, 0.0
      %3965 = vadd.xlane.f32.xlu0 %v3964
      %v3966 = vpop.xlane.xlu0 %3965
      %v3967 = vsel %vm739, %v3955, 0.0
      %3968 = vadd.xlane.f32.xlu0 %v3967
      %v3969 = vpop.xlane.xlu0 %3968
      %v3970 = vmul.f32 %v3960, %v3666
      %v3971 = vmul.f32 %v3963, %v3666
      %v3972 = vmul.f32 %v3966, %v3666
      %v3973 = vmul.f32 %v3969, %v3666
      %v3974 = vsub.f32 %v3952, %v3970
      %v3975 = vsub.f32 %v3953, %v3971
      %v3976 = vsub.f32 %v3954, %v3972
      %v3977 = vsub.f32 %v3955, %v3973
      %v3978 = vmul.f32 %v3974, %v3974
      %v3979 = vmul.f32 %v3975, %v3975
      %v3980 = vmul.f32 %v3976, %v3976
      %v3981 = vmul.f32 %v3977, %v3977
      %v3982 = vsel %vm739, %v3978, 0.0
      %3983 = vadd.xlane.f32.xlu0 %v3982
      %v3984 = vpop.xlane.xlu0 %3983
      %v3985 = vsel %vm739, %v3979, 0.0
      %3986 = vadd.xlane.f32.xlu0 %v3985
      %v3987 = vpop.xlane.xlu0 %3986
      %v3988 = vsel %vm739, %v3980, 0.0
      %3989 = vadd.xlane.f32.xlu0 %v3988
      %v3990 = vpop.xlane.xlu0 %3989
      %v3991 = vsel %vm739, %v3981, 0.0
      %3992 = vadd.xlane.f32.xlu0 %v3991
      %v3993 = vpop.xlane.xlu0 %3992
      %v3994 = vmul.f32 %v3984, %v3666
      %v3995 = vmul.f32 %v3987, %v3666
      %v3996 = vmul.f32 %v3990, %v3666
      %v3997 = vmul.f32 %v3993, %v3666
      %v3998 = vadd.f32 %v3994, 1e-05
      %v3999 = vadd.f32 %v3995, 1e-05
      %v4000 = vadd.f32 %v3996, 1e-05
      %v4001 = vadd.f32 %v3997, 1e-05
      %v4002 = vrsqrt.pop %v3998
      %v4003 = vrsqrt.pop %v3999
      %v4004 = vrsqrt.pop %v4000
      %v4005 = vrsqrt.pop %v4001
      %v4006 = vmul.f32 %v3974, %v4002
      %v4007 = vmul.f32 %v3975, %v4003
      %v4008 = vmul.f32 %v3976, %v4004
      %v4009 = vmul.f32 %v3977, %v4005
      %v4011 = vlaneseq
      %v4012 = vshrl.u32 %v4011, 7
      %v4013 = vsub.s32 0, %v4012
      %v4014 = vrot.slane %v3956, %v4013
      %v4016 = vmul.f32 %v4006, %v4014
      %v4017 = vmul.f32 %v4007, %v4014
      %v4018 = vmul.f32 %v4008, %v4014
      %v4019 = vmul.f32 %v4009, %v4014
      %v4021 = vlaneseq
      %v4022 = vshrl.u32 %v4021, 7
      %v4023 = vsub.s32 0, %v4022
      %v4024 = vrot.slane %v3957, %v4023
      %v4026 = vadd.f32 %v4016, %v4024
      %v4027 = vadd.f32 %v4017, %v4024
      %v4028 = vadd.f32 %v4018, %v4024
      %v4029 = vadd.f32 %v4019, %v4024
      %4030 = vst.msk [vmem:[#allocation2] sm:$0xff] %vm739, %v4026
      %4031 = vst.msk [vmem:[#allocation2 + $0x8] sm:$0xff] %vm739, %v4027
      %4032 = vst.msk [vmem:[#allocation2 + $0x10] sm:$0xff] %vm739, %v4028
      %4033 = vst.msk [vmem:[#allocation2 + $0x18] sm:$0xff] %vm739, %v4029
      %p4034 = scmp.eq.s32.totalorder %s31, 1
      // Predicated region
      $region85: #{tpu_custom_call.1} parent=79 // pred_check
        %p4035 = pneg %p4034
      $region86: #{tpu_custom_call.1} parent=79 // pred_check_branch
        %4037 = sbr.rel (%p4035) target = $region88
      $region87: #{tpu_custom_call.1} parent=79 // pred_region
        %v4038 = vsel %vm739, %v4026, 0.0
        %v4039 = vsel %vm739, %v4027, 0.0
        %v4040 = vadd.f32 %v4038, %v4039
        %v4041 = vsel %vm739, %v4028, 0.0
        %v4042 = vadd.f32 %v4040, %v4041
        %v4043 = vsel %vm739, %v4029, 0.0
        %v4044 = vadd.f32 %v4042, %v4043
        %v4045 = vmul.f32 %v4044, 0.125
        %v4046 = vld [vmem:[%s14] sm:$0xff]
        %v4047 = vld [vmem:[%s14 + $0x8] sm:$0xff]
        %v4048 = vld [vmem:[%s14 + $0x10] sm:$0xff]
        %v4049 = vld [vmem:[%s14 + $0x18] sm:$0xff]
        %v4051 = vsel %vm739, %v4045, 0
        %4053 = vmatprep.subr.mxu0 0.0
        %4054 = vmatpush1.msra.mxu0 0.0
        %4055 = vmatprep.subr.mxu0 0.0
        %4056 = vmatpush1.msra.mxu0 0.0
        %4057 = vmatprep.subr.mxu0 0.0
        %4058 = vmatpush1.msra.mxu0 0.0
        %4059 = vmatprep.subr.mxu0 0.0
        %4060 = vmatpush1.msra.mxu0 0.0
        %4061 = vmatprep.subr.mxu0 0.0
        %4062 = vmatpush1.msra.mxu0 0.0
        %4063 = vmatprep.subr.mxu0 0.0
        %4064 = vmatpush1.msra.mxu0 0.0
        %4065 = vmatprep.subr.mxu0 0.0
        %4066 = vmatpush1.msra.mxu0 0.0
        %4067 = vmatprep.subr.mxu0 0.0
        %4068 = vmatpush1.msra.mxu0 0.0
        %4069 = vmatprep.subr.mxu0 0.0
        %4070 = vmatpush1.msra.mxu0 0.0
        %4071 = vmatprep.subr.mxu0 0.0
        %4072 = vmatpush1.msra.mxu0 0.0
        %4073 = vmatprep.subr.mxu0 0.0
        %4074 = vmatpush1.msra.mxu0 0.0
        %4075 = vmatprep.subr.mxu0 0.0
        %4076 = vmatpush1.msra.mxu0 0.0
        %4077 = vmatprep.subr.mxu0 0.0
        %4078 = vmatpush1.msra.mxu0 %v4049
        %4079 = vmatprep.subr.mxu0 0.0
        %4080 = vmatpush1.msra.mxu0 %v4048
        %4081 = vmatprep.subr.mxu0 0.0
        %4082 = vmatpush1.msra.mxu0 %v4047
        %4083 = vmatprep.subr.mxu0 0.0
        %4084 = vmatpush1.msra.mxu0 %v4046
        %4085 = vmatprep.subr.mxu0 0.0
        %4086 = vmatpush2.msra.mxu0 0.0
        %4087 = vmatprep.subr.mxu0 0.0
        %4088 = vmatpush2.msra.mxu0 0.0
        %4089 = vmatprep.subr.mxu0 0.0
        %4090 = vmatpush2.msra.mxu0 0.0
        %4091 = vmatprep.subr.mxu0 0.0
        %4092 = vmatpush2.msra.mxu0 0.0
        %4093 = vmatprep.subr.mxu0 0.0
        %4094 = vmatpush2.msra.mxu0 0.0
        %4095 = vmatprep.subr.mxu0 0.0
        %4096 = vmatpush2.msra.mxu0 0.0
        %4097 = vmatprep.subr.mxu0 0.0
        %4098 = vmatpush2.msra.mxu0 0.0
        %4099 = vmatprep.subr.mxu0 0.0
        %4100 = vmatpush2.msra.mxu0 0.0
        %4101 = vmatprep.subr.mxu0 0.0
        %4102 = vmatpush2.msra.mxu0 0.0
        %4103 = vmatprep.subr.mxu0 0.0
        %4104 = vmatpush2.msra.mxu0 0.0
        %4105 = vmatprep.subr.mxu0 0.0
        %4106 = vmatpush2.msra.mxu0 0.0
        %4107 = vmatprep.subr.mxu0 0.0
        %4108 = vmatpush2.msra.mxu0 0.0
        %4109 = vmatprep.subr.mxu0 0.0
        %4110 = vmatpush2.msra.mxu0 0.0
        %4111 = vmatprep.subr.mxu0 0.0
        %4112 = vmatpush2.msra.mxu0 0.0
        %4113 = vmatprep.subr.mxu0 0.0
        %4114 = vmatpush2.msra.mxu0 0.0
        %4115 = vmatprep.subr.mxu0 0.0
        %4116 = vmatpush2.msra.mxu0 0.0
        %4117 = vmatprep.mubr.f32.mxu0 0.0
        %4118 = vmatmul.mubr.f32.gmra.mxu0 %v4051
        %v4119 = vpop.f32.mrf.mxu0
        %v4120 = vadd.f32 0.0, %v4119
        %v4121 = vpop.f32.mrf.mxu0
        %4122 = vdwg.mxu0
        %vm4123 = vcmask 39936
        %4124 = vst.msk [vmem:[%s698] sm:$0xff] %vm4123, %v4120
      $region88: #{tpu_custom_call.1} parent=79 // pred_fallthru
        _
      %p4125 = scmp.lt.s32.totalorder %s30, 1
      %s4126 = scalar_select %p4125, %s30, 1
      %s4127 = smul.addr %s4126, 8
      %s4128 = scalar_lea.vmem %s15, %s4127
      // Predicated region
      $region89: #{tpu_custom_call.1} parent=79 // pred_check
        %p4129 = pneg %p436
      $region90: #{tpu_custom_call.1} parent=79 // pred_check_branch
        %4131 = sbr.rel (%p4129) target = $region92
      $region91: #{tpu_custom_call.1} parent=79 // pred_region
        _
      $region92: #{tpu_custom_call.1} parent=79 // pred_fallthru
        _
    $region80: #{tpu_custom_call.1} parent=5 // pred_fallthru
      _
    %p4132 = scmp.le.s32.totalorder 2, %s21
    // Predicated region
    $region93: #{tpu_custom_call.1} parent=5 // pred_check
      %p4133 = pneg %p4132
    $region94: #{tpu_custom_call.1} parent=5 // pred_check_branch
      %4135 = sbr.rel (%p4133) target = $region96
    $region95: #{tpu_custom_call.1} parent=5 // pred_region
      %s4136 = ssub.s32 %s21, 2
      // Predicated region
      $region97: #{tpu_custom_call.1} parent=95 // pred_check
        %p4137 = pneg %p442
      $region98: #{tpu_custom_call.1} parent=95 // pred_check_branch
        %4139 = sbr.rel (%p4137) target = $region100
      $region99: #{tpu_custom_call.1} parent=95 // pred_region
        %p4140 = scmp.lt.s32.totalorder %s32, 1
        %s4141 = scalar_select %p4140, %s32, 1
        %s4142 = smul.addr %s4141, 8
        %s4143 = scalar_lea.vmem %s15, %s4142
      $region100: #{tpu_custom_call.1} parent=95 // pred_fallthru
        _
    $region96: #{tpu_custom_call.1} parent=5 // pred_fallthru
      _
  $region6: #{tpu_custom_call.1} parent=0 // loop_footer
    %s25 = sadd.s32 1, %s21
  $region7: #{tpu_custom_call.1} parent=0 // loop_footer_branch
    %20 = sbr.rel target = $region3
  $region8: #{tpu_custom_call.1} parent=0 // loop_exit
    _

</llo_original>
